<compile_context>
chip_gen: v7x
topology: tpu7x:2x2x1
jax: 0.10.0
libtpu: 0.0.40
codegen_flags: <defaults>
</compile_context>

<pallas_src>
import jax
import jax.numpy as jnp
from jax import lax
from jax.experimental import pallas as pl
from jax.experimental.pallas import tpu as pltpu

LATENT = 128     # latent_dim of the module
CONV_CH = 32     # Conv1d output channels
BATCH = 8


def offset_kernel(a_ref, b_ref, c_ref,                    # VMEM (bm, L) f32
                  wa_ref, wb_ref, cb_ref,                  # SMEM (32,) f32 scalars
                  w1_ref, b1_ref,                          # VMEM (32L, L) bf16, (1, L) f32
                  w2a_ref, w2b_ref, b2_ref,                # VMEM (L, L) bf16 x2, (1, L) f32
                  w3_ref, b3_ref,                          # VMEM (L, L) bf16, (1, L) f32
                  out_ref,                                 # VMEM (bm, L) f32
                  fused_ref):                              # VMEM scratch (bm, 32L) bf16
    L = LATENT
    A = a_ref[...]
    Bm = b_ref[...]

    # ---- ratio_net: Conv1d(2,32,1) + ReLU, channel loop into bf16 scratch ----
    # Column block o*L .. o*L+L of the scratch matches torch.nn.Flatten's
    # channel-major layout on (N, 32, L).  Cast to bf16 happens at store time,
    # so the only full-width intermediate is the 2-byte fused tile itself.
    def write_channel(o, carry):
        off = pl.multiple_of(o * L, L)
        act = jnp.maximum(A * wa_ref[o] + Bm * wb_ref[o] + cb_ref[o], 0.0)
        fused_ref[:, pl.ds(off, L)] = act.astype(jnp.bfloat16)
        return carry

    lax.fori_loop(0, CONV_CH, write_channel, 0, unroll=True)

    # ---- Linear(32L, L): single K=32L MXU dot, f32 accumulation ----
    ratio = jnp.dot(fused_ref[...], w1_ref[...],
                    preferred_element_type=jnp.float32) + b1_ref[...]

    # ---- conformity_net: Linear(2L, L) + ReLU + Linear(L, L) ----
    # W2 is split host-side; cat([ratio, C]) @ W2^T == ratio @ W2a + C @ W2b.
    h = jnp.maximum(
        jnp.dot(ratio.astype(jnp.bfloat16), w2a_ref[...],
                preferred_element_type=jnp.float32)
        + jnp.dot(c_ref[...].astype(jnp.bfloat16), w2b_ref[...],
                  preferred_element_type=jnp.float32)
        + b2_ref[...],
        0.0)
    d = jnp.dot(h.astype(jnp.bfloat16), w3_ref[...],
                preferred_element_type=jnp.float32) + b3_ref[...]
    out_ref[...] = d.astype(out_ref.dtype)


def _pick_bm(bsz, bm_max=512):
    """Batch tile + padded batch size.  Intermediates never scale with bsz."""
    if bsz <= bm_max:
        return bsz, bsz
    for bm in range(bm_max, 7, -8):      # largest multiple-of-8 divisor <= bm_max
        if bsz % bm == 0:
            return bm, bsz
    bm = 256                             # fall back: pad batch, slice the tail
    return bm, ((bsz + bm - 1) // bm) * bm


def offset_network_forward(A, B, C, params):
    bsz, L = A.shape
    assert L == LATENT
    K = CONV_CH * L

    # ---- host-side layout plumbing (static, outside the kernel) ----
    wa = params["w_conv"][:, 0, 0].astype(jnp.float32)              # (32,) SMEM scalars
    wb = params["w_conv"][:, 1, 0].astype(jnp.float32)              # (32,)
    cb = params["cb"].astype(jnp.float32)                           # (32,)
    W1t = jnp.transpose(params["W1"]).astype(jnp.bfloat16)          # (32L, L) channel-major
    W2a = jnp.transpose(params["W2"][:, :L]).astype(jnp.bfloat16)   # (L, L) ratio half
    W2b = jnp.transpose(params["W2"][:, L:]).astype(jnp.bfloat16)   # (L, L) C half
    W3t = jnp.transpose(params["W3"]).astype(jnp.bfloat16)          # (L, L)
    b1 = params["b1"].reshape(1, L).astype(jnp.float32)
    b2 = params["b2"].reshape(1, L).astype(jnp.float32)
    b3 = params["b3"].reshape(1, L).astype(jnp.float32)

    bm, padded = _pick_bm(bsz)
    if padded != bsz:
        pad = padded - bsz
        A = jnp.pad(A, ((0, pad), (0, 0)))
        B = jnp.pad(B, ((0, pad), (0, 0)))
        C = jnp.pad(C, ((0, pad), (0, 0)))
    grid = (padded // bm,)

    row = lambda i: (i, 0)
    const = lambda i: (0, 0)
    smem = pl.BlockSpec(memory_space=pltpu.MemorySpace.SMEM)

    grid_spec = pltpu.PrefetchScalarGridSpec(
        num_scalar_prefetch=0,
        grid=grid,
        in_specs=[
            pl.BlockSpec((bm, L), row),        # A
            pl.BlockSpec((bm, L), row),        # B
            pl.BlockSpec((bm, L), row),        # C
            smem, smem, smem,                  # conv wA / wB / bias scalars (SMEM)
            pl.BlockSpec((K, L), const),       # W1^T (32L, L)
            pl.BlockSpec((1, L), const),       # b1
            pl.BlockSpec((L, L), const),       # W2a^T (ratio half)
            pl.BlockSpec((L, L), const),       # W2b^T (C half)
            pl.BlockSpec((1, L), const),       # b2
            pl.BlockSpec((L, L), const),       # W3^T
            pl.BlockSpec((1, L), const),       # b3
        ],
        out_specs=pl.BlockSpec((bm, L), row),
        scratch_shapes=[pltpu.VMEM((bm, K), jnp.bfloat16)],   # fused conv activation
    )

    out = pl.pallas_call(
        offset_kernel,
        out_shape=jax.ShapeDtypeStruct((padded, L), jnp.float32),
        grid_spec=grid_spec,
        compiler_params=pltpu.CompilerParams(
            dimension_semantics=("parallel",)),
    )(A, B, C, wa, wb, cb, W1t, b1, W2a, W2b, b2, W3t, b3)

    return out[:bsz] if padded != bsz else out


def reference_forward(A, B, C, p):
    """Pure-JAX replication of the PyTorch forward (for verification)."""
    AB = jnp.stack([A, B], axis=1)                                   # (N, 2, L)
    conv = jnp.einsum("bcl,oc->bol", AB, p["w_conv"][:, :, 0]) \
        + p["cb"][None, :, None]
    conv = jnp.maximum(conv, 0.0)
    flat = conv.reshape(conv.shape[0], -1)                           # (N, 32*L)
    ratio = flat @ p["W1"].T + p["b1"]
    cat = jnp.concatenate([ratio, C], axis=1)
    h = jnp.maximum(cat @ p["W2"].T + p["b2"], 0.0)
    return h @ p["W3"].T + p["b3"]


def init_params(key, L=LATENT):
    ks = jax.random.split(key, 8)
    s = 0.05
    return {
        "w_conv": s * jax.random.normal(ks[0], (CONV_CH, 2, 1), jnp.float32),
        "cb":     s * jax.random.normal(ks[1], (CONV_CH,), jnp.float32),
        "W1":     s * jax.random.normal(ks[2], (L, CONV_CH * L), jnp.float32),
        "b1":     s * jax.random.normal(ks[3], (L,), jnp.float32),
        "W2":     s * jax.random.normal(ks[4], (L, 2 * L), jnp.float32),
        "b2":     s * jax.random.normal(ks[5], (L,), jnp.float32),
        "W3":     s * jax.random.normal(ks[6], (L, L), jnp.float32),
        "b3":     s * jax.random.normal(ks[7], (L,), jnp.float32),
    }


if __name__ == "__main__":
    key = jax.random.PRNGKey(0)
    kp, ka, kb, kc = jax.random.split(key, 4)
    params = init_params(kp)

    A = jax.random.normal(ka, (BATCH, LATENT), jnp.float32)
    B = jax.random.normal(kb, (BATCH, LATENT), jnp.float32)
    C = jax.random.normal(kc, (BATCH, LATENT), jnp.float32)

    out = jax.block_until_ready(offset_network_forward(A, B, C, params))
    ref = jax.block_until_ready(reference_forward(A, B, C, params))

    assert out.shape == (BATCH, LATENT)
    # bf16 weights / MXU-boundary casts with f32 accumulation -> slightly looser tol.
    assert jnp.allclose(out, ref, atol=2e-2, rtol=2e-2), "mismatch vs reference"

    print("KERNEL_OK")
</pallas_src>

<mosaic_0001>
module attributes {stable_mosaic.version = 11 : i64} {
  func.func @offset_kernel(%arg0: i32, %arg1: memref<8x128xf32, #tpu.memory_space<vmem>>, %arg2: memref<8x128xf32, #tpu.memory_space<vmem>>, %arg3: memref<8x128xf32, #tpu.memory_space<vmem>>, %arg4: memref<32xf32, #tpu.memory_space<smem>>, %arg5: memref<32xf32, #tpu.memory_space<smem>>, %arg6: memref<32xf32, #tpu.memory_space<smem>>, %arg7: memref<4096x128xbf16, #tpu.memory_space<vmem>>, %arg8: memref<1x128xf32, #tpu.memory_space<vmem>>, %arg9: memref<128x128xbf16, #tpu.memory_space<vmem>>, %arg10: memref<128x128xbf16, #tpu.memory_space<vmem>>, %arg11: memref<1x128xf32, #tpu.memory_space<vmem>>, %arg12: memref<128x128xbf16, #tpu.memory_space<vmem>>, %arg13: memref<1x128xf32, #tpu.memory_space<vmem>>, %arg14: memref<8x128xf32, #tpu.memory_space<vmem>>, %arg15: memref<8x4096xbf16, #tpu.memory_space<vmem>>) attributes {dimension_semantics = [#tpu.dimension_semantics<parallel>], iteration_bounds = array<i64: 1>, scalar_prefetch = 0 : i64, scratch_operands = 1 : i64, tpu.core_type = #tpu.core_type<tc>, window_params = [{transform_indices = @transform_0, window_bounds = array<i64: 8, 128>}, {transform_indices = @transform_1, window_bounds = array<i64: 8, 128>}, {transform_indices = @transform_2, window_bounds = array<i64: 8, 128>}, {transform_indices = @transform_3, window_bounds = array<i64: 32>}, {transform_indices = @transform_4, window_bounds = array<i64: 32>}, {transform_indices = @transform_5, window_bounds = array<i64: 32>}, {pipeline_mode = #tpu.pipeline_mode<synchronous>, transform_indices = @transform_6, window_bounds = array<i64: 4096, 128>}, {pipeline_mode = #tpu.pipeline_mode<synchronous>, transform_indices = @transform_7, window_bounds = array<i64: 1, 128>}, {pipeline_mode = #tpu.pipeline_mode<synchronous>, transform_indices = @transform_8, window_bounds = array<i64: 128, 128>}, {pipeline_mode = #tpu.pipeline_mode<synchronous>, transform_indices = @transform_9, window_bounds = array<i64: 128, 128>}, {pipeline_mode = #tpu.pipeline_mode<synchronous>, transform_indices = @transform_10, window_bounds = array<i64: 1, 128>}, {pipeline_mode = #tpu.pipeline_mode<synchronous>, transform_indices = @transform_11, window_bounds = array<i64: 128, 128>}, {pipeline_mode = #tpu.pipeline_mode<synchronous>, transform_indices = @transform_12, window_bounds = array<i64: 1, 128>}, {transform_indices = @transform_13, window_bounds = array<i64: 8, 128>}]} {
    %c0 = arith.constant 0 : index
    %c0_0 = arith.constant 0 : index
    %0 = vector.load %arg1[%c0, %c0_0] : memref<8x128xf32, #tpu.memory_space<vmem>>, vector<8x128xf32>
    %c0_1 = arith.constant 0 : index
    %c0_2 = arith.constant 0 : index
    %1 = vector.load %arg2[%c0_1, %c0_2] : memref<8x128xf32, #tpu.memory_space<vmem>>, vector<8x128xf32>
    %c0_i32 = arith.constant 0 : i32
    %c128_i32 = arith.constant 128 : i32
    %2 = arith.muli %c0_i32, %c128_i32 : i32
    %3 = tpu.assume_multiple %2, 128 : i32
    %4 = arith.index_cast %c0_i32 : i32 to index
    %5 = memref.load %arg4[%4] : memref<32xf32, #tpu.memory_space<smem>>
    %6 = vector.broadcast %5 : f32 to vector<8x128xf32>
    %7 = arith.mulf %0, %6 : vector<8x128xf32>
    %8 = arith.index_cast %c0_i32 : i32 to index
    %9 = memref.load %arg5[%8] : memref<32xf32, #tpu.memory_space<smem>>
    %10 = vector.broadcast %9 : f32 to vector<8x128xf32>
    %11 = arith.mulf %1, %10 : vector<8x128xf32>
    %12 = arith.addf %7, %11 : vector<8x128xf32>
    %13 = arith.index_cast %c0_i32 : i32 to index
    %14 = memref.load %arg6[%13] : memref<32xf32, #tpu.memory_space<smem>>
    %15 = vector.broadcast %14 : f32 to vector<8x128xf32>
    %16 = arith.addf %12, %15 : vector<8x128xf32>
    %cst = arith.constant 0.000000e+00 : f32
    %17 = vector.broadcast %cst : f32 to vector<8x128xf32>
    %18 = arith.maximumf %16, %17 : vector<8x128xf32>
    %19 = arith.truncf %18 : vector<8x128xf32> to vector<8x128xbf16>
    %c0_3 = arith.constant 0 : index
    %20 = arith.index_cast %3 : i32 to index
    %21 = vector.load %arg15[%c0_3, %20] : memref<8x4096xbf16, #tpu.memory_space<vmem>>, vector<8x128xbf16>
    tpu.vector_store %arg15[%c0_3, %20], %19 {strides = array<i32>} : memref<8x4096xbf16, #tpu.memory_space<vmem>>, vector<8x128xbf16>,
    %c1_i32 = arith.constant 1 : i32
    %c128_i32_4 = arith.constant 128 : i32
    %22 = arith.muli %c1_i32, %c128_i32_4 : i32
    %23 = tpu.assume_multiple %22, 128 : i32
    %24 = arith.index_cast %c1_i32 : i32 to index
    %25 = memref.load %arg4[%24] : memref<32xf32, #tpu.memory_space<smem>>
    %26 = vector.broadcast %25 : f32 to vector<8x128xf32>
    %27 = arith.mulf %0, %26 : vector<8x128xf32>
    %28 = arith.index_cast %c1_i32 : i32 to index
    %29 = memref.load %arg5[%28] : memref<32xf32, #tpu.memory_space<smem>>
    %30 = vector.broadcast %29 : f32 to vector<8x128xf32>
    %31 = arith.mulf %1, %30 : vector<8x128xf32>
    %32 = arith.addf %27, %31 : vector<8x128xf32>
    %33 = arith.index_cast %c1_i32 : i32 to index
    %34 = memref.load %arg6[%33] : memref<32xf32, #tpu.memory_space<smem>>
    %35 = vector.broadcast %34 : f32 to vector<8x128xf32>
    %36 = arith.addf %32, %35 : vector<8x128xf32>
    %cst_5 = arith.constant 0.000000e+00 : f32
    %37 = vector.broadcast %cst_5 : f32 to vector<8x128xf32>
    %38 = arith.maximumf %36, %37 : vector<8x128xf32>
    %39 = arith.truncf %38 : vector<8x128xf32> to vector<8x128xbf16>
    %c0_6 = arith.constant 0 : index
    %40 = arith.index_cast %23 : i32 to index
    %41 = vector.load %arg15[%c0_6, %40] : memref<8x4096xbf16, #tpu.memory_space<vmem>>, vector<8x128xbf16>
    tpu.vector_store %arg15[%c0_6, %40], %39 {strides = array<i32>} : memref<8x4096xbf16, #tpu.memory_space<vmem>>, vector<8x128xbf16>,
    %c2_i32 = arith.constant 2 : i32
    %c128_i32_7 = arith.constant 128 : i32
    %42 = arith.muli %c2_i32, %c128_i32_7 : i32
    %43 = tpu.assume_multiple %42, 128 : i32
    %44 = arith.index_cast %c2_i32 : i32 to index
    %45 = memref.load %arg4[%44] : memref<32xf32, #tpu.memory_space<smem>>
    %46 = vector.broadcast %45 : f32 to vector<8x128xf32>
    %47 = arith.mulf %0, %46 : vector<8x128xf32>
    %48 = arith.index_cast %c2_i32 : i32 to index
    %49 = memref.load %arg5[%48] : memref<32xf32, #tpu.memory_space<smem>>
    %50 = vector.broadcast %49 : f32 to vector<8x128xf32>
    %51 = arith.mulf %1, %50 : vector<8x128xf32>
    %52 = arith.addf %47, %51 : vector<8x128xf32>
    %53 = arith.index_cast %c2_i32 : i32 to index
    %54 = memref.load %arg6[%53] : memref<32xf32, #tpu.memory_space<smem>>
    %55 = vector.broadcast %54 : f32 to vector<8x128xf32>
    %56 = arith.addf %52, %55 : vector<8x128xf32>
    %cst_8 = arith.constant 0.000000e+00 : f32
    %57 = vector.broadcast %cst_8 : f32 to vector<8x128xf32>
    %58 = arith.maximumf %56, %57 : vector<8x128xf32>
    %59 = arith.truncf %58 : vector<8x128xf32> to vector<8x128xbf16>
    %c0_9 = arith.constant 0 : index
    %60 = arith.index_cast %43 : i32 to index
    %61 = vector.load %arg15[%c0_9, %60] : memref<8x4096xbf16, #tpu.memory_space<vmem>>, vector<8x128xbf16>
    tpu.vector_store %arg15[%c0_9, %60], %59 {strides = array<i32>} : memref<8x4096xbf16, #tpu.memory_space<vmem>>, vector<8x128xbf16>,
    %c3_i32 = arith.constant 3 : i32
    %c128_i32_10 = arith.constant 128 : i32
    %62 = arith.muli %c3_i32, %c128_i32_10 : i32
    %63 = tpu.assume_multiple %62, 128 : i32
    %64 = arith.index_cast %c3_i32 : i32 to index
    %65 = memref.load %arg4[%64] : memref<32xf32, #tpu.memory_space<smem>>
    %66 = vector.broadcast %65 : f32 to vector<8x128xf32>
    %67 = arith.mulf %0, %66 : vector<8x128xf32>
    %68 = arith.index_cast %c3_i32 : i32 to index
    %69 = memref.load %arg5[%68] : memref<32xf32, #tpu.memory_space<smem>>
    %70 = vector.broadcast %69 : f32 to vector<8x128xf32>
    %71 = arith.mulf %1, %70 : vector<8x128xf32>
    %72 = arith.addf %67, %71 : vector<8x128xf32>
    %73 = arith.index_cast %c3_i32 : i32 to index
    %74 = memref.load %arg6[%73] : memref<32xf32, #tpu.memory_space<smem>>
    %75 = vector.broadcast %74 : f32 to vector<8x128xf32>
    %76 = arith.addf %72, %75 : vector<8x128xf32>
    %cst_11 = arith.constant 0.000000e+00 : f32
    %77 = vector.broadcast %cst_11 : f32 to vector<8x128xf32>
    %78 = arith.maximumf %76, %77 : vector<8x128xf32>
    %79 = arith.truncf %78 : vector<8x128xf32> to vector<8x128xbf16>
    %c0_12 = arith.constant 0 : index
    %80 = arith.index_cast %63 : i32 to index
    %81 = vector.load %arg15[%c0_12, %80] : memref<8x4096xbf16, #tpu.memory_space<vmem>>, vector<8x128xbf16>
    tpu.vector_store %arg15[%c0_12, %80], %79 {strides = array<i32>} : memref<8x4096xbf16, #tpu.memory_space<vmem>>, vector<8x128xbf16>,
    %c4_i32 = arith.constant 4 : i32
    %c128_i32_13 = arith.constant 128 : i32
    %82 = arith.muli %c4_i32, %c128_i32_13 : i32
    %83 = tpu.assume_multiple %82, 128 : i32
    %84 = arith.index_cast %c4_i32 : i32 to index
    %85 = memref.load %arg4[%84] : memref<32xf32, #tpu.memory_space<smem>>
    %86 = vector.broadcast %85 : f32 to vector<8x128xf32>
    %87 = arith.mulf %0, %86 : vector<8x128xf32>
    %88 = arith.index_cast %c4_i32 : i32 to index
    %89 = memref.load %arg5[%88] : memref<32xf32, #tpu.memory_space<smem>>
    %90 = vector.broadcast %89 : f32 to vector<8x128xf32>
    %91 = arith.mulf %1, %90 : vector<8x128xf32>
    %92 = arith.addf %87, %91 : vector<8x128xf32>
    %93 = arith.index_cast %c4_i32 : i32 to index
    %94 = memref.load %arg6[%93] : memref<32xf32, #tpu.memory_space<smem>>
    %95 = vector.broadcast %94 : f32 to vector<8x128xf32>
    %96 = arith.addf %92, %95 : vector<8x128xf32>
    %cst_14 = arith.constant 0.000000e+00 : f32
    %97 = vector.broadcast %cst_14 : f32 to vector<8x128xf32>
    %98 = arith.maximumf %96, %97 : vector<8x128xf32>
    %99 = arith.truncf %98 : vector<8x128xf32> to vector<8x128xbf16>
    %c0_15 = arith.constant 0 : index
    %100 = arith.index_cast %83 : i32 to index
    %101 = vector.load %arg15[%c0_15, %100] : memref<8x4096xbf16, #tpu.memory_space<vmem>>, vector<8x128xbf16>
    tpu.vector_store %arg15[%c0_15, %100], %99 {strides = array<i32>} : memref<8x4096xbf16, #tpu.memory_space<vmem>>, vector<8x128xbf16>,
    %c5_i32 = arith.constant 5 : i32
    %c128_i32_16 = arith.constant 128 : i32
    %102 = arith.muli %c5_i32, %c128_i32_16 : i32
    %103 = tpu.assume_multiple %102, 128 : i32
    %104 = arith.index_cast %c5_i32 : i32 to index
    %105 = memref.load %arg4[%104] : memref<32xf32, #tpu.memory_space<smem>>
    %106 = vector.broadcast %105 : f32 to vector<8x128xf32>
    %107 = arith.mulf %0, %106 : vector<8x128xf32>
    %108 = arith.index_cast %c5_i32 : i32 to index
    %109 = memref.load %arg5[%108] : memref<32xf32, #tpu.memory_space<smem>>
    %110 = vector.broadcast %109 : f32 to vector<8x128xf32>
    %111 = arith.mulf %1, %110 : vector<8x128xf32>
    %112 = arith.addf %107, %111 : vector<8x128xf32>
    %113 = arith.index_cast %c5_i32 : i32 to index
    %114 = memref.load %arg6[%113] : memref<32xf32, #tpu.memory_space<smem>>
    %115 = vector.broadcast %114 : f32 to vector<8x128xf32>
    %116 = arith.addf %112, %115 : vector<8x128xf32>
    %cst_17 = arith.constant 0.000000e+00 : f32
    %117 = vector.broadcast %cst_17 : f32 to vector<8x128xf32>
    %118 = arith.maximumf %116, %117 : vector<8x128xf32>
    %119 = arith.truncf %118 : vector<8x128xf32> to vector<8x128xbf16>
    %c0_18 = arith.constant 0 : index
    %120 = arith.index_cast %103 : i32 to index
    %121 = vector.load %arg15[%c0_18, %120] : memref<8x4096xbf16, #tpu.memory_space<vmem>>, vector<8x128xbf16>
    tpu.vector_store %arg15[%c0_18, %120], %119 {strides = array<i32>} : memref<8x4096xbf16, #tpu.memory_space<vmem>>, vector<8x128xbf16>,
    %c6_i32 = arith.constant 6 : i32
    %c128_i32_19 = arith.constant 128 : i32
    %122 = arith.muli %c6_i32, %c128_i32_19 : i32
    %123 = tpu.assume_multiple %122, 128 : i32
    %124 = arith.index_cast %c6_i32 : i32 to index
    %125 = memref.load %arg4[%124] : memref<32xf32, #tpu.memory_space<smem>>
    %126 = vector.broadcast %125 : f32 to vector<8x128xf32>
    %127 = arith.mulf %0, %126 : vector<8x128xf32>
    %128 = arith.index_cast %c6_i32 : i32 to index
    %129 = memref.load %arg5[%128] : memref<32xf32, #tpu.memory_space<smem>>
    %130 = vector.broadcast %129 : f32 to vector<8x128xf32>
    %131 = arith.mulf %1, %130 : vector<8x128xf32>
    %132 = arith.addf %127, %131 : vector<8x128xf32>
    %133 = arith.index_cast %c6_i32 : i32 to index
    %134 = memref.load %arg6[%133] : memref<32xf32, #tpu.memory_space<smem>>
    %135 = vector.broadcast %134 : f32 to vector<8x128xf32>
    %136 = arith.addf %132, %135 : vector<8x128xf32>
    %cst_20 = arith.constant 0.000000e+00 : f32
    %137 = vector.broadcast %cst_20 : f32 to vector<8x128xf32>
    %138 = arith.maximumf %136, %137 : vector<8x128xf32>
    %139 = arith.truncf %138 : vector<8x128xf32> to vector<8x128xbf16>
    %c0_21 = arith.constant 0 : index
    %140 = arith.index_cast %123 : i32 to index
    %141 = vector.load %arg15[%c0_21, %140] : memref<8x4096xbf16, #tpu.memory_space<vmem>>, vector<8x128xbf16>
    tpu.vector_store %arg15[%c0_21, %140], %139 {strides = array<i32>} : memref<8x4096xbf16, #tpu.memory_space<vmem>>, vector<8x128xbf16>,
    %c7_i32 = arith.constant 7 : i32
    %c128_i32_22 = arith.constant 128 : i32
    %142 = arith.muli %c7_i32, %c128_i32_22 : i32
    %143 = tpu.assume_multiple %142, 128 : i32
    %144 = arith.index_cast %c7_i32 : i32 to index
    %145 = memref.load %arg4[%144] : memref<32xf32, #tpu.memory_space<smem>>
    %146 = vector.broadcast %145 : f32 to vector<8x128xf32>
    %147 = arith.mulf %0, %146 : vector<8x128xf32>
    %148 = arith.index_cast %c7_i32 : i32 to index
    %149 = memref.load %arg5[%148] : memref<32xf32, #tpu.memory_space<smem>>
    %150 = vector.broadcast %149 : f32 to vector<8x128xf32>
    %151 = arith.mulf %1, %150 : vector<8x128xf32>
    %152 = arith.addf %147, %151 : vector<8x128xf32>
    %153 = arith.index_cast %c7_i32 : i32 to index
    %154 = memref.load %arg6[%153] : memref<32xf32, #tpu.memory_space<smem>>
    %155 = vector.broadcast %154 : f32 to vector<8x128xf32>
    %156 = arith.addf %152, %155 : vector<8x128xf32>
    %cst_23 = arith.constant 0.000000e+00 : f32
    %157 = vector.broadcast %cst_23 : f32 to vector<8x128xf32>
    %158 = arith.maximumf %156, %157 : vector<8x128xf32>
    %159 = arith.truncf %158 : vector<8x128xf32> to vector<8x128xbf16>
    %c0_24 = arith.constant 0 : index
    %160 = arith.index_cast %143 : i32 to index
    %161 = vector.load %arg15[%c0_24, %160] : memref<8x4096xbf16, #tpu.memory_space<vmem>>, vector<8x128xbf16>
    tpu.vector_store %arg15[%c0_24, %160], %159 {strides = array<i32>} : memref<8x4096xbf16, #tpu.memory_space<vmem>>, vector<8x128xbf16>,
    %c8_i32 = arith.constant 8 : i32
    %c128_i32_25 = arith.constant 128 : i32
    %162 = arith.muli %c8_i32, %c128_i32_25 : i32
    %163 = tpu.assume_multiple %162, 128 : i32
    %164 = arith.index_cast %c8_i32 : i32 to index
    %165 = memref.load %arg4[%164] : memref<32xf32, #tpu.memory_space<smem>>
    %166 = vector.broadcast %165 : f32 to vector<8x128xf32>
    %167 = arith.mulf %0, %166 : vector<8x128xf32>
    %168 = arith.index_cast %c8_i32 : i32 to index
    %169 = memref.load %arg5[%168] : memref<32xf32, #tpu.memory_space<smem>>
    %170 = vector.broadcast %169 : f32 to vector<8x128xf32>
    %171 = arith.mulf %1, %170 : vector<8x128xf32>
    %172 = arith.addf %167, %171 : vector<8x128xf32>
    %173 = arith.index_cast %c8_i32 : i32 to index
    %174 = memref.load %arg6[%173] : memref<32xf32, #tpu.memory_space<smem>>
    %175 = vector.broadcast %174 : f32 to vector<8x128xf32>
    %176 = arith.addf %172, %175 : vector<8x128xf32>
    %cst_26 = arith.constant 0.000000e+00 : f32
    %177 = vector.broadcast %cst_26 : f32 to vector<8x128xf32>
    %178 = arith.maximumf %176, %177 : vector<8x128xf32>
    %179 = arith.truncf %178 : vector<8x128xf32> to vector<8x128xbf16>
    %c0_27 = arith.constant 0 : index
    %180 = arith.index_cast %163 : i32 to index
    %181 = vector.load %arg15[%c0_27, %180] : memref<8x4096xbf16, #tpu.memory_space<vmem>>, vector<8x128xbf16>
    tpu.vector_store %arg15[%c0_27, %180], %179 {strides = array<i32>} : memref<8x4096xbf16, #tpu.memory_space<vmem>>, vector<8x128xbf16>,
    %c9_i32 = arith.constant 9 : i32
    %c128_i32_28 = arith.constant 128 : i32
    %182 = arith.muli %c9_i32, %c128_i32_28 : i32
    %183 = tpu.assume_multiple %182, 128 : i32
    %184 = arith.index_cast %c9_i32 : i32 to index
    %185 = memref.load %arg4[%184] : memref<32xf32, #tpu.memory_space<smem>>
    %186 = vector.broadcast %185 : f32 to vector<8x128xf32>
    %187 = arith.mulf %0, %186 : vector<8x128xf32>
    %188 = arith.index_cast %c9_i32 : i32 to index
    %189 = memref.load %arg5[%188] : memref<32xf32, #tpu.memory_space<smem>>
    %190 = vector.broadcast %189 : f32 to vector<8x128xf32>
    %191 = arith.mulf %1, %190 : vector<8x128xf32>
    %192 = arith.addf %187, %191 : vector<8x128xf32>
    %193 = arith.index_cast %c9_i32 : i32 to index
    %194 = memref.load %arg6[%193] : memref<32xf32, #tpu.memory_space<smem>>
    %195 = vector.broadcast %194 : f32 to vector<8x128xf32>
    %196 = arith.addf %192, %195 : vector<8x128xf32>
    %cst_29 = arith.constant 0.000000e+00 : f32
    %197 = vector.broadcast %cst_29 : f32 to vector<8x128xf32>
    %198 = arith.maximumf %196, %197 : vector<8x128xf32>
    %199 = arith.truncf %198 : vector<8x128xf32> to vector<8x128xbf16>
    %c0_30 = arith.constant 0 : index
    %200 = arith.index_cast %183 : i32 to index
    %201 = vector.load %arg15[%c0_30, %200] : memref<8x4096xbf16, #tpu.memory_space<vmem>>, vector<8x128xbf16>
    tpu.vector_store %arg15[%c0_30, %200], %199 {strides = array<i32>} : memref<8x4096xbf16, #tpu.memory_space<vmem>>, vector<8x128xbf16>,
    %c10_i32 = arith.constant 10 : i32
    %c128_i32_31 = arith.constant 128 : i32
    %202 = arith.muli %c10_i32, %c128_i32_31 : i32
    %203 = tpu.assume_multiple %202, 128 : i32
    %204 = arith.index_cast %c10_i32 : i32 to index
    %205 = memref.load %arg4[%204] : memref<32xf32, #tpu.memory_space<smem>>
    %206 = vector.broadcast %205 : f32 to vector<8x128xf32>
    %207 = arith.mulf %0, %206 : vector<8x128xf32>
    %208 = arith.index_cast %c10_i32 : i32 to index
    %209 = memref.load %arg5[%208] : memref<32xf32, #tpu.memory_space<smem>>
    %210 = vector.broadcast %209 : f32 to vector<8x128xf32>
    %211 = arith.mulf %1, %210 : vector<8x128xf32>
    %212 = arith.addf %207, %211 : vector<8x128xf32>
    %213 = arith.index_cast %c10_i32 : i32 to index
    %214 = memref.load %arg6[%213] : memref<32xf32, #tpu.memory_space<smem>>
    %215 = vector.broadcast %214 : f32 to vector<8x128xf32>
    %216 = arith.addf %212, %215 : vector<8x128xf32>
    %cst_32 = arith.constant 0.000000e+00 : f32
    %217 = vector.broadcast %cst_32 : f32 to vector<8x128xf32>
    %218 = arith.maximumf %216, %217 : vector<8x128xf32>
    %219 = arith.truncf %218 : vector<8x128xf32> to vector<8x128xbf16>
    %c0_33 = arith.constant 0 : index
    %220 = arith.index_cast %203 : i32 to index
    %221 = vector.load %arg15[%c0_33, %220] : memref<8x4096xbf16, #tpu.memory_space<vmem>>, vector<8x128xbf16>
    tpu.vector_store %arg15[%c0_33, %220], %219 {strides = array<i32>} : memref<8x4096xbf16, #tpu.memory_space<vmem>>, vector<8x128xbf16>,
    %c11_i32 = arith.constant 11 : i32
    %c128_i32_34 = arith.constant 128 : i32
    %222 = arith.muli %c11_i32, %c128_i32_34 : i32
    %223 = tpu.assume_multiple %222, 128 : i32
    %224 = arith.index_cast %c11_i32 : i32 to index
    %225 = memref.load %arg4[%224] : memref<32xf32, #tpu.memory_space<smem>>
    %226 = vector.broadcast %225 : f32 to vector<8x128xf32>
    %227 = arith.mulf %0, %226 : vector<8x128xf32>
    %228 = arith.index_cast %c11_i32 : i32 to index
    %229 = memref.load %arg5[%228] : memref<32xf32, #tpu.memory_space<smem>>
    %230 = vector.broadcast %229 : f32 to vector<8x128xf32>
    %231 = arith.mulf %1, %230 : vector<8x128xf32>
    %232 = arith.addf %227, %231 : vector<8x128xf32>
    %233 = arith.index_cast %c11_i32 : i32 to index
    %234 = memref.load %arg6[%233] : memref<32xf32, #tpu.memory_space<smem>>
    %235 = vector.broadcast %234 : f32 to vector<8x128xf32>
    %236 = arith.addf %232, %235 : vector<8x128xf32>
    %cst_35 = arith.constant 0.000000e+00 : f32
    %237 = vector.broadcast %cst_35 : f32 to vector<8x128xf32>
    %238 = arith.maximumf %236, %237 : vector<8x128xf32>
    %239 = arith.truncf %238 : vector<8x128xf32> to vector<8x128xbf16>
    %c0_36 = arith.constant 0 : index
    %240 = arith.index_cast %223 : i32 to index
    %241 = vector.load %arg15[%c0_36, %240] : memref<8x4096xbf16, #tpu.memory_space<vmem>>, vector<8x128xbf16>
    tpu.vector_store %arg15[%c0_36, %240], %239 {strides = array<i32>} : memref<8x4096xbf16, #tpu.memory_space<vmem>>, vector<8x128xbf16>,
    %c12_i32 = arith.constant 12 : i32
    %c128_i32_37 = arith.constant 128 : i32
    %242 = arith.muli %c12_i32, %c128_i32_37 : i32
    %243 = tpu.assume_multiple %242, 128 : i32
    %244 = arith.index_cast %c12_i32 : i32 to index
    %245 = memref.load %arg4[%244] : memref<32xf32, #tpu.memory_space<smem>>
    %246 = vector.broadcast %245 : f32 to vector<8x128xf32>
    %247 = arith.mulf %0, %246 : vector<8x128xf32>
    %248 = arith.index_cast %c12_i32 : i32 to index
    %249 = memref.load %arg5[%248] : memref<32xf32, #tpu.memory_space<smem>>
    %250 = vector.broadcast %249 : f32 to vector<8x128xf32>
    %251 = arith.mulf %1, %250 : vector<8x128xf32>
    %252 = arith.addf %247, %251 : vector<8x128xf32>
    %253 = arith.index_cast %c12_i32 : i32 to index
    %254 = memref.load %arg6[%253] : memref<32xf32, #tpu.memory_space<smem>>
    %255 = vector.broadcast %254 : f32 to vector<8x128xf32>
    %256 = arith.addf %252, %255 : vector<8x128xf32>
    %cst_38 = arith.constant 0.000000e+00 : f32
    %257 = vector.broadcast %cst_38 : f32 to vector<8x128xf32>
    %258 = arith.maximumf %256, %257 : vector<8x128xf32>
    %259 = arith.truncf %258 : vector<8x128xf32> to vector<8x128xbf16>
    %c0_39 = arith.constant 0 : index
    %260 = arith.index_cast %243 : i32 to index
    %261 = vector.load %arg15[%c0_39, %260] : memref<8x4096xbf16, #tpu.memory_space<vmem>>, vector<8x128xbf16>
    tpu.vector_store %arg15[%c0_39, %260], %259 {strides = array<i32>} : memref<8x4096xbf16, #tpu.memory_space<vmem>>, vector<8x128xbf16>,
    %c13_i32 = arith.constant 13 : i32
    %c128_i32_40 = arith.constant 128 : i32
    %262 = arith.muli %c13_i32, %c128_i32_40 : i32
    %263 = tpu.assume_multiple %262, 128 : i32
    %264 = arith.index_cast %c13_i32 : i32 to index
    %265 = memref.load %arg4[%264] : memref<32xf32, #tpu.memory_space<smem>>
    %266 = vector.broadcast %265 : f32 to vector<8x128xf32>
    %267 = arith.mulf %0, %266 : vector<8x128xf32>
    %268 = arith.index_cast %c13_i32 : i32 to index
    %269 = memref.load %arg5[%268] : memref<32xf32, #tpu.memory_space<smem>>
    %270 = vector.broadcast %269 : f32 to vector<8x128xf32>
    %271 = arith.mulf %1, %270 : vector<8x128xf32>
    %272 = arith.addf %267, %271 : vector<8x128xf32>
    %273 = arith.index_cast %c13_i32 : i32 to index
    %274 = memref.load %arg6[%273] : memref<32xf32, #tpu.memory_space<smem>>
    %275 = vector.broadcast %274 : f32 to vector<8x128xf32>
    %276 = arith.addf %272, %275 : vector<8x128xf32>
    %cst_41 = arith.constant 0.000000e+00 : f32
    %277 = vector.broadcast %cst_41 : f32 to vector<8x128xf32>
    %278 = arith.maximumf %276, %277 : vector<8x128xf32>
    %279 = arith.truncf %278 : vector<8x128xf32> to vector<8x128xbf16>
    %c0_42 = arith.constant 0 : index
    %280 = arith.index_cast %263 : i32 to index
    %281 = vector.load %arg15[%c0_42, %280] : memref<8x4096xbf16, #tpu.memory_space<vmem>>, vector<8x128xbf16>
    tpu.vector_store %arg15[%c0_42, %280], %279 {strides = array<i32>} : memref<8x4096xbf16, #tpu.memory_space<vmem>>, vector<8x128xbf16>,
    %c14_i32 = arith.constant 14 : i32
    %c128_i32_43 = arith.constant 128 : i32
    %282 = arith.muli %c14_i32, %c128_i32_43 : i32
    %283 = tpu.assume_multiple %282, 128 : i32
    %284 = arith.index_cast %c14_i32 : i32 to index
    %285 = memref.load %arg4[%284] : memref<32xf32, #tpu.memory_space<smem>>
    %286 = vector.broadcast %285 : f32 to vector<8x128xf32>
    %287 = arith.mulf %0, %286 : vector<8x128xf32>
    %288 = arith.index_cast %c14_i32 : i32 to index
    %289 = memref.load %arg5[%288] : memref<32xf32, #tpu.memory_space<smem>>
    %290 = vector.broadcast %289 : f32 to vector<8x128xf32>
    %291 = arith.mulf %1, %290 : vector<8x128xf32>
    %292 = arith.addf %287, %291 : vector<8x128xf32>
    %293 = arith.index_cast %c14_i32 : i32 to index
    %294 = memref.load %arg6[%293] : memref<32xf32, #tpu.memory_space<smem>>
    %295 = vector.broadcast %294 : f32 to vector<8x128xf32>
    %296 = arith.addf %292, %295 : vector<8x128xf32>
    %cst_44 = arith.constant 0.000000e+00 : f32
    %297 = vector.broadcast %cst_44 : f32 to vector<8x128xf32>
    %298 = arith.maximumf %296, %297 : vector<8x128xf32>
    %299 = arith.truncf %298 : vector<8x128xf32> to vector<8x128xbf16>
    %c0_45 = arith.constant 0 : index
    %300 = arith.index_cast %283 : i32 to index
    %301 = vector.load %arg15[%c0_45, %300] : memref<8x4096xbf16, #tpu.memory_space<vmem>>, vector<8x128xbf16>
    tpu.vector_store %arg15[%c0_45, %300], %299 {strides = array<i32>} : memref<8x4096xbf16, #tpu.memory_space<vmem>>, vector<8x128xbf16>,
    %c15_i32 = arith.constant 15 : i32
    %c128_i32_46 = arith.constant 128 : i32
    %302 = arith.muli %c15_i32, %c128_i32_46 : i32
    %303 = tpu.assume_multiple %302, 128 : i32
    %304 = arith.index_cast %c15_i32 : i32 to index
    %305 = memref.load %arg4[%304] : memref<32xf32, #tpu.memory_space<smem>>
    %306 = vector.broadcast %305 : f32 to vector<8x128xf32>
    %307 = arith.mulf %0, %306 : vector<8x128xf32>
    %308 = arith.index_cast %c15_i32 : i32 to index
    %309 = memref.load %arg5[%308] : memref<32xf32, #tpu.memory_space<smem>>
    %310 = vector.broadcast %309 : f32 to vector<8x128xf32>
    %311 = arith.mulf %1, %310 : vector<8x128xf32>
    %312 = arith.addf %307, %311 : vector<8x128xf32>
    %313 = arith.index_cast %c15_i32 : i32 to index
    %314 = memref.load %arg6[%313] : memref<32xf32, #tpu.memory_space<smem>>
    %315 = vector.broadcast %314 : f32 to vector<8x128xf32>
    %316 = arith.addf %312, %315 : vector<8x128xf32>
    %cst_47 = arith.constant 0.000000e+00 : f32
    %317 = vector.broadcast %cst_47 : f32 to vector<8x128xf32>
    %318 = arith.maximumf %316, %317 : vector<8x128xf32>
    %319 = arith.truncf %318 : vector<8x128xf32> to vector<8x128xbf16>
    %c0_48 = arith.constant 0 : index
    %320 = arith.index_cast %303 : i32 to index
    %321 = vector.load %arg15[%c0_48, %320] : memref<8x4096xbf16, #tpu.memory_space<vmem>>, vector<8x128xbf16>
    tpu.vector_store %arg15[%c0_48, %320], %319 {strides = array<i32>} : memref<8x4096xbf16, #tpu.memory_space<vmem>>, vector<8x128xbf16>,
    %c16_i32 = arith.constant 16 : i32
    %c128_i32_49 = arith.constant 128 : i32
    %322 = arith.muli %c16_i32, %c128_i32_49 : i32
    %323 = tpu.assume_multiple %322, 128 : i32
    %324 = arith.index_cast %c16_i32 : i32 to index
    %325 = memref.load %arg4[%324] : memref<32xf32, #tpu.memory_space<smem>>
    %326 = vector.broadcast %325 : f32 to vector<8x128xf32>
    %327 = arith.mulf %0, %326 : vector<8x128xf32>
    %328 = arith.index_cast %c16_i32 : i32 to index
    %329 = memref.load %arg5[%328] : memref<32xf32, #tpu.memory_space<smem>>
    %330 = vector.broadcast %329 : f32 to vector<8x128xf32>
    %331 = arith.mulf %1, %330 : vector<8x128xf32>
    %332 = arith.addf %327, %331 : vector<8x128xf32>
    %333 = arith.index_cast %c16_i32 : i32 to index
    %334 = memref.load %arg6[%333] : memref<32xf32, #tpu.memory_space<smem>>
    %335 = vector.broadcast %334 : f32 to vector<8x128xf32>
    %336 = arith.addf %332, %335 : vector<8x128xf32>
    %cst_50 = arith.constant 0.000000e+00 : f32
    %337 = vector.broadcast %cst_50 : f32 to vector<8x128xf32>
    %338 = arith.maximumf %336, %337 : vector<8x128xf32>
    %339 = arith.truncf %338 : vector<8x128xf32> to vector<8x128xbf16>
    %c0_51 = arith.constant 0 : index
    %340 = arith.index_cast %323 : i32 to index
    %341 = vector.load %arg15[%c0_51, %340] : memref<8x4096xbf16, #tpu.memory_space<vmem>>, vector<8x128xbf16>
    tpu.vector_store %arg15[%c0_51, %340], %339 {strides = array<i32>} : memref<8x4096xbf16, #tpu.memory_space<vmem>>, vector<8x128xbf16>,
    %c17_i32 = arith.constant 17 : i32
    %c128_i32_52 = arith.constant 128 : i32
    %342 = arith.muli %c17_i32, %c128_i32_52 : i32
    %343 = tpu.assume_multiple %342, 128 : i32
    %344 = arith.index_cast %c17_i32 : i32 to index
    %345 = memref.load %arg4[%344] : memref<32xf32, #tpu.memory_space<smem>>
    %346 = vector.broadcast %345 : f32 to vector<8x128xf32>
    %347 = arith.mulf %0, %346 : vector<8x128xf32>
    %348 = arith.index_cast %c17_i32 : i32 to index
    %349 = memref.load %arg5[%348] : memref<32xf32, #tpu.memory_space<smem>>
    %350 = vector.broadcast %349 : f32 to vector<8x128xf32>
    %351 = arith.mulf %1, %350 : vector<8x128xf32>
    %352 = arith.addf %347, %351 : vector<8x128xf32>
    %353 = arith.index_cast %c17_i32 : i32 to index
    %354 = memref.load %arg6[%353] : memref<32xf32, #tpu.memory_space<smem>>
    %355 = vector.broadcast %354 : f32 to vector<8x128xf32>
    %356 = arith.addf %352, %355 : vector<8x128xf32>
    %cst_53 = arith.constant 0.000000e+00 : f32
    %357 = vector.broadcast %cst_53 : f32 to vector<8x128xf32>
    %358 = arith.maximumf %356, %357 : vector<8x128xf32>
    %359 = arith.truncf %358 : vector<8x128xf32> to vector<8x128xbf16>
    %c0_54 = arith.constant 0 : index
    %360 = arith.index_cast %343 : i32 to index
    %361 = vector.load %arg15[%c0_54, %360] : memref<8x4096xbf16, #tpu.memory_space<vmem>>, vector<8x128xbf16>
    tpu.vector_store %arg15[%c0_54, %360], %359 {strides = array<i32>} : memref<8x4096xbf16, #tpu.memory_space<vmem>>, vector<8x128xbf16>,
    %c18_i32 = arith.constant 18 : i32
    %c128_i32_55 = arith.constant 128 : i32
    %362 = arith.muli %c18_i32, %c128_i32_55 : i32
    %363 = tpu.assume_multiple %362, 128 : i32
    %364 = arith.index_cast %c18_i32 : i32 to index
    %365 = memref.load %arg4[%364] : memref<32xf32, #tpu.memory_space<smem>>
    %366 = vector.broadcast %365 : f32 to vector<8x128xf32>
    %367 = arith.mulf %0, %366 : vector<8x128xf32>
    %368 = arith.index_cast %c18_i32 : i32 to index
    %369 = memref.load %arg5[%368] : memref<32xf32, #tpu.memory_space<smem>>
    %370 = vector.broadcast %369 : f32 to vector<8x128xf32>
    %371 = arith.mulf %1, %370 : vector<8x128xf32>
    %372 = arith.addf %367, %371 : vector<8x128xf32>
    %373 = arith.index_cast %c18_i32 : i32 to index
    %374 = memref.load %arg6[%373] : memref<32xf32, #tpu.memory_space<smem>>
    %375 = vector.broadcast %374 : f32 to vector<8x128xf32>
    %376 = arith.addf %372, %375 : vector<8x128xf32>
    %cst_56 = arith.constant 0.000000e+00 : f32
    %377 = vector.broadcast %cst_56 : f32 to vector<8x128xf32>
    %378 = arith.maximumf %376, %377 : vector<8x128xf32>
    %379 = arith.truncf %378 : vector<8x128xf32> to vector<8x128xbf16>
    %c0_57 = arith.constant 0 : index
    %380 = arith.index_cast %363 : i32 to index
    %381 = vector.load %arg15[%c0_57, %380] : memref<8x4096xbf16, #tpu.memory_space<vmem>>, vector<8x128xbf16>
    tpu.vector_store %arg15[%c0_57, %380], %379 {strides = array<i32>} : memref<8x4096xbf16, #tpu.memory_space<vmem>>, vector<8x128xbf16>,
    %c19_i32 = arith.constant 19 : i32
    %c128_i32_58 = arith.constant 128 : i32
    %382 = arith.muli %c19_i32, %c128_i32_58 : i32
    %383 = tpu.assume_multiple %382, 128 : i32
    %384 = arith.index_cast %c19_i32 : i32 to index
    %385 = memref.load %arg4[%384] : memref<32xf32, #tpu.memory_space<smem>>
    %386 = vector.broadcast %385 : f32 to vector<8x128xf32>
    %387 = arith.mulf %0, %386 : vector<8x128xf32>
    %388 = arith.index_cast %c19_i32 : i32 to index
    %389 = memref.load %arg5[%388] : memref<32xf32, #tpu.memory_space<smem>>
    %390 = vector.broadcast %389 : f32 to vector<8x128xf32>
    %391 = arith.mulf %1, %390 : vector<8x128xf32>
    %392 = arith.addf %387, %391 : vector<8x128xf32>
    %393 = arith.index_cast %c19_i32 : i32 to index
    %394 = memref.load %arg6[%393] : memref<32xf32, #tpu.memory_space<smem>>
    %395 = vector.broadcast %394 : f32 to vector<8x128xf32>
    %396 = arith.addf %392, %395 : vector<8x128xf32>
    %cst_59 = arith.constant 0.000000e+00 : f32
    %397 = vector.broadcast %cst_59 : f32 to vector<8x128xf32>
    %398 = arith.maximumf %396, %397 : vector<8x128xf32>
    %399 = arith.truncf %398 : vector<8x128xf32> to vector<8x128xbf16>
    %c0_60 = arith.constant 0 : index
    %400 = arith.index_cast %383 : i32 to index
    %401 = vector.load %arg15[%c0_60, %400] : memref<8x4096xbf16, #tpu.memory_space<vmem>>, vector<8x128xbf16>
    tpu.vector_store %arg15[%c0_60, %400], %399 {strides = array<i32>} : memref<8x4096xbf16, #tpu.memory_space<vmem>>, vector<8x128xbf16>,
    %c20_i32 = arith.constant 20 : i32
    %c128_i32_61 = arith.constant 128 : i32
    %402 = arith.muli %c20_i32, %c128_i32_61 : i32
    %403 = tpu.assume_multiple %402, 128 : i32
    %404 = arith.index_cast %c20_i32 : i32 to index
    %405 = memref.load %arg4[%404] : memref<32xf32, #tpu.memory_space<smem>>
    %406 = vector.broadcast %405 : f32 to vector<8x128xf32>
    %407 = arith.mulf %0, %406 : vector<8x128xf32>
    %408 = arith.index_cast %c20_i32 : i32 to index
    %409 = memref.load %arg5[%408] : memref<32xf32, #tpu.memory_space<smem>>
    %410 = vector.broadcast %409 : f32 to vector<8x128xf32>
    %411 = arith.mulf %1, %410 : vector<8x128xf32>
    %412 = arith.addf %407, %411 : vector<8x128xf32>
    %413 = arith.index_cast %c20_i32 : i32 to index
    %414 = memref.load %arg6[%413] : memref<32xf32, #tpu.memory_space<smem>>
    %415 = vector.broadcast %414 : f32 to vector<8x128xf32>
    %416 = arith.addf %412, %415 : vector<8x128xf32>
    %cst_62 = arith.constant 0.000000e+00 : f32
    %417 = vector.broadcast %cst_62 : f32 to vector<8x128xf32>
    %418 = arith.maximumf %416, %417 : vector<8x128xf32>
    %419 = arith.truncf %418 : vector<8x128xf32> to vector<8x128xbf16>
    %c0_63 = arith.constant 0 : index
    %420 = arith.index_cast %403 : i32 to index
    %421 = vector.load %arg15[%c0_63, %420] : memref<8x4096xbf16, #tpu.memory_space<vmem>>, vector<8x128xbf16>
    tpu.vector_store %arg15[%c0_63, %420], %419 {strides = array<i32>} : memref<8x4096xbf16, #tpu.memory_space<vmem>>, vector<8x128xbf16>,
    %c21_i32 = arith.constant 21 : i32
    %c128_i32_64 = arith.constant 128 : i32
    %422 = arith.muli %c21_i32, %c128_i32_64 : i32
    %423 = tpu.assume_multiple %422, 128 : i32
    %424 = arith.index_cast %c21_i32 : i32 to index
    %425 = memref.load %arg4[%424] : memref<32xf32, #tpu.memory_space<smem>>
    %426 = vector.broadcast %425 : f32 to vector<8x128xf32>
    %427 = arith.mulf %0, %426 : vector<8x128xf32>
    %428 = arith.index_cast %c21_i32 : i32 to index
    %429 = memref.load %arg5[%428] : memref<32xf32, #tpu.memory_space<smem>>
    %430 = vector.broadcast %429 : f32 to vector<8x128xf32>
    %431 = arith.mulf %1, %430 : vector<8x128xf32>
    %432 = arith.addf %427, %431 : vector<8x128xf32>
    %433 = arith.index_cast %c21_i32 : i32 to index
    %434 = memref.load %arg6[%433] : memref<32xf32, #tpu.memory_space<smem>>
    %435 = vector.broadcast %434 : f32 to vector<8x128xf32>
    %436 = arith.addf %432, %435 : vector<8x128xf32>
    %cst_65 = arith.constant 0.000000e+00 : f32
    %437 = vector.broadcast %cst_65 : f32 to vector<8x128xf32>
    %438 = arith.maximumf %436, %437 : vector<8x128xf32>
    %439 = arith.truncf %438 : vector<8x128xf32> to vector<8x128xbf16>
    %c0_66 = arith.constant 0 : index
    %440 = arith.index_cast %423 : i32 to index
    %441 = vector.load %arg15[%c0_66, %440] : memref<8x4096xbf16, #tpu.memory_space<vmem>>, vector<8x128xbf16>
    tpu.vector_store %arg15[%c0_66, %440], %439 {strides = array<i32>} : memref<8x4096xbf16, #tpu.memory_space<vmem>>, vector<8x128xbf16>,
    %c22_i32 = arith.constant 22 : i32
    %c128_i32_67 = arith.constant 128 : i32
    %442 = arith.muli %c22_i32, %c128_i32_67 : i32
    %443 = tpu.assume_multiple %442, 128 : i32
    %444 = arith.index_cast %c22_i32 : i32 to index
    %445 = memref.load %arg4[%444] : memref<32xf32, #tpu.memory_space<smem>>
    %446 = vector.broadcast %445 : f32 to vector<8x128xf32>
    %447 = arith.mulf %0, %446 : vector<8x128xf32>
    %448 = arith.index_cast %c22_i32 : i32 to index
    %449 = memref.load %arg5[%448] : memref<32xf32, #tpu.memory_space<smem>>
    %450 = vector.broadcast %449 : f32 to vector<8x128xf32>
    %451 = arith.mulf %1, %450 : vector<8x128xf32>
    %452 = arith.addf %447, %451 : vector<8x128xf32>
    %453 = arith.index_cast %c22_i32 : i32 to index
    %454 = memref.load %arg6[%453] : memref<32xf32, #tpu.memory_space<smem>>
    %455 = vector.broadcast %454 : f32 to vector<8x128xf32>
    %456 = arith.addf %452, %455 : vector<8x128xf32>
    %cst_68 = arith.constant 0.000000e+00 : f32
    %457 = vector.broadcast %cst_68 : f32 to vector<8x128xf32>
    %458 = arith.maximumf %456, %457 : vector<8x128xf32>
    %459 = arith.truncf %458 : vector<8x128xf32> to vector<8x128xbf16>
    %c0_69 = arith.constant 0 : index
    %460 = arith.index_cast %443 : i32 to index
    %461 = vector.load %arg15[%c0_69, %460] : memref<8x4096xbf16, #tpu.memory_space<vmem>>, vector<8x128xbf16>
    tpu.vector_store %arg15[%c0_69, %460], %459 {strides = array<i32>} : memref<8x4096xbf16, #tpu.memory_space<vmem>>, vector<8x128xbf16>,
    %c23_i32 = arith.constant 23 : i32
    %c128_i32_70 = arith.constant 128 : i32
    %462 = arith.muli %c23_i32, %c128_i32_70 : i32
    %463 = tpu.assume_multiple %462, 128 : i32
    %464 = arith.index_cast %c23_i32 : i32 to index
    %465 = memref.load %arg4[%464] : memref<32xf32, #tpu.memory_space<smem>>
    %466 = vector.broadcast %465 : f32 to vector<8x128xf32>
    %467 = arith.mulf %0, %466 : vector<8x128xf32>
    %468 = arith.index_cast %c23_i32 : i32 to index
    %469 = memref.load %arg5[%468] : memref<32xf32, #tpu.memory_space<smem>>
    %470 = vector.broadcast %469 : f32 to vector<8x128xf32>
    %471 = arith.mulf %1, %470 : vector<8x128xf32>
    %472 = arith.addf %467, %471 : vector<8x128xf32>
    %473 = arith.index_cast %c23_i32 : i32 to index
    %474 = memref.load %arg6[%473] : memref<32xf32, #tpu.memory_space<smem>>
    %475 = vector.broadcast %474 : f32 to vector<8x128xf32>
    %476 = arith.addf %472, %475 : vector<8x128xf32>
    %cst_71 = arith.constant 0.000000e+00 : f32
    %477 = vector.broadcast %cst_71 : f32 to vector<8x128xf32>
    %478 = arith.maximumf %476, %477 : vector<8x128xf32>
    %479 = arith.truncf %478 : vector<8x128xf32> to vector<8x128xbf16>
    %c0_72 = arith.constant 0 : index
    %480 = arith.index_cast %463 : i32 to index
    %481 = vector.load %arg15[%c0_72, %480] : memref<8x4096xbf16, #tpu.memory_space<vmem>>, vector<8x128xbf16>
    tpu.vector_store %arg15[%c0_72, %480], %479 {strides = array<i32>} : memref<8x4096xbf16, #tpu.memory_space<vmem>>, vector<8x128xbf16>,
    %c24_i32 = arith.constant 24 : i32
    %c128_i32_73 = arith.constant 128 : i32
    %482 = arith.muli %c24_i32, %c128_i32_73 : i32
    %483 = tpu.assume_multiple %482, 128 : i32
    %484 = arith.index_cast %c24_i32 : i32 to index
    %485 = memref.load %arg4[%484] : memref<32xf32, #tpu.memory_space<smem>>
    %486 = vector.broadcast %485 : f32 to vector<8x128xf32>
    %487 = arith.mulf %0, %486 : vector<8x128xf32>
    %488 = arith.index_cast %c24_i32 : i32 to index
    %489 = memref.load %arg5[%488] : memref<32xf32, #tpu.memory_space<smem>>
    %490 = vector.broadcast %489 : f32 to vector<8x128xf32>
    %491 = arith.mulf %1, %490 : vector<8x128xf32>
    %492 = arith.addf %487, %491 : vector<8x128xf32>
    %493 = arith.index_cast %c24_i32 : i32 to index
    %494 = memref.load %arg6[%493] : memref<32xf32, #tpu.memory_space<smem>>
    %495 = vector.broadcast %494 : f32 to vector<8x128xf32>
    %496 = arith.addf %492, %495 : vector<8x128xf32>
    %cst_74 = arith.constant 0.000000e+00 : f32
    %497 = vector.broadcast %cst_74 : f32 to vector<8x128xf32>
    %498 = arith.maximumf %496, %497 : vector<8x128xf32>
    %499 = arith.truncf %498 : vector<8x128xf32> to vector<8x128xbf16>
    %c0_75 = arith.constant 0 : index
    %500 = arith.index_cast %483 : i32 to index
    %501 = vector.load %arg15[%c0_75, %500] : memref<8x4096xbf16, #tpu.memory_space<vmem>>, vector<8x128xbf16>
    tpu.vector_store %arg15[%c0_75, %500], %499 {strides = array<i32>} : memref<8x4096xbf16, #tpu.memory_space<vmem>>, vector<8x128xbf16>,
    %c25_i32 = arith.constant 25 : i32
    %c128_i32_76 = arith.constant 128 : i32
    %502 = arith.muli %c25_i32, %c128_i32_76 : i32
    %503 = tpu.assume_multiple %502, 128 : i32
    %504 = arith.index_cast %c25_i32 : i32 to index
    %505 = memref.load %arg4[%504] : memref<32xf32, #tpu.memory_space<smem>>
    %506 = vector.broadcast %505 : f32 to vector<8x128xf32>
    %507 = arith.mulf %0, %506 : vector<8x128xf32>
    %508 = arith.index_cast %c25_i32 : i32 to index
    %509 = memref.load %arg5[%508] : memref<32xf32, #tpu.memory_space<smem>>
    %510 = vector.broadcast %509 : f32 to vector<8x128xf32>
    %511 = arith.mulf %1, %510 : vector<8x128xf32>
    %512 = arith.addf %507, %511 : vector<8x128xf32>
    %513 = arith.index_cast %c25_i32 : i32 to index
    %514 = memref.load %arg6[%513] : memref<32xf32, #tpu.memory_space<smem>>
    %515 = vector.broadcast %514 : f32 to vector<8x128xf32>
    %516 = arith.addf %512, %515 : vector<8x128xf32>
    %cst_77 = arith.constant 0.000000e+00 : f32
    %517 = vector.broadcast %cst_77 : f32 to vector<8x128xf32>
    %518 = arith.maximumf %516, %517 : vector<8x128xf32>
    %519 = arith.truncf %518 : vector<8x128xf32> to vector<8x128xbf16>
    %c0_78 = arith.constant 0 : index
    %520 = arith.index_cast %503 : i32 to index
    %521 = vector.load %arg15[%c0_78, %520] : memref<8x4096xbf16, #tpu.memory_space<vmem>>, vector<8x128xbf16>
    tpu.vector_store %arg15[%c0_78, %520], %519 {strides = array<i32>} : memref<8x4096xbf16, #tpu.memory_space<vmem>>, vector<8x128xbf16>,
    %c26_i32 = arith.constant 26 : i32
    %c128_i32_79 = arith.constant 128 : i32
    %522 = arith.muli %c26_i32, %c128_i32_79 : i32
    %523 = tpu.assume_multiple %522, 128 : i32
    %524 = arith.index_cast %c26_i32 : i32 to index
    %525 = memref.load %arg4[%524] : memref<32xf32, #tpu.memory_space<smem>>
    %526 = vector.broadcast %525 : f32 to vector<8x128xf32>
    %527 = arith.mulf %0, %526 : vector<8x128xf32>
    %528 = arith.index_cast %c26_i32 : i32 to index
    %529 = memref.load %arg5[%528] : memref<32xf32, #tpu.memory_space<smem>>
    %530 = vector.broadcast %529 : f32 to vector<8x128xf32>
    %531 = arith.mulf %1, %530 : vector<8x128xf32>
    %532 = arith.addf %527, %531 : vector<8x128xf32>
    %533 = arith.index_cast %c26_i32 : i32 to index
    %534 = memref.load %arg6[%533] : memref<32xf32, #tpu.memory_space<smem>>
    %535 = vector.broadcast %534 : f32 to vector<8x128xf32>
    %536 = arith.addf %532, %535 : vector<8x128xf32>
    %cst_80 = arith.constant 0.000000e+00 : f32
    %537 = vector.broadcast %cst_80 : f32 to vector<8x128xf32>
    %538 = arith.maximumf %536, %537 : vector<8x128xf32>
    %539 = arith.truncf %538 : vector<8x128xf32> to vector<8x128xbf16>
    %c0_81 = arith.constant 0 : index
    %540 = arith.index_cast %523 : i32 to index
    %541 = vector.load %arg15[%c0_81, %540] : memref<8x4096xbf16, #tpu.memory_space<vmem>>, vector<8x128xbf16>
    tpu.vector_store %arg15[%c0_81, %540], %539 {strides = array<i32>} : memref<8x4096xbf16, #tpu.memory_space<vmem>>, vector<8x128xbf16>,
    %c27_i32 = arith.constant 27 : i32
    %c128_i32_82 = arith.constant 128 : i32
    %542 = arith.muli %c27_i32, %c128_i32_82 : i32
    %543 = tpu.assume_multiple %542, 128 : i32
    %544 = arith.index_cast %c27_i32 : i32 to index
    %545 = memref.load %arg4[%544] : memref<32xf32, #tpu.memory_space<smem>>
    %546 = vector.broadcast %545 : f32 to vector<8x128xf32>
    %547 = arith.mulf %0, %546 : vector<8x128xf32>
    %548 = arith.index_cast %c27_i32 : i32 to index
    %549 = memref.load %arg5[%548] : memref<32xf32, #tpu.memory_space<smem>>
    %550 = vector.broadcast %549 : f32 to vector<8x128xf32>
    %551 = arith.mulf %1, %550 : vector<8x128xf32>
    %552 = arith.addf %547, %551 : vector<8x128xf32>
    %553 = arith.index_cast %c27_i32 : i32 to index
    %554 = memref.load %arg6[%553] : memref<32xf32, #tpu.memory_space<smem>>
    %555 = vector.broadcast %554 : f32 to vector<8x128xf32>
    %556 = arith.addf %552, %555 : vector<8x128xf32>
    %cst_83 = arith.constant 0.000000e+00 : f32
    %557 = vector.broadcast %cst_83 : f32 to vector<8x128xf32>
    %558 = arith.maximumf %556, %557 : vector<8x128xf32>
    %559 = arith.truncf %558 : vector<8x128xf32> to vector<8x128xbf16>
    %c0_84 = arith.constant 0 : index
    %560 = arith.index_cast %543 : i32 to index
    %561 = vector.load %arg15[%c0_84, %560] : memref<8x4096xbf16, #tpu.memory_space<vmem>>, vector<8x128xbf16>
    tpu.vector_store %arg15[%c0_84, %560], %559 {strides = array<i32>} : memref<8x4096xbf16, #tpu.memory_space<vmem>>, vector<8x128xbf16>,
    %c28_i32 = arith.constant 28 : i32
    %c128_i32_85 = arith.constant 128 : i32
    %562 = arith.muli %c28_i32, %c128_i32_85 : i32
    %563 = tpu.assume_multiple %562, 128 : i32
    %564 = arith.index_cast %c28_i32 : i32 to index
    %565 = memref.load %arg4[%564] : memref<32xf32, #tpu.memory_space<smem>>
    %566 = vector.broadcast %565 : f32 to vector<8x128xf32>
    %567 = arith.mulf %0, %566 : vector<8x128xf32>
    %568 = arith.index_cast %c28_i32 : i32 to index
    %569 = memref.load %arg5[%568] : memref<32xf32, #tpu.memory_space<smem>>
    %570 = vector.broadcast %569 : f32 to vector<8x128xf32>
    %571 = arith.mulf %1, %570 : vector<8x128xf32>
    %572 = arith.addf %567, %571 : vector<8x128xf32>
    %573 = arith.index_cast %c28_i32 : i32 to index
    %574 = memref.load %arg6[%573] : memref<32xf32, #tpu.memory_space<smem>>
    %575 = vector.broadcast %574 : f32 to vector<8x128xf32>
    %576 = arith.addf %572, %575 : vector<8x128xf32>
    %cst_86 = arith.constant 0.000000e+00 : f32
    %577 = vector.broadcast %cst_86 : f32 to vector<8x128xf32>
    %578 = arith.maximumf %576, %577 : vector<8x128xf32>
    %579 = arith.truncf %578 : vector<8x128xf32> to vector<8x128xbf16>
    %c0_87 = arith.constant 0 : index
    %580 = arith.index_cast %563 : i32 to index
    %581 = vector.load %arg15[%c0_87, %580] : memref<8x4096xbf16, #tpu.memory_space<vmem>>, vector<8x128xbf16>
    tpu.vector_store %arg15[%c0_87, %580], %579 {strides = array<i32>} : memref<8x4096xbf16, #tpu.memory_space<vmem>>, vector<8x128xbf16>,
    %c29_i32 = arith.constant 29 : i32
    %c128_i32_88 = arith.constant 128 : i32
    %582 = arith.muli %c29_i32, %c128_i32_88 : i32
    %583 = tpu.assume_multiple %582, 128 : i32
    %584 = arith.index_cast %c29_i32 : i32 to index
    %585 = memref.load %arg4[%584] : memref<32xf32, #tpu.memory_space<smem>>
    %586 = vector.broadcast %585 : f32 to vector<8x128xf32>
    %587 = arith.mulf %0, %586 : vector<8x128xf32>
    %588 = arith.index_cast %c29_i32 : i32 to index
    %589 = memref.load %arg5[%588] : memref<32xf32, #tpu.memory_space<smem>>
    %590 = vector.broadcast %589 : f32 to vector<8x128xf32>
    %591 = arith.mulf %1, %590 : vector<8x128xf32>
    %592 = arith.addf %587, %591 : vector<8x128xf32>
    %593 = arith.index_cast %c29_i32 : i32 to index
    %594 = memref.load %arg6[%593] : memref<32xf32, #tpu.memory_space<smem>>
    %595 = vector.broadcast %594 : f32 to vector<8x128xf32>
    %596 = arith.addf %592, %595 : vector<8x128xf32>
    %cst_89 = arith.constant 0.000000e+00 : f32
    %597 = vector.broadcast %cst_89 : f32 to vector<8x128xf32>
    %598 = arith.maximumf %596, %597 : vector<8x128xf32>
    %599 = arith.truncf %598 : vector<8x128xf32> to vector<8x128xbf16>
    %c0_90 = arith.constant 0 : index
    %600 = arith.index_cast %583 : i32 to index
    %601 = vector.load %arg15[%c0_90, %600] : memref<8x4096xbf16, #tpu.memory_space<vmem>>, vector<8x128xbf16>
    tpu.vector_store %arg15[%c0_90, %600], %599 {strides = array<i32>} : memref<8x4096xbf16, #tpu.memory_space<vmem>>, vector<8x128xbf16>,
    %c30_i32 = arith.constant 30 : i32
    %c128_i32_91 = arith.constant 128 : i32
    %602 = arith.muli %c30_i32, %c128_i32_91 : i32
    %603 = tpu.assume_multiple %602, 128 : i32
    %604 = arith.index_cast %c30_i32 : i32 to index
    %605 = memref.load %arg4[%604] : memref<32xf32, #tpu.memory_space<smem>>
    %606 = vector.broadcast %605 : f32 to vector<8x128xf32>
    %607 = arith.mulf %0, %606 : vector<8x128xf32>
    %608 = arith.index_cast %c30_i32 : i32 to index
    %609 = memref.load %arg5[%608] : memref<32xf32, #tpu.memory_space<smem>>
    %610 = vector.broadcast %609 : f32 to vector<8x128xf32>
    %611 = arith.mulf %1, %610 : vector<8x128xf32>
    %612 = arith.addf %607, %611 : vector<8x128xf32>
    %613 = arith.index_cast %c30_i32 : i32 to index
    %614 = memref.load %arg6[%613] : memref<32xf32, #tpu.memory_space<smem>>
    %615 = vector.broadcast %614 : f32 to vector<8x128xf32>
    %616 = arith.addf %612, %615 : vector<8x128xf32>
    %cst_92 = arith.constant 0.000000e+00 : f32
    %617 = vector.broadcast %cst_92 : f32 to vector<8x128xf32>
    %618 = arith.maximumf %616, %617 : vector<8x128xf32>
    %619 = arith.truncf %618 : vector<8x128xf32> to vector<8x128xbf16>
    %c0_93 = arith.constant 0 : index
    %620 = arith.index_cast %603 : i32 to index
    %621 = vector.load %arg15[%c0_93, %620] : memref<8x4096xbf16, #tpu.memory_space<vmem>>, vector<8x128xbf16>
    tpu.vector_store %arg15[%c0_93, %620], %619 {strides = array<i32>} : memref<8x4096xbf16, #tpu.memory_space<vmem>>, vector<8x128xbf16>,
    %c31_i32 = arith.constant 31 : i32
    %c128_i32_94 = arith.constant 128 : i32
    %622 = arith.muli %c31_i32, %c128_i32_94 : i32
    %623 = tpu.assume_multiple %622, 128 : i32
    %624 = arith.index_cast %c31_i32 : i32 to index
    %625 = memref.load %arg4[%624] : memref<32xf32, #tpu.memory_space<smem>>
    %626 = vector.broadcast %625 : f32 to vector<8x128xf32>
    %627 = arith.mulf %0, %626 : vector<8x128xf32>
    %628 = arith.index_cast %c31_i32 : i32 to index
    %629 = memref.load %arg5[%628] : memref<32xf32, #tpu.memory_space<smem>>
    %630 = vector.broadcast %629 : f32 to vector<8x128xf32>
    %631 = arith.mulf %1, %630 : vector<8x128xf32>
    %632 = arith.addf %627, %631 : vector<8x128xf32>
    %633 = arith.index_cast %c31_i32 : i32 to index
    %634 = memref.load %arg6[%633] : memref<32xf32, #tpu.memory_space<smem>>
    %635 = vector.broadcast %634 : f32 to vector<8x128xf32>
    %636 = arith.addf %632, %635 : vector<8x128xf32>
    %cst_95 = arith.constant 0.000000e+00 : f32
    %637 = vector.broadcast %cst_95 : f32 to vector<8x128xf32>
    %638 = arith.maximumf %636, %637 : vector<8x128xf32>
    %639 = arith.truncf %638 : vector<8x128xf32> to vector<8x128xbf16>
    %c0_96 = arith.constant 0 : index
    %640 = arith.index_cast %623 : i32 to index
    %641 = vector.load %arg15[%c0_96, %640] : memref<8x4096xbf16, #tpu.memory_space<vmem>>, vector<8x128xbf16>
    tpu.vector_store %arg15[%c0_96, %640], %639 {strides = array<i32>} : memref<8x4096xbf16, #tpu.memory_space<vmem>>, vector<8x128xbf16>,
    %c32_i32 = arith.constant 32 : i32
    %c0_97 = arith.constant 0 : index
    %c0_98 = arith.constant 0 : index
    %642 = vector.load %arg15[%c0_97, %c0_98] : memref<8x4096xbf16, #tpu.memory_space<vmem>>, vector<8x4096xbf16>
    %c0_99 = arith.constant 0 : index
    %c0_100 = arith.constant 0 : index
    %643 = vector.load %arg7[%c0_99, %c0_100] : memref<4096x128xbf16, #tpu.memory_space<vmem>>, vector<4096x128xbf16>
    %cst_101 = arith.constant dense<0.000000e+00> : vector<8x128xf32>
    %644 = tpu.matmul %642, %643, %cst_101 {dimension_numbers = #tpu.dot_dimension_numbers<[1], [0], [0], [1], [0, 0, 1, 1], [], []>} : vector<8x4096xbf16>, vector<4096x128xbf16>, vector<8x128xf32> -> vector<8x128xf32>
    %c0_102 = arith.constant 0 : index
    %c0_103 = arith.constant 0 : index
    %645 = vector.load %arg8[%c0_102, %c0_103] : memref<1x128xf32, #tpu.memory_space<vmem>>, vector<1x128xf32>
    %646 = vector.broadcast %645 : vector<1x128xf32> to vector<8x128xf32>
    %647 = arith.addf %644, %646 : vector<8x128xf32>
    %648 = arith.truncf %647 : vector<8x128xf32> to vector<8x128xbf16>
    %c0_104 = arith.constant 0 : index
    %c0_105 = arith.constant 0 : index
    %649 = vector.load %arg9[%c0_104, %c0_105] : memref<128x128xbf16, #tpu.memory_space<vmem>>, vector<128x128xbf16>
    %cst_106 = arith.constant dense<0.000000e+00> : vector<8x128xf32>
    %650 = tpu.matmul %648, %649, %cst_106 {dimension_numbers = #tpu.dot_dimension_numbers<[1], [0], [0], [1], [0, 0, 1, 1], [], []>} : vector<8x128xbf16>, vector<128x128xbf16>, vector<8x128xf32> -> vector<8x128xf32>
    %c0_107 = arith.constant 0 : index
    %c0_108 = arith.constant 0 : index
    %651 = vector.load %arg3[%c0_107, %c0_108] : memref<8x128xf32, #tpu.memory_space<vmem>>, vector<8x128xf32>
    %652 = arith.truncf %651 : vector<8x128xf32> to vector<8x128xbf16>
    %c0_109 = arith.constant 0 : index
    %c0_110 = arith.constant 0 : index
    %653 = vector.load %arg10[%c0_109, %c0_110] : memref<128x128xbf16, #tpu.memory_space<vmem>>, vector<128x128xbf16>
    %cst_111 = arith.constant dense<0.000000e+00> : vector<8x128xf32>
    %654 = tpu.matmul %652, %653, %cst_111 {dimension_numbers = #tpu.dot_dimension_numbers<[1], [0], [0], [1], [0, 0, 1, 1], [], []>} : vector<8x128xbf16>, vector<128x128xbf16>, vector<8x128xf32> -> vector<8x128xf32>
    %655 = arith.addf %650, %654 : vector<8x128xf32>
    %c0_112 = arith.constant 0 : index
    %c0_113 = arith.constant 0 : index
    %656 = vector.load %arg11[%c0_112, %c0_113] : memref<1x128xf32, #tpu.memory_space<vmem>>, vector<1x128xf32>
    %657 = vector.broadcast %656 : vector<1x128xf32> to vector<8x128xf32>
    %658 = arith.addf %655, %657 : vector<8x128xf32>
    %cst_114 = arith.constant 0.000000e+00 : f32
    %659 = vector.broadcast %cst_114 : f32 to vector<8x128xf32>
    %660 = arith.maximumf %658, %659 : vector<8x128xf32>
    %661 = arith.truncf %660 : vector<8x128xf32> to vector<8x128xbf16>
    %c0_115 = arith.constant 0 : index
    %c0_116 = arith.constant 0 : index
    %662 = vector.load %arg12[%c0_115, %c0_116] : memref<128x128xbf16, #tpu.memory_space<vmem>>, vector<128x128xbf16>
    %cst_117 = arith.constant dense<0.000000e+00> : vector<8x128xf32>
    %663 = tpu.matmul %661, %662, %cst_117 {dimension_numbers = #tpu.dot_dimension_numbers<[1], [0], [0], [1], [0, 0, 1, 1], [], []>} : vector<8x128xbf16>, vector<128x128xbf16>, vector<8x128xf32> -> vector<8x128xf32>
    %c0_118 = arith.constant 0 : index
    %c0_119 = arith.constant 0 : index
    %664 = vector.load %arg13[%c0_118, %c0_119] : memref<1x128xf32, #tpu.memory_space<vmem>>, vector<1x128xf32>
    %665 = vector.broadcast %664 : vector<1x128xf32> to vector<8x128xf32>
    %666 = arith.addf %663, %665 : vector<8x128xf32>
    %c0_120 = arith.constant 0 : index
    %c0_121 = arith.constant 0 : index
    %667 = vector.load %arg14[%c0_120, %c0_121] : memref<8x128xf32, #tpu.memory_space<vmem>>, vector<8x128xf32>
    tpu.vector_store %arg14[%c0_120, %c0_121], %666 {strides = array<i32>} : memref<8x128xf32, #tpu.memory_space<vmem>>, vector<8x128xf32>,
    return
  }
  func.func @transform_0(%arg0: i32) -> (i32, i32) {
    %c0_i32 = arith.constant 0 : i32
    %c0_i32_0 = arith.constant 0 : i32
    return %arg0, %c0_i32 : i32, i32
  }
  func.func @transform_1(%arg0: i32) -> (i32, i32) {
    %c0_i32 = arith.constant 0 : i32
    %c0_i32_0 = arith.constant 0 : i32
    return %arg0, %c0_i32 : i32, i32
  }
  func.func @transform_2(%arg0: i32) -> (i32, i32) {
    %c0_i32 = arith.constant 0 : i32
    %c0_i32_0 = arith.constant 0 : i32
    return %arg0, %c0_i32 : i32, i32
  }
  func.func @transform_3(%arg0: i32) -> i32 {
    %c0_i32 = arith.constant 0 : i32
    %c0_i32_0 = arith.constant 0 : i32
    return %c0_i32 : i32
  }
  func.func @transform_4(%arg0: i32) -> i32 {
    %c0_i32 = arith.constant 0 : i32
    %c0_i32_0 = arith.constant 0 : i32
    return %c0_i32 : i32
  }
  func.func @transform_5(%arg0: i32) -> i32 {
    %c0_i32 = arith.constant 0 : i32
    %c0_i32_0 = arith.constant 0 : i32
    return %c0_i32 : i32
  }
  func.func @transform_6(%arg0: i32) -> (i32, i32) {
    %c0_i32 = arith.constant 0 : i32
    %c0_i32_0 = arith.constant 0 : i32
    %c0_i32_1 = arith.constant 0 : i32
    return %c0_i32, %c0_i32_0 : i32, i32
  }
  func.func @transform_7(%arg0: i32) -> (i32, i32) {
    %c0_i32 = arith.constant 0 : i32
    %c0_i32_0 = arith.constant 0 : i32
    %c0_i32_1 = arith.constant 0 : i32
    return %c0_i32, %c0_i32_0 : i32, i32
  }
  func.func @transform_8(%arg0: i32) -> (i32, i32) {
    %c0_i32 = arith.constant 0 : i32
    %c0_i32_0 = arith.constant 0 : i32
    %c0_i32_1 = arith.constant 0 : i32
    return %c0_i32, %c0_i32_0 : i32, i32
  }
  func.func @transform_9(%arg0: i32) -> (i32, i32) {
    %c0_i32 = arith.constant 0 : i32
    %c0_i32_0 = arith.constant 0 : i32
    %c0_i32_1 = arith.constant 0 : i32
    return %c0_i32, %c0_i32_0 : i32, i32
  }
  func.func @transform_10(%arg0: i32) -> (i32, i32) {
    %c0_i32 = arith.constant 0 : i32
    %c0_i32_0 = arith.constant 0 : i32
    %c0_i32_1 = arith.constant 0 : i32
    return %c0_i32, %c0_i32_0 : i32, i32
  }
  func.func @transform_11(%arg0: i32) -> (i32, i32) {
    %c0_i32 = arith.constant 0 : i32
    %c0_i32_0 = arith.constant 0 : i32
    %c0_i32_1 = arith.constant 0 : i32
    return %c0_i32, %c0_i32_0 : i32, i32
  }
  func.func @transform_12(%arg0: i32) -> (i32, i32) {
    %c0_i32 = arith.constant 0 : i32
    %c0_i32_0 = arith.constant 0 : i32
    %c0_i32_1 = arith.constant 0 : i32
    return %c0_i32, %c0_i32_0 : i32, i32
  }
  func.func @transform_13(%arg0: i32) -> (i32, i32) {
    %c0_i32 = arith.constant 0 : i32
    %c0_i32_0 = arith.constant 0 : i32
    return %arg0, %c0_i32 : i32, i32
  }
}

</mosaic_0001>

<llo_original>
// kernel: tpu_custom_call.1
$region0: #{tpu_custom_call.1}
  #allocation0 [shape = 'u32[]', space=smem, size = 0x4, offset = 0x4, fixed_abs, tag = 'smem constant byte address 0x4 - core index']
  #allocation1 [shape = 'u32[144,128]{1,0:T(1,128)}', space=vmem, size = 0x12000, scoped, tag = 'internal scratch']
  #allocation2 [shape = 'bf16[8,4096]{1,0:T(8,128)(2,1)}', space=vmem, size = 0x10000, scoped, tag = 'scratch operand']
  %s0 = inlined_call_operand.hbm [shape: f32[8,128], index: 0, kind: input, shape index: {}]
  %s1 = inlined_call_operand.hbm [shape: f32[8,128], index: 1, kind: input, shape index: {}]
  %s2 = inlined_call_operand.hbm [shape: f32[8,128], index: 2, kind: input, shape index: {}]
  %s3 = inlined_call_operand.vmem [shape: f32[32], index: 3, kind: input, shape index: {}]
  %s4 = inlined_call_operand.vmem [shape: f32[32], index: 4, kind: input, shape index: {}]
  %s5 = inlined_call_operand.vmem [shape: f32[32], index: 5, kind: input, shape index: {}]
  %s6 = inlined_call_operand.hbm [shape: bf16[4096,128], index: 6, kind: input, shape index: {}]
  %s7 = inlined_call_operand.vmem [shape: f32[1,128], index: 7, kind: input, shape index: {}]
  %s8 = inlined_call_operand.hbm [shape: bf16[128,128], index: 8, kind: input, shape index: {}]
  %s9 = inlined_call_operand.hbm [shape: bf16[128,128], index: 9, kind: input, shape index: {}]
  %s10 = inlined_call_operand.vmem [shape: f32[1,128], index: 10, kind: input, shape index: {}]
  %s11 = inlined_call_operand.hbm [shape: bf16[128,128], index: 11, kind: input, shape index: {}]
  %s12 = inlined_call_operand.vmem [shape: f32[1,128], index: 12, kind: input, shape index: {}]
  %s13 = inlined_call_operand.hbm [shape: f32[8,128], index: 13, kind: output, shape index: {}]
  %s14 = sld [smem:[#allocation0]]
  $region102: #{tpu_custom_call.1} parent=0
    _
  %s16 = ssub.s32 1, %s14
  %s17 = scalar_select 0, %s16, %s14
  $region1: #{tpu_custom_call.1} parent=0
    #allocation3 [shape = 'u8[4096]{0}', space=vmem, size = 0x1000, scoped, tag = 'input window, operand 0, single buffered']
    #allocation4 [shape = 's32[1]{0}', space=sflag, size = 0x4, scoped, tag = 'scoped memory for tpu_custom_call.1']
    #allocation5 [shape = 's32[1]{0}', space=sflag, size = 0x4, scoped, tag = 'scoped memory for tpu_custom_call.1']
    #allocation6 [shape = 's32[1]{0}', space=sflag, size = 0x4, scoped, tag = 'scoped memory for tpu_custom_call.1']
    #allocation7 [shape = 'u8[4096]{0}', space=vmem, size = 0x1000, scoped, tag = 'input window, operand 1, single buffered']
    #allocation8 [shape = 's32[1]{0}', space=sflag, size = 0x4, scoped, tag = 'scoped memory for tpu_custom_call.1']
    #allocation9 [shape = 'u8[4096]{0}', space=vmem, size = 0x1000, scoped, tag = 'input window, operand 2, single buffered']
    #allocation10 [shape = 'u8[512]{0}', space=smem, size = 0x200, scoped, tag = 'input window, operand 3, single buffered']
    #allocation11 [shape = 'u8[512]{0}', space=smem, size = 0x200, scoped, tag = 'input window, operand 4, single buffered']
    #allocation12 [shape = 's32[1]{0}', space=sflag, size = 0x4, scoped, tag = 'scoped memory for tpu_custom_call.1']
    #allocation13 [shape = 'u8[512]{0}', space=smem, size = 0x200, scoped, tag = 'input window, operand 5, single buffered']
    #allocation14 [shape = 'u8[1048576]{0}', space=vmem, size = 0x100000, scoped, tag = 'input window, operand 6, single buffered']
    #allocation15 [shape = 's32[1]{0}', space=sflag, size = 0x4, scoped, tag = 'scoped memory for tpu_custom_call.1']
    #allocation16 [shape = 'u8[32768]{0}', space=vmem, size = 0x8000, scoped, tag = 'input window, operand 8, single buffered']
    #allocation17 [shape = 'u8[32768]{0}', space=vmem, size = 0x8000, scoped, tag = 'input window, operand 9, single buffered']
    #allocation18 [shape = 's32[1]{0}', space=sflag, size = 0x4, scoped, tag = 'scoped memory for tpu_custom_call.1']
    #allocation19 [shape = 'u8[32768]{0}', space=vmem, size = 0x8000, scoped, tag = 'input window, operand 11, single buffered']
    #allocation20 [shape = 'u8[4096]{0}', space=vmem, size = 0x1000, scoped, tag = 'output window, operand 0, single buffered']
    %18 = vsyncpa [#allocation4], 0
    %19 = vsyncpa [#allocation8], 0
    %20 = vsyncpa [#allocation6], 0
    %21 = vsyncpa [#allocation12], 0
    %22 = vsyncpa [#allocation15], 0
    %23 = vsyncpa [#allocation18], 0
    %24 = vsyncpa [#allocation5], 0
    // Predicated region
    $region2: #{tpu_custom_call.1} parent=1 // pred_check
      _
    $region3: #{tpu_custom_call.1} parent=1 // pred_check_branch
      %26 = sbr.rel (0) target = $region5
    $region4: #{tpu_custom_call.1} parent=1 // pred_region
      %s28 = ssub.s32 128, 128
      %29 = vsyncadd [#allocation4], %s28
      %s31 = sshll.u32 [#allocation3], 4
      %s32 = int_to_ptr.vmem [resolvable:$true] %s31
      %34 = dma.hbm_to_vmem [thread:$0]  %s0, 128, %s32, [#allocation4]
    $region5: #{tpu_custom_call.1} parent=1 // pred_fallthru
      _
    // Predicated region
    $region6: #{tpu_custom_call.1} parent=1 // pred_check
      _
    $region7: #{tpu_custom_call.1} parent=1 // pred_check_branch
      %36 = sbr.rel (0) target = $region9
    $region8: #{tpu_custom_call.1} parent=1 // pred_region
      %s38 = ssub.s32 128, 128
      %39 = vsyncadd [#allocation8], %s38
      %s41 = sshll.u32 [#allocation7], 4
      %s42 = int_to_ptr.vmem [resolvable:$true] %s41
      %44 = dma.hbm_to_vmem [thread:$0]  %s1, 128, %s42, [#allocation8]
    $region9: #{tpu_custom_call.1} parent=1 // pred_fallthru
      _
    // Predicated region
    $region10: #{tpu_custom_call.1} parent=1 // pred_check
      _
    $region11: #{tpu_custom_call.1} parent=1 // pred_check_branch
      %46 = sbr.rel (0) target = $region13
    $region12: #{tpu_custom_call.1} parent=1 // pred_region
      %s48 = ssub.s32 128, 128
      %49 = vsyncadd [#allocation8], %s48
      %s51 = sshll.u32 [#allocation9], 4
      %s52 = int_to_ptr.vmem [resolvable:$true] %s51
      %54 = dma.hbm_to_vmem [thread:$0]  %s2, 128, %s52, [#allocation8]
    $region13: #{tpu_custom_call.1} parent=1 // pred_fallthru
      _
    // Predicated region
    $region14: #{tpu_custom_call.1} parent=1 // pred_check
      _
    $region15: #{tpu_custom_call.1} parent=1 // pred_check_branch
      %56 = sbr.rel (0) target = $region17
    $region16: #{tpu_custom_call.1} parent=1 // pred_region
      %s58 = ssub.s32 16, 16
      %59 = vsyncadd [#allocation6], %s58
      %s61 = sshll.u32 %s3, 4
      %s62 = int_to_ptr.vmem [resolvable:$true] %s61
      %64 = dma.vmem_to_smem %s62, 16, [#allocation10], [#allocation6]
    $region17: #{tpu_custom_call.1} parent=1 // pred_fallthru
      _
    // Predicated region
    $region18: #{tpu_custom_call.1} parent=1 // pred_check
      _
    $region19: #{tpu_custom_call.1} parent=1 // pred_check_branch
      %66 = sbr.rel (0) target = $region21
    $region20: #{tpu_custom_call.1} parent=1 // pred_region
      %s68 = ssub.s32 16, 16
      %69 = vsyncadd [#allocation12], %s68
      %s71 = sshll.u32 %s4, 4
      %s72 = int_to_ptr.vmem [resolvable:$true] %s71
      %74 = dma.vmem_to_smem %s72, 16, [#allocation11], [#allocation12]
    $region21: #{tpu_custom_call.1} parent=1 // pred_fallthru
      _
    // Predicated region
    $region22: #{tpu_custom_call.1} parent=1 // pred_check
      _
    $region23: #{tpu_custom_call.1} parent=1 // pred_check_branch
      %76 = sbr.rel (0) target = $region25
    $region24: #{tpu_custom_call.1} parent=1 // pred_region
      %s78 = ssub.s32 16, 16
      %79 = vsyncadd [#allocation12], %s78
      %s81 = sshll.u32 %s5, 4
      %s82 = int_to_ptr.vmem [resolvable:$true] %s81
      %84 = dma.vmem_to_smem %s82, 16, [#allocation13], [#allocation12]
    $region25: #{tpu_custom_call.1} parent=1 // pred_fallthru
      _
    // Predicated region
    $region26: #{tpu_custom_call.1} parent=1 // pred_check
      _
    $region27: #{tpu_custom_call.1} parent=1 // pred_check_branch
      %86 = sbr.rel (0) target = $region29
    $region28: #{tpu_custom_call.1} parent=1 // pred_region
      %s88 = ssub.s32 32768, 32768
      %89 = vsyncadd [#allocation15], %s88
      %s90 = sshll.u32 [#allocation14], 4
      %s91 = int_to_ptr.vmem [resolvable:$true] %s90
      %96 = dma.hbm_to_vmem [thread:$0]  %s6, 32768, %s91, [#allocation15], 64, 64, 4
    $region29: #{tpu_custom_call.1} parent=1 // pred_fallthru
      _
    // Predicated region
    $region30: #{tpu_custom_call.1} parent=1 // pred_check
      _
    $region31: #{tpu_custom_call.1} parent=1 // pred_check_branch
      %98 = sbr.rel (0) target = $region33
    $region32: #{tpu_custom_call.1} parent=1 // pred_region
      _
    $region33: #{tpu_custom_call.1} parent=1 // pred_fallthru
      _
    // Predicated region
    $region34: #{tpu_custom_call.1} parent=1 // pred_check
      _
    $region35: #{tpu_custom_call.1} parent=1 // pred_check_branch
      %100 = sbr.rel (0) target = $region37
    $region36: #{tpu_custom_call.1} parent=1 // pred_region
      %s102 = ssub.s32 1024, 1024
      %103 = vsyncadd [#allocation15], %s102
      %s104 = sshll.u32 [#allocation16], 4
      %s105 = int_to_ptr.vmem [resolvable:$true] %s104
      %110 = dma.hbm_to_vmem [thread:$0]  %s8, 1024, %s105, [#allocation15], 64, 64, 4
    $region37: #{tpu_custom_call.1} parent=1 // pred_fallthru
      _
    // Predicated region
    $region38: #{tpu_custom_call.1} parent=1 // pred_check
      _
    $region39: #{tpu_custom_call.1} parent=1 // pred_check_branch
      %112 = sbr.rel (0) target = $region41
    $region40: #{tpu_custom_call.1} parent=1 // pred_region
      %s114 = ssub.s32 1024, 1024
      %115 = vsyncadd [#allocation18], %s114
      %s116 = sshll.u32 [#allocation17], 4
      %s117 = int_to_ptr.vmem [resolvable:$true] %s116
      %122 = dma.hbm_to_vmem [thread:$0]  %s9, 1024, %s117, [#allocation18], 64, 64, 4
    $region41: #{tpu_custom_call.1} parent=1 // pred_fallthru
      _
    // Predicated region
    $region42: #{tpu_custom_call.1} parent=1 // pred_check
      _
    $region43: #{tpu_custom_call.1} parent=1 // pred_check_branch
      %124 = sbr.rel (0) target = $region45
    $region44: #{tpu_custom_call.1} parent=1 // pred_region
      _
    $region45: #{tpu_custom_call.1} parent=1 // pred_fallthru
      _
    // Predicated region
    $region46: #{tpu_custom_call.1} parent=1 // pred_check
      _
    $region47: #{tpu_custom_call.1} parent=1 // pred_check_branch
      %126 = sbr.rel (0) target = $region49
    $region48: #{tpu_custom_call.1} parent=1 // pred_region
      %s128 = ssub.s32 1024, 1024
      %129 = vsyncadd [#allocation18], %s128
      %s130 = sshll.u32 [#allocation19], 4
      %s131 = int_to_ptr.vmem [resolvable:$true] %s130
      %136 = dma.hbm_to_vmem [thread:$0]  %s11, 1024, %s131, [#allocation18], 64, 64, 4
    $region49: #{tpu_custom_call.1} parent=1 // pred_fallthru
      _
    // Predicated region
    $region50: #{tpu_custom_call.1} parent=1 // pred_check
      _
    $region51: #{tpu_custom_call.1} parent=1 // pred_check_branch
      %138 = sbr.rel (0) target = $region53
    $region52: #{tpu_custom_call.1} parent=1 // pred_region
      _
    $region53: #{tpu_custom_call.1} parent=1 // pred_fallthru
      _
    // Predicated region
    $region54: #{tpu_custom_call.1} parent=1 // pred_check
      _
    $region55: #{tpu_custom_call.1} parent=1 // pred_check_branch
      %140 = sbr.rel (0) target = $region57
    $region56: #{tpu_custom_call.1} parent=1 // pred_region
      %141 = dma.done [#allocation4], 128
    $region57: #{tpu_custom_call.1} parent=1 // pred_fallthru
      _
    // Predicated region
    $region58: #{tpu_custom_call.1} parent=1 // pred_check
      _
    $region59: #{tpu_custom_call.1} parent=1 // pred_check_branch
      %143 = sbr.rel (0) target = $region61
    $region60: #{tpu_custom_call.1} parent=1 // pred_region
      %144 = dma.done [#allocation8], 128
    $region61: #{tpu_custom_call.1} parent=1 // pred_fallthru
      _
    // Predicated region
    $region62: #{tpu_custom_call.1} parent=1 // pred_check
      _
    $region63: #{tpu_custom_call.1} parent=1 // pred_check_branch
      %146 = sbr.rel (0) target = $region65
    $region64: #{tpu_custom_call.1} parent=1 // pred_region
      %147 = dma.done [#allocation8], 128
    $region65: #{tpu_custom_call.1} parent=1 // pred_fallthru
      _
    // Predicated region
    $region66: #{tpu_custom_call.1} parent=1 // pred_check
      _
    $region67: #{tpu_custom_call.1} parent=1 // pred_check_branch
      %149 = sbr.rel (0) target = $region69
    $region68: #{tpu_custom_call.1} parent=1 // pred_region
      %150 = dma.done [#allocation6], 16
    $region69: #{tpu_custom_call.1} parent=1 // pred_fallthru
      _
    // Predicated region
    $region70: #{tpu_custom_call.1} parent=1 // pred_check
      _
    $region71: #{tpu_custom_call.1} parent=1 // pred_check_branch
      %152 = sbr.rel (0) target = $region73
    $region72: #{tpu_custom_call.1} parent=1 // pred_region
      %153 = dma.done [#allocation12], 16
    $region73: #{tpu_custom_call.1} parent=1 // pred_fallthru
      _
    // Predicated region
    $region74: #{tpu_custom_call.1} parent=1 // pred_check
      _
    $region75: #{tpu_custom_call.1} parent=1 // pred_check_branch
      %155 = sbr.rel (0) target = $region77
    $region76: #{tpu_custom_call.1} parent=1 // pred_region
      %156 = dma.done [#allocation12], 16
    $region77: #{tpu_custom_call.1} parent=1 // pred_fallthru
      _
    // Predicated region
    $region78: #{tpu_custom_call.1} parent=1 // pred_check
      _
    $region79: #{tpu_custom_call.1} parent=1 // pred_check_branch
      %158 = sbr.rel (0) target = $region81
    $region80: #{tpu_custom_call.1} parent=1 // pred_region
      %159 = dma.done [#allocation15], 32768
    $region81: #{tpu_custom_call.1} parent=1 // pred_fallthru
      _
    // Predicated region
    $region82: #{tpu_custom_call.1} parent=1 // pred_check
      _
    $region83: #{tpu_custom_call.1} parent=1 // pred_check_branch
      %161 = sbr.rel (0) target = $region85
    $region84: #{tpu_custom_call.1} parent=1 // pred_region
      %162 = dma.done [#allocation15], 1024
    $region85: #{tpu_custom_call.1} parent=1 // pred_fallthru
      _
    // Predicated region
    $region86: #{tpu_custom_call.1} parent=1 // pred_check
      _
    $region87: #{tpu_custom_call.1} parent=1 // pred_check_branch
      %164 = sbr.rel (0) target = $region89
    $region88: #{tpu_custom_call.1} parent=1 // pred_region
      %165 = dma.done [#allocation18], 1024
    $region89: #{tpu_custom_call.1} parent=1 // pred_fallthru
      _
    // Predicated region
    $region90: #{tpu_custom_call.1} parent=1 // pred_check
      _
    $region91: #{tpu_custom_call.1} parent=1 // pred_check_branch
      %167 = sbr.rel (0) target = $region93
    $region92: #{tpu_custom_call.1} parent=1 // pred_region
      %168 = dma.done [#allocation18], 1024
    $region93: #{tpu_custom_call.1} parent=1 // pred_fallthru
      _
    %169 = sfence
    %v171 = vld [vmem:[#allocation3] sm:$0xff]
    %v172 = vld [vmem:[#allocation7] sm:$0xff]
    %s173 = sld [smem:[#allocation10]]
    %v174 = vstv %s173
    %v175 = vmul.f32 %v171, %v174
    %s176 = sld [smem:[#allocation11]]
    %v177 = vstv %s176
    %v178 = vmul.f32 %v172, %v177
    %v179 = vadd.f32 %v175, %v178
    %s180 = sld [smem:[#allocation13]]
    %v181 = vstv %s180
    %v182 = vadd.f32 %v179, %v181
    %v183 = vmax.f32 %v182, 0.0
    %v184 = vpack.c.bf16 %v183, %v183
    %185 = vst [vmem:[#allocation2] sm:$0xf] %v184
    %s186 = sld [smem:[#allocation10 + $0x1]]
    %v187 = vstv %s186
    %v188 = vmul.f32 %v171, %v187
    %s189 = sld [smem:[#allocation11 + $0x1]]
    %v190 = vstv %s189
    %v191 = vmul.f32 %v172, %v190
    %v192 = vadd.f32 %v188, %v191
    %s193 = sld [smem:[#allocation13 + $0x1]]
    %v194 = vstv %s193
    %v195 = vadd.f32 %v192, %v194
    %v196 = vmax.f32 %v195, 0.0
    %v197 = vpack.c.bf16 %v196, %v196
    %s198 = scalar_lea.vmem [#allocation2], 4
    %199 = vst [vmem:[%s198] sm:$0xf] %v197
    %s200 = sld [smem:[#allocation10 + $0x2]]
    %v201 = vstv %s200
    %v202 = vmul.f32 %v171, %v201
    %s203 = sld [smem:[#allocation11 + $0x2]]
    %v204 = vstv %s203
    %v205 = vmul.f32 %v172, %v204
    %v206 = vadd.f32 %v202, %v205
    %s207 = sld [smem:[#allocation13 + $0x2]]
    %v208 = vstv %s207
    %v209 = vadd.f32 %v206, %v208
    %v210 = vmax.f32 %v209, 0.0
    %v211 = vpack.c.bf16 %v210, %v210
    %s212 = scalar_lea.vmem [#allocation2], 8
    %213 = vst [vmem:[%s212] sm:$0xf] %v211
    %s214 = sld [smem:[#allocation10 + $0x3]]
    %v215 = vstv %s214
    %v216 = vmul.f32 %v171, %v215
    %s217 = sld [smem:[#allocation11 + $0x3]]
    %v218 = vstv %s217
    %v219 = vmul.f32 %v172, %v218
    %v220 = vadd.f32 %v216, %v219
    %s221 = sld [smem:[#allocation13 + $0x3]]
    %v222 = vstv %s221
    %v223 = vadd.f32 %v220, %v222
    %v224 = vmax.f32 %v223, 0.0
    %v225 = vpack.c.bf16 %v224, %v224
    %s226 = scalar_lea.vmem [#allocation2], 12
    %227 = vst [vmem:[%s226] sm:$0xf] %v225
    %s228 = sld [smem:[#allocation10 + $0x4]]
    %v229 = vstv %s228
    %v230 = vmul.f32 %v171, %v229
    %s231 = sld [smem:[#allocation11 + $0x4]]
    %v232 = vstv %s231
    %v233 = vmul.f32 %v172, %v232
    %v234 = vadd.f32 %v230, %v233
    %s235 = sld [smem:[#allocation13 + $0x4]]
    %v236 = vstv %s235
    %v237 = vadd.f32 %v234, %v236
    %v238 = vmax.f32 %v237, 0.0
    %v239 = vpack.c.bf16 %v238, %v238
    %s240 = scalar_lea.vmem [#allocation2], 16
    %241 = vst [vmem:[%s240] sm:$0xf] %v239
    %s242 = sld [smem:[#allocation10 + $0x5]]
    %v243 = vstv %s242
    %v244 = vmul.f32 %v171, %v243
    %s245 = sld [smem:[#allocation11 + $0x5]]
    %v246 = vstv %s245
    %v247 = vmul.f32 %v172, %v246
    %v248 = vadd.f32 %v244, %v247
    %s249 = sld [smem:[#allocation13 + $0x5]]
    %v250 = vstv %s249
    %v251 = vadd.f32 %v248, %v250
    %v252 = vmax.f32 %v251, 0.0
    %v253 = vpack.c.bf16 %v252, %v252
    %s254 = scalar_lea.vmem [#allocation2], 20
    %255 = vst [vmem:[%s254] sm:$0xf] %v253
    %s256 = sld [smem:[#allocation10 + $0x6]]
    %v257 = vstv %s256
    %v258 = vmul.f32 %v171, %v257
    %s259 = sld [smem:[#allocation11 + $0x6]]
    %v260 = vstv %s259
    %v261 = vmul.f32 %v172, %v260
    %v262 = vadd.f32 %v258, %v261
    %s263 = sld [smem:[#allocation13 + $0x6]]
    %v264 = vstv %s263
    %v265 = vadd.f32 %v262, %v264
    %v266 = vmax.f32 %v265, 0.0
    %v267 = vpack.c.bf16 %v266, %v266
    %s268 = scalar_lea.vmem [#allocation2], 24
    %269 = vst [vmem:[%s268] sm:$0xf] %v267
    %s270 = sld [smem:[#allocation10 + $0x7]]
    %v271 = vstv %s270
    %v272 = vmul.f32 %v171, %v271
    %s273 = sld [smem:[#allocation11 + $0x7]]
    %v274 = vstv %s273
    %v275 = vmul.f32 %v172, %v274
    %v276 = vadd.f32 %v272, %v275
    %s277 = sld [smem:[#allocation13 + $0x7]]
    %v278 = vstv %s277
    %v279 = vadd.f32 %v276, %v278
    %v280 = vmax.f32 %v279, 0.0
    %v281 = vpack.c.bf16 %v280, %v280
    %s282 = scalar_lea.vmem [#allocation2], 28
    %283 = vst [vmem:[%s282] sm:$0xf] %v281
    %s284 = sld [smem:[#allocation10 + $0x8]]
    %v285 = vstv %s284
    %v286 = vmul.f32 %v171, %v285
    %s287 = sld [smem:[#allocation11 + $0x8]]
    %v288 = vstv %s287
    %v289 = vmul.f32 %v172, %v288
    %v290 = vadd.f32 %v286, %v289
    %s291 = sld [smem:[#allocation13 + $0x8]]
    %v292 = vstv %s291
    %v293 = vadd.f32 %v290, %v292
    %v294 = vmax.f32 %v293, 0.0
    %v295 = vpack.c.bf16 %v294, %v294
    %s296 = scalar_lea.vmem [#allocation2], 32
    %297 = vst [vmem:[%s296] sm:$0xf] %v295
    %s298 = sld [smem:[#allocation10 + $0x9]]
    %v299 = vstv %s298
    %v300 = vmul.f32 %v171, %v299
    %s301 = sld [smem:[#allocation11 + $0x9]]
    %v302 = vstv %s301
    %v303 = vmul.f32 %v172, %v302
    %v304 = vadd.f32 %v300, %v303
    %s305 = sld [smem:[#allocation13 + $0x9]]
    %v306 = vstv %s305
    %v307 = vadd.f32 %v304, %v306
    %v308 = vmax.f32 %v307, 0.0
    %v309 = vpack.c.bf16 %v308, %v308
    %s310 = scalar_lea.vmem [#allocation2], 36
    %311 = vst [vmem:[%s310] sm:$0xf] %v309
    %s312 = sld [smem:[#allocation10 + $0xa]]
    %v313 = vstv %s312
    %v314 = vmul.f32 %v171, %v313
    %s315 = sld [smem:[#allocation11 + $0xa]]
    %v316 = vstv %s315
    %v317 = vmul.f32 %v172, %v316
    %v318 = vadd.f32 %v314, %v317
    %s319 = sld [smem:[#allocation13 + $0xa]]
    %v320 = vstv %s319
    %v321 = vadd.f32 %v318, %v320
    %v322 = vmax.f32 %v321, 0.0
    %v323 = vpack.c.bf16 %v322, %v322
    %s324 = scalar_lea.vmem [#allocation2], 40
    %325 = vst [vmem:[%s324] sm:$0xf] %v323
    %s326 = sld [smem:[#allocation10 + $0xb]]
    %v327 = vstv %s326
    %v328 = vmul.f32 %v171, %v327
    %s329 = sld [smem:[#allocation11 + $0xb]]
    %v330 = vstv %s329
    %v331 = vmul.f32 %v172, %v330
    %v332 = vadd.f32 %v328, %v331
    %s333 = sld [smem:[#allocation13 + $0xb]]
    %v334 = vstv %s333
    %v335 = vadd.f32 %v332, %v334
    %v336 = vmax.f32 %v335, 0.0
    %v337 = vpack.c.bf16 %v336, %v336
    %s338 = scalar_lea.vmem [#allocation2], 44
    %339 = vst [vmem:[%s338] sm:$0xf] %v337
    %s340 = sld [smem:[#allocation10 + $0xc]]
    %v341 = vstv %s340
    %v342 = vmul.f32 %v171, %v341
    %s343 = sld [smem:[#allocation11 + $0xc]]
    %v344 = vstv %s343
    %v345 = vmul.f32 %v172, %v344
    %v346 = vadd.f32 %v342, %v345
    %s347 = sld [smem:[#allocation13 + $0xc]]
    %v348 = vstv %s347
    %v349 = vadd.f32 %v346, %v348
    %v350 = vmax.f32 %v349, 0.0
    %v351 = vpack.c.bf16 %v350, %v350
    %s352 = scalar_lea.vmem [#allocation2], 48
    %353 = vst [vmem:[%s352] sm:$0xf] %v351
    %s354 = sld [smem:[#allocation10 + $0xd]]
    %v355 = vstv %s354
    %v356 = vmul.f32 %v171, %v355
    %s357 = sld [smem:[#allocation11 + $0xd]]
    %v358 = vstv %s357
    %v359 = vmul.f32 %v172, %v358
    %v360 = vadd.f32 %v356, %v359
    %s361 = sld [smem:[#allocation13 + $0xd]]
    %v362 = vstv %s361
    %v363 = vadd.f32 %v360, %v362
    %v364 = vmax.f32 %v363, 0.0
    %v365 = vpack.c.bf16 %v364, %v364
    %s366 = scalar_lea.vmem [#allocation2], 52
    %367 = vst [vmem:[%s366] sm:$0xf] %v365
    %s368 = sld [smem:[#allocation10 + $0xe]]
    %v369 = vstv %s368
    %v370 = vmul.f32 %v171, %v369
    %s371 = sld [smem:[#allocation11 + $0xe]]
    %v372 = vstv %s371
    %v373 = vmul.f32 %v172, %v372
    %v374 = vadd.f32 %v370, %v373
    %s375 = sld [smem:[#allocation13 + $0xe]]
    %v376 = vstv %s375
    %v377 = vadd.f32 %v374, %v376
    %v378 = vmax.f32 %v377, 0.0
    %v379 = vpack.c.bf16 %v378, %v378
    %s380 = scalar_lea.vmem [#allocation2], 56
    %381 = vst [vmem:[%s380] sm:$0xf] %v379
    %s382 = sld [smem:[#allocation10 + $0xf]]
    %v383 = vstv %s382
    %v384 = vmul.f32 %v171, %v383
    %s385 = sld [smem:[#allocation11 + $0xf]]
    %v386 = vstv %s385
    %v387 = vmul.f32 %v172, %v386
    %v388 = vadd.f32 %v384, %v387
    %s389 = sld [smem:[#allocation13 + $0xf]]
    %v390 = vstv %s389
    %v391 = vadd.f32 %v388, %v390
    %v392 = vmax.f32 %v391, 0.0
    %v393 = vpack.c.bf16 %v392, %v392
    %s394 = scalar_lea.vmem [#allocation2], 60
    %395 = vst [vmem:[%s394] sm:$0xf] %v393
    %s396 = sld [smem:[#allocation10 + $0x10]]
    %v397 = vstv %s396
    %v398 = vmul.f32 %v171, %v397
    %s399 = sld [smem:[#allocation11 + $0x10]]
    %v400 = vstv %s399
    %v401 = vmul.f32 %v172, %v400
    %v402 = vadd.f32 %v398, %v401
    %s403 = sld [smem:[#allocation13 + $0x10]]
    %v404 = vstv %s403
    %v405 = vadd.f32 %v402, %v404
    %v406 = vmax.f32 %v405, 0.0
    %v407 = vpack.c.bf16 %v406, %v406
    %s408 = scalar_lea.vmem [#allocation2], 64
    %409 = vst [vmem:[%s408] sm:$0xf] %v407
    %s410 = sld [smem:[#allocation10 + $0x11]]
    %v411 = vstv %s410
    %v412 = vmul.f32 %v171, %v411
    %s413 = sld [smem:[#allocation11 + $0x11]]
    %v414 = vstv %s413
    %v415 = vmul.f32 %v172, %v414
    %v416 = vadd.f32 %v412, %v415
    %s417 = sld [smem:[#allocation13 + $0x11]]
    %v418 = vstv %s417
    %v419 = vadd.f32 %v416, %v418
    %v420 = vmax.f32 %v419, 0.0
    %v421 = vpack.c.bf16 %v420, %v420
    %s422 = scalar_lea.vmem [#allocation2], 68
    %423 = vst [vmem:[%s422] sm:$0xf] %v421
    %s424 = sld [smem:[#allocation10 + $0x12]]
    %v425 = vstv %s424
    %v426 = vmul.f32 %v171, %v425
    %s427 = sld [smem:[#allocation11 + $0x12]]
    %v428 = vstv %s427
    %v429 = vmul.f32 %v172, %v428
    %v430 = vadd.f32 %v426, %v429
    %s431 = sld [smem:[#allocation13 + $0x12]]
    %v432 = vstv %s431
    %v433 = vadd.f32 %v430, %v432
    %v434 = vmax.f32 %v433, 0.0
    %v435 = vpack.c.bf16 %v434, %v434
    %s436 = scalar_lea.vmem [#allocation2], 72
    %437 = vst [vmem:[%s436] sm:$0xf] %v435
    %s438 = sld [smem:[#allocation10 + $0x13]]
    %v439 = vstv %s438
    %v440 = vmul.f32 %v171, %v439
    %s441 = sld [smem:[#allocation11 + $0x13]]
    %v442 = vstv %s441
    %v443 = vmul.f32 %v172, %v442
    %v444 = vadd.f32 %v440, %v443
    %s445 = sld [smem:[#allocation13 + $0x13]]
    %v446 = vstv %s445
    %v447 = vadd.f32 %v444, %v446
    %v448 = vmax.f32 %v447, 0.0
    %v449 = vpack.c.bf16 %v448, %v448
    %s450 = scalar_lea.vmem [#allocation2], 76
    %451 = vst [vmem:[%s450] sm:$0xf] %v449
    %s452 = sld [smem:[#allocation10 + $0x14]]
    %v453 = vstv %s452
    %v454 = vmul.f32 %v171, %v453
    %s455 = sld [smem:[#allocation11 + $0x14]]
    %v456 = vstv %s455
    %v457 = vmul.f32 %v172, %v456
    %v458 = vadd.f32 %v454, %v457
    %s459 = sld [smem:[#allocation13 + $0x14]]
    %v460 = vstv %s459
    %v461 = vadd.f32 %v458, %v460
    %v462 = vmax.f32 %v461, 0.0
    %v463 = vpack.c.bf16 %v462, %v462
    %s464 = scalar_lea.vmem [#allocation2], 80
    %465 = vst [vmem:[%s464] sm:$0xf] %v463
    %s466 = sld [smem:[#allocation10 + $0x15]]
    %v467 = vstv %s466
    %v468 = vmul.f32 %v171, %v467
    %s469 = sld [smem:[#allocation11 + $0x15]]
    %v470 = vstv %s469
    %v471 = vmul.f32 %v172, %v470
    %v472 = vadd.f32 %v468, %v471
    %s473 = sld [smem:[#allocation13 + $0x15]]
    %v474 = vstv %s473
    %v475 = vadd.f32 %v472, %v474
    %v476 = vmax.f32 %v475, 0.0
    %v477 = vpack.c.bf16 %v476, %v476
    %s478 = scalar_lea.vmem [#allocation2], 84
    %479 = vst [vmem:[%s478] sm:$0xf] %v477
    %s480 = sld [smem:[#allocation10 + $0x16]]
    %v481 = vstv %s480
    %v482 = vmul.f32 %v171, %v481
    %s483 = sld [smem:[#allocation11 + $0x16]]
    %v484 = vstv %s483
    %v485 = vmul.f32 %v172, %v484
    %v486 = vadd.f32 %v482, %v485
    %s487 = sld [smem:[#allocation13 + $0x16]]
    %v488 = vstv %s487
    %v489 = vadd.f32 %v486, %v488
    %v490 = vmax.f32 %v489, 0.0
    %v491 = vpack.c.bf16 %v490, %v490
    %s492 = scalar_lea.vmem [#allocation2], 88
    %493 = vst [vmem:[%s492] sm:$0xf] %v491
    %s494 = sld [smem:[#allocation10 + $0x17]]
    %v495 = vstv %s494
    %v496 = vmul.f32 %v171, %v495
    %s497 = sld [smem:[#allocation11 + $0x17]]
    %v498 = vstv %s497
    %v499 = vmul.f32 %v172, %v498
    %v500 = vadd.f32 %v496, %v499
    %s501 = sld [smem:[#allocation13 + $0x17]]
    %v502 = vstv %s501
    %v503 = vadd.f32 %v500, %v502
    %v504 = vmax.f32 %v503, 0.0
    %v505 = vpack.c.bf16 %v504, %v504
    %s506 = scalar_lea.vmem [#allocation2], 92
    %507 = vst [vmem:[%s506] sm:$0xf] %v505
    %s508 = sld [smem:[#allocation10 + $0x18]]
    %v509 = vstv %s508
    %v510 = vmul.f32 %v171, %v509
    %s511 = sld [smem:[#allocation11 + $0x18]]
    %v512 = vstv %s511
    %v513 = vmul.f32 %v172, %v512
    %v514 = vadd.f32 %v510, %v513
    %s515 = sld [smem:[#allocation13 + $0x18]]
    %v516 = vstv %s515
    %v517 = vadd.f32 %v514, %v516
    %v518 = vmax.f32 %v517, 0.0
    %v519 = vpack.c.bf16 %v518, %v518
    %s520 = scalar_lea.vmem [#allocation2], 96
    %521 = vst [vmem:[%s520] sm:$0xf] %v519
    %s522 = sld [smem:[#allocation10 + $0x19]]
    %v523 = vstv %s522
    %v524 = vmul.f32 %v171, %v523
    %s525 = sld [smem:[#allocation11 + $0x19]]
    %v526 = vstv %s525
    %v527 = vmul.f32 %v172, %v526
    %v528 = vadd.f32 %v524, %v527
    %s529 = sld [smem:[#allocation13 + $0x19]]
    %v530 = vstv %s529
    %v531 = vadd.f32 %v528, %v530
    %v532 = vmax.f32 %v531, 0.0
    %v533 = vpack.c.bf16 %v532, %v532
    %s534 = scalar_lea.vmem [#allocation2], 100
    %535 = vst [vmem:[%s534] sm:$0xf] %v533
    %s536 = sld [smem:[#allocation10 + $0x1a]]
    %v537 = vstv %s536
    %v538 = vmul.f32 %v171, %v537
    %s539 = sld [smem:[#allocation11 + $0x1a]]
    %v540 = vstv %s539
    %v541 = vmul.f32 %v172, %v540
    %v542 = vadd.f32 %v538, %v541
    %s543 = sld [smem:[#allocation13 + $0x1a]]
    %v544 = vstv %s543
    %v545 = vadd.f32 %v542, %v544
    %v546 = vmax.f32 %v545, 0.0
    %v547 = vpack.c.bf16 %v546, %v546
    %s548 = scalar_lea.vmem [#allocation2], 104
    %549 = vst [vmem:[%s548] sm:$0xf] %v547
    %s550 = sld [smem:[#allocation10 + $0x1b]]
    %v551 = vstv %s550
    %v552 = vmul.f32 %v171, %v551
    %s553 = sld [smem:[#allocation11 + $0x1b]]
    %v554 = vstv %s553
    %v555 = vmul.f32 %v172, %v554
    %v556 = vadd.f32 %v552, %v555
    %s557 = sld [smem:[#allocation13 + $0x1b]]
    %v558 = vstv %s557
    %v559 = vadd.f32 %v556, %v558
    %v560 = vmax.f32 %v559, 0.0
    %v561 = vpack.c.bf16 %v560, %v560
    %s562 = scalar_lea.vmem [#allocation2], 108
    %563 = vst [vmem:[%s562] sm:$0xf] %v561
    %s564 = sld [smem:[#allocation10 + $0x1c]]
    %v565 = vstv %s564
    %v566 = vmul.f32 %v171, %v565
    %s567 = sld [smem:[#allocation11 + $0x1c]]
    %v568 = vstv %s567
    %v569 = vmul.f32 %v172, %v568
    %v570 = vadd.f32 %v566, %v569
    %s571 = sld [smem:[#allocation13 + $0x1c]]
    %v572 = vstv %s571
    %v573 = vadd.f32 %v570, %v572
    %v574 = vmax.f32 %v573, 0.0
    %v575 = vpack.c.bf16 %v574, %v574
    %s576 = scalar_lea.vmem [#allocation2], 112
    %577 = vst [vmem:[%s576] sm:$0xf] %v575
    %s578 = sld [smem:[#allocation10 + $0x1d]]
    %v579 = vstv %s578
    %v580 = vmul.f32 %v171, %v579
    %s581 = sld [smem:[#allocation11 + $0x1d]]
    %v582 = vstv %s581
    %v583 = vmul.f32 %v172, %v582
    %v584 = vadd.f32 %v580, %v583
    %s585 = sld [smem:[#allocation13 + $0x1d]]
    %v586 = vstv %s585
    %v587 = vadd.f32 %v584, %v586
    %v588 = vmax.f32 %v587, 0.0
    %v589 = vpack.c.bf16 %v588, %v588
    %s590 = scalar_lea.vmem [#allocation2], 116
    %591 = vst [vmem:[%s590] sm:$0xf] %v589
    %s592 = sld [smem:[#allocation10 + $0x1e]]
    %v593 = vstv %s592
    %v594 = vmul.f32 %v171, %v593
    %s595 = sld [smem:[#allocation11 + $0x1e]]
    %v596 = vstv %s595
    %v597 = vmul.f32 %v172, %v596
    %v598 = vadd.f32 %v594, %v597
    %s599 = sld [smem:[#allocation13 + $0x1e]]
    %v600 = vstv %s599
    %v601 = vadd.f32 %v598, %v600
    %v602 = vmax.f32 %v601, 0.0
    %v603 = vpack.c.bf16 %v602, %v602
    %s604 = scalar_lea.vmem [#allocation2], 120
    %605 = vst [vmem:[%s604] sm:$0xf] %v603
    %s606 = sld [smem:[#allocation10 + $0x1f]]
    %v607 = vstv %s606
    %v608 = vmul.f32 %v171, %v607
    %s609 = sld [smem:[#allocation11 + $0x1f]]
    %v610 = vstv %s609
    %v611 = vmul.f32 %v172, %v610
    %v612 = vadd.f32 %v608, %v611
    %s613 = sld [smem:[#allocation13 + $0x1f]]
    %v614 = vstv %s613
    %v615 = vadd.f32 %v612, %v614
    %v616 = vmax.f32 %v615, 0.0
    %v617 = vpack.c.bf16 %v616, %v616
    %s618 = scalar_lea.vmem [#allocation2], 124
    %619 = vst [vmem:[%s618] sm:$0xf] %v617
    %v620 = vld [vmem:[#allocation2] sm:$0xff]
    %v621 = vld [vmem:[#allocation2 + $0x8] sm:$0xff]
    %v622 = vld [vmem:[#allocation2 + $0x10] sm:$0xff]
    %v623 = vld [vmem:[#allocation2 + $0x18] sm:$0xff]
    %v624 = vld [vmem:[#allocation2 + $0x20] sm:$0xff]
    %v625 = vld [vmem:[#allocation2 + $0x28] sm:$0xff]
    %v626 = vld [vmem:[#allocation2 + $0x30] sm:$0xff]
    %v627 = vld [vmem:[#allocation2 + $0x38] sm:$0xff]
    %v628 = vld [vmem:[#allocation2 + $0x40] sm:$0xff]
    %v629 = vld [vmem:[#allocation2 + $0x48] sm:$0xff]
    %v630 = vld [vmem:[#allocation2 + $0x50] sm:$0xff]
    %v631 = vld [vmem:[#allocation2 + $0x58] sm:$0xff]
    %v632 = vld [vmem:[#allocation2 + $0x60] sm:$0xff]
    %v633 = vld [vmem:[#allocation2 + $0x68] sm:$0xff]
    %v634 = vld [vmem:[#allocation2 + $0x70] sm:$0xff]
    %v635 = vld [vmem:[#allocation2 + $0x78] sm:$0xff]
    %v636 = vld [vmem:[#allocation14] sm:$0xf]
    %v637 = vld [vmem:[#allocation14 + $0x4] sm:$0xf]
    %v638 = vld [vmem:[#allocation14 + $0x8] sm:$0xf]
    %v639 = vld [vmem:[#allocation14 + $0xc] sm:$0xf]
    %v640 = vld [vmem:[#allocation14 + $0x10] sm:$0xf]
    %v641 = vld [vmem:[#allocation14 + $0x14] sm:$0xf]
    %v642 = vld [vmem:[#allocation14 + $0x18] sm:$0xf]
    %v643 = vld [vmem:[#allocation14 + $0x1c] sm:$0xf]
    %v644 = vld [vmem:[#allocation14 + $0x20] sm:$0xf]
    %v645 = vld [vmem:[#allocation14 + $0x24] sm:$0xf]
    %v646 = vld [vmem:[#allocation14 + $0x28] sm:$0xf]
    %v647 = vld [vmem:[#allocation14 + $0x2c] sm:$0xf]
    %v648 = vld [vmem:[#allocation14 + $0x30] sm:$0xf]
    %v649 = vld [vmem:[#allocation14 + $0x34] sm:$0xf]
    %v650 = vld [vmem:[#allocation14 + $0x38] sm:$0xf]
    %v651 = vld [vmem:[#allocation14 + $0x3c] sm:$0xf]
    %v652 = vld [vmem:[#allocation14 + $0x40] sm:$0xf]
    %v653 = vld [vmem:[#allocation14 + $0x44] sm:$0xf]
    %v654 = vld [vmem:[#allocation14 + $0x48] sm:$0xf]
    %v655 = vld [vmem:[#allocation14 + $0x4c] sm:$0xf]
    %v656 = vld [vmem:[#allocation14 + $0x50] sm:$0xf]
    %v657 = vld [vmem:[#allocation14 + $0x54] sm:$0xf]
    %v658 = vld [vmem:[#allocation14 + $0x58] sm:$0xf]
    %v659 = vld [vmem:[#allocation14 + $0x5c] sm:$0xf]
    %v660 = vld [vmem:[#allocation14 + $0x60] sm:$0xf]
    %v661 = vld [vmem:[#allocation14 + $0x64] sm:$0xf]
    %v662 = vld [vmem:[#allocation14 + $0x68] sm:$0xf]
    %v663 = vld [vmem:[#allocation14 + $0x6c] sm:$0xf]
    %v664 = vld [vmem:[#allocation14 + $0x70] sm:$0xf]
    %v665 = vld [vmem:[#allocation14 + $0x74] sm:$0xf]
    %v666 = vld [vmem:[#allocation14 + $0x78] sm:$0xf]
    %v667 = vld [vmem:[#allocation14 + $0x7c] sm:$0xf]
    %v668 = vld [vmem:[#allocation14 + $0x80] sm:$0xf]
    %v669 = vld [vmem:[#allocation14 + $0x84] sm:$0xf]
    %v670 = vld [vmem:[#allocation14 + $0x88] sm:$0xf]
    %v671 = vld [vmem:[#allocation14 + $0x8c] sm:$0xf]
    %v672 = vld [vmem:[#allocation14 + $0x90] sm:$0xf]
    %v673 = vld [vmem:[#allocation14 + $0x94] sm:$0xf]
    %v674 = vld [vmem:[#allocation14 + $0x98] sm:$0xf]
    %v675 = vld [vmem:[#allocation14 + $0x9c] sm:$0xf]
    %v676 = vld [vmem:[#allocation14 + $0xa0] sm:$0xf]
    %v677 = vld [vmem:[#allocation14 + $0xa4] sm:$0xf]
    %v678 = vld [vmem:[#allocation14 + $0xa8] sm:$0xf]
    %v679 = vld [vmem:[#allocation14 + $0xac] sm:$0xf]
    %v680 = vld [vmem:[#allocation14 + $0xb0] sm:$0xf]
    %v681 = vld [vmem:[#allocation14 + $0xb4] sm:$0xf]
    %v682 = vld [vmem:[#allocation14 + $0xb8] sm:$0xf]
    %v683 = vld [vmem:[#allocation14 + $0xbc] sm:$0xf]
    %v684 = vld [vmem:[#allocation14 + $0xc0] sm:$0xf]
    %v685 = vld [vmem:[#allocation14 + $0xc4] sm:$0xf]
    %v686 = vld [vmem:[#allocation14 + $0xc8] sm:$0xf]
    %v687 = vld [vmem:[#allocation14 + $0xcc] sm:$0xf]
    %v688 = vld [vmem:[#allocation14 + $0xd0] sm:$0xf]
    %v689 = vld [vmem:[#allocation14 + $0xd4] sm:$0xf]
    %v690 = vld [vmem:[#allocation14 + $0xd8] sm:$0xf]
    %v691 = vld [vmem:[#allocation14 + $0xdc] sm:$0xf]
    %v692 = vld [vmem:[#allocation14 + $0xe0] sm:$0xf]
    %v693 = vld [vmem:[#allocation14 + $0xe4] sm:$0xf]
    %v694 = vld [vmem:[#allocation14 + $0xe8] sm:$0xf]
    %v695 = vld [vmem:[#allocation14 + $0xec] sm:$0xf]
    %v696 = vld [vmem:[#allocation14 + $0xf0] sm:$0xf]
    %v697 = vld [vmem:[#allocation14 + $0xf4] sm:$0xf]
    %v698 = vld [vmem:[#allocation14 + $0xf8] sm:$0xf]
    %v699 = vld [vmem:[#allocation14 + $0xfc] sm:$0xf]
    %v700 = vld [vmem:[#allocation14 + $0x100] sm:$0xf]
    %v701 = vld [vmem:[#allocation14 + $0x104] sm:$0xf]
    %v702 = vld [vmem:[#allocation14 + $0x108] sm:$0xf]
    %v703 = vld [vmem:[#allocation14 + $0x10c] sm:$0xf]
    %v704 = vld [vmem:[#allocation14 + $0x110] sm:$0xf]
    %v705 = vld [vmem:[#allocation14 + $0x114] sm:$0xf]
    %v706 = vld [vmem:[#allocation14 + $0x118] sm:$0xf]
    %v707 = vld [vmem:[#allocation14 + $0x11c] sm:$0xf]
    %v708 = vld [vmem:[#allocation14 + $0x120] sm:$0xf]
    %v709 = vld [vmem:[#allocation14 + $0x124] sm:$0xf]
    %v710 = vld [vmem:[#allocation14 + $0x128] sm:$0xf]
    %v711 = vld [vmem:[#allocation14 + $0x12c] sm:$0xf]
    %v712 = vld [vmem:[#allocation14 + $0x130] sm:$0xf]
    %v713 = vld [vmem:[#allocation14 + $0x134] sm:$0xf]
    %v714 = vld [vmem:[#allocation14 + $0x138] sm:$0xf]
    %v715 = vld [vmem:[#allocation14 + $0x13c] sm:$0xf]
    %v716 = vld [vmem:[#allocation14 + $0x140] sm:$0xf]
    %v717 = vld [vmem:[#allocation14 + $0x144] sm:$0xf]
    %v718 = vld [vmem:[#allocation14 + $0x148] sm:$0xf]
    %v719 = vld [vmem:[#allocation14 + $0x14c] sm:$0xf]
    %v720 = vld [vmem:[#allocation14 + $0x150] sm:$0xf]
    %v721 = vld [vmem:[#allocation14 + $0x154] sm:$0xf]
    %v722 = vld [vmem:[#allocation14 + $0x158] sm:$0xf]
    %v723 = vld [vmem:[#allocation14 + $0x15c] sm:$0xf]
    %v724 = vld [vmem:[#allocation14 + $0x160] sm:$0xf]
    %v725 = vld [vmem:[#allocation14 + $0x164] sm:$0xf]
    %v726 = vld [vmem:[#allocation14 + $0x168] sm:$0xf]
    %v727 = vld [vmem:[#allocation14 + $0x16c] sm:$0xf]
    %v728 = vld [vmem:[#allocation14 + $0x170] sm:$0xf]
    %v729 = vld [vmem:[#allocation14 + $0x174] sm:$0xf]
    %v730 = vld [vmem:[#allocation14 + $0x178] sm:$0xf]
    %v731 = vld [vmem:[#allocation14 + $0x17c] sm:$0xf]
    %v732 = vld [vmem:[#allocation14 + $0x180] sm:$0xf]
    %v733 = vld [vmem:[#allocation14 + $0x184] sm:$0xf]
    %v734 = vld [vmem:[#allocation14 + $0x188] sm:$0xf]
    %v735 = vld [vmem:[#allocation14 + $0x18c] sm:$0xf]
    %v736 = vld [vmem:[#allocation14 + $0x190] sm:$0xf]
    %v737 = vld [vmem:[#allocation14 + $0x194] sm:$0xf]
    %v738 = vld [vmem:[#allocation14 + $0x198] sm:$0xf]
    %v739 = vld [vmem:[#allocation14 + $0x19c] sm:$0xf]
    %v740 = vld [vmem:[#allocation14 + $0x1a0] sm:$0xf]
    %v741 = vld [vmem:[#allocation14 + $0x1a4] sm:$0xf]
    %v742 = vld [vmem:[#allocation14 + $0x1a8] sm:$0xf]
    %v743 = vld [vmem:[#allocation14 + $0x1ac] sm:$0xf]
    %v744 = vld [vmem:[#allocation14 + $0x1b0] sm:$0xf]
    %v745 = vld [vmem:[#allocation14 + $0x1b4] sm:$0xf]
    %v746 = vld [vmem:[#allocation14 + $0x1b8] sm:$0xf]
    %v747 = vld [vmem:[#allocation14 + $0x1bc] sm:$0xf]
    %v748 = vld [vmem:[#allocation14 + $0x1c0] sm:$0xf]
    %v749 = vld [vmem:[#allocation14 + $0x1c4] sm:$0xf]
    %v750 = vld [vmem:[#allocation14 + $0x1c8] sm:$0xf]
    %v751 = vld [vmem:[#allocation14 + $0x1cc] sm:$0xf]
    %v752 = vld [vmem:[#allocation14 + $0x1d0] sm:$0xf]
    %v753 = vld [vmem:[#allocation14 + $0x1d4] sm:$0xf]
    %v754 = vld [vmem:[#allocation14 + $0x1d8] sm:$0xf]
    %v755 = vld [vmem:[#allocation14 + $0x1dc] sm:$0xf]
    %v756 = vld [vmem:[#allocation14 + $0x1e0] sm:$0xf]
    %v757 = vld [vmem:[#allocation14 + $0x1e4] sm:$0xf]
    %v758 = vld [vmem:[#allocation14 + $0x1e8] sm:$0xf]
    %v759 = vld [vmem:[#allocation14 + $0x1ec] sm:$0xf]
    %v760 = vld [vmem:[#allocation14 + $0x1f0] sm:$0xf]
    %v761 = vld [vmem:[#allocation14 + $0x1f4] sm:$0xf]
    %v762 = vld [vmem:[#allocation14 + $0x1f8] sm:$0xf]
    %v763 = vld [vmem:[#allocation14 + $0x1fc] sm:$0xf]
    %v764 = vld [vmem:[#allocation14 + $0x200] sm:$0xf]
    %v765 = vld [vmem:[#allocation14 + $0x204] sm:$0xf]
    %v766 = vld [vmem:[#allocation14 + $0x208] sm:$0xf]
    %v767 = vld [vmem:[#allocation14 + $0x20c] sm:$0xf]
    %v768 = vld [vmem:[#allocation14 + $0x210] sm:$0xf]
    %v769 = vld [vmem:[#allocation14 + $0x214] sm:$0xf]
    %v770 = vld [vmem:[#allocation14 + $0x218] sm:$0xf]
    %v771 = vld [vmem:[#allocation14 + $0x21c] sm:$0xf]
    %v772 = vld [vmem:[#allocation14 + $0x220] sm:$0xf]
    %v773 = vld [vmem:[#allocation14 + $0x224] sm:$0xf]
    %v774 = vld [vmem:[#allocation14 + $0x228] sm:$0xf]
    %v775 = vld [vmem:[#allocation14 + $0x22c] sm:$0xf]
    %v776 = vld [vmem:[#allocation14 + $0x230] sm:$0xf]
    %v777 = vld [vmem:[#allocation14 + $0x234] sm:$0xf]
    %v778 = vld [vmem:[#allocation14 + $0x238] sm:$0xf]
    %v779 = vld [vmem:[#allocation14 + $0x23c] sm:$0xf]
    %v780 = vld [vmem:[#allocation14 + $0x240] sm:$0xf]
    %v781 = vld [vmem:[#allocation14 + $0x244] sm:$0xf]
    %v782 = vld [vmem:[#allocation14 + $0x248] sm:$0xf]
    %v783 = vld [vmem:[#allocation14 + $0x24c] sm:$0xf]
    %v784 = vld [vmem:[#allocation14 + $0x250] sm:$0xf]
    %v785 = vld [vmem:[#allocation14 + $0x254] sm:$0xf]
    %v786 = vld [vmem:[#allocation14 + $0x258] sm:$0xf]
    %v787 = vld [vmem:[#allocation14 + $0x25c] sm:$0xf]
    %v788 = vld [vmem:[#allocation14 + $0x260] sm:$0xf]
    %v789 = vld [vmem:[#allocation14 + $0x264] sm:$0xf]
    %v790 = vld [vmem:[#allocation14 + $0x268] sm:$0xf]
    %v791 = vld [vmem:[#allocation14 + $0x26c] sm:$0xf]
    %v792 = vld [vmem:[#allocation14 + $0x270] sm:$0xf]
    %v793 = vld [vmem:[#allocation14 + $0x274] sm:$0xf]
    %v794 = vld [vmem:[#allocation14 + $0x278] sm:$0xf]
    %v795 = vld [vmem:[#allocation14 + $0x27c] sm:$0xf]
    %v796 = vld [vmem:[#allocation14 + $0x280] sm:$0xf]
    %v797 = vld [vmem:[#allocation14 + $0x284] sm:$0xf]
    %v798 = vld [vmem:[#allocation14 + $0x288] sm:$0xf]
    %v799 = vld [vmem:[#allocation14 + $0x28c] sm:$0xf]
    %v800 = vld [vmem:[#allocation14 + $0x290] sm:$0xf]
    %v801 = vld [vmem:[#allocation14 + $0x294] sm:$0xf]
    %v802 = vld [vmem:[#allocation14 + $0x298] sm:$0xf]
    %v803 = vld [vmem:[#allocation14 + $0x29c] sm:$0xf]
    %v804 = vld [vmem:[#allocation14 + $0x2a0] sm:$0xf]
    %v805 = vld [vmem:[#allocation14 + $0x2a4] sm:$0xf]
    %v806 = vld [vmem:[#allocation14 + $0x2a8] sm:$0xf]
    %v807 = vld [vmem:[#allocation14 + $0x2ac] sm:$0xf]
    %v808 = vld [vmem:[#allocation14 + $0x2b0] sm:$0xf]
    %v809 = vld [vmem:[#allocation14 + $0x2b4] sm:$0xf]
    %v810 = vld [vmem:[#allocation14 + $0x2b8] sm:$0xf]
    %v811 = vld [vmem:[#allocation14 + $0x2bc] sm:$0xf]
    %v812 = vld [vmem:[#allocation14 + $0x2c0] sm:$0xf]
    %v813 = vld [vmem:[#allocation14 + $0x2c4] sm:$0xf]
    %v814 = vld [vmem:[#allocation14 + $0x2c8] sm:$0xf]
    %v815 = vld [vmem:[#allocation14 + $0x2cc] sm:$0xf]
    %v816 = vld [vmem:[#allocation14 + $0x2d0] sm:$0xf]
    %v817 = vld [vmem:[#allocation14 + $0x2d4] sm:$0xf]
    %v818 = vld [vmem:[#allocation14 + $0x2d8] sm:$0xf]
    %v819 = vld [vmem:[#allocation14 + $0x2dc] sm:$0xf]
    %v820 = vld [vmem:[#allocation14 + $0x2e0] sm:$0xf]
    %v821 = vld [vmem:[#allocation14 + $0x2e4] sm:$0xf]
    %v822 = vld [vmem:[#allocation14 + $0x2e8] sm:$0xf]
    %v823 = vld [vmem:[#allocation14 + $0x2ec] sm:$0xf]
    %v824 = vld [vmem:[#allocation14 + $0x2f0] sm:$0xf]
    %v825 = vld [vmem:[#allocation14 + $0x2f4] sm:$0xf]
    %v826 = vld [vmem:[#allocation14 + $0x2f8] sm:$0xf]
    %v827 = vld [vmem:[#allocation14 + $0x2fc] sm:$0xf]
    %v828 = vld [vmem:[#allocation14 + $0x300] sm:$0xf]
    %v829 = vld [vmem:[#allocation14 + $0x304] sm:$0xf]
    %v830 = vld [vmem:[#allocation14 + $0x308] sm:$0xf]
    %v831 = vld [vmem:[#allocation14 + $0x30c] sm:$0xf]
    %v832 = vld [vmem:[#allocation14 + $0x310] sm:$0xf]
    %v833 = vld [vmem:[#allocation14 + $0x314] sm:$0xf]
    %v834 = vld [vmem:[#allocation14 + $0x318] sm:$0xf]
    %v835 = vld [vmem:[#allocation14 + $0x31c] sm:$0xf]
    %v836 = vld [vmem:[#allocation14 + $0x320] sm:$0xf]
    %v837 = vld [vmem:[#allocation14 + $0x324] sm:$0xf]
    %v838 = vld [vmem:[#allocation14 + $0x328] sm:$0xf]
    %v839 = vld [vmem:[#allocation14 + $0x32c] sm:$0xf]
    %v840 = vld [vmem:[#allocation14 + $0x330] sm:$0xf]
    %v841 = vld [vmem:[#allocation14 + $0x334] sm:$0xf]
    %v842 = vld [vmem:[#allocation14 + $0x338] sm:$0xf]
    %v843 = vld [vmem:[#allocation14 + $0x33c] sm:$0xf]
    %v844 = vld [vmem:[#allocation14 + $0x340] sm:$0xf]
    %v845 = vld [vmem:[#allocation14 + $0x344] sm:$0xf]
    %v846 = vld [vmem:[#allocation14 + $0x348] sm:$0xf]
    %v847 = vld [vmem:[#allocation14 + $0x34c] sm:$0xf]
    %v848 = vld [vmem:[#allocation14 + $0x350] sm:$0xf]
    %v849 = vld [vmem:[#allocation14 + $0x354] sm:$0xf]
    %v850 = vld [vmem:[#allocation14 + $0x358] sm:$0xf]
    %v851 = vld [vmem:[#allocation14 + $0x35c] sm:$0xf]
    %v852 = vld [vmem:[#allocation14 + $0x360] sm:$0xf]
    %v853 = vld [vmem:[#allocation14 + $0x364] sm:$0xf]
    %v854 = vld [vmem:[#allocation14 + $0x368] sm:$0xf]
    %v855 = vld [vmem:[#allocation14 + $0x36c] sm:$0xf]
    %v856 = vld [vmem:[#allocation14 + $0x370] sm:$0xf]
    %v857 = vld [vmem:[#allocation14 + $0x374] sm:$0xf]
    %v858 = vld [vmem:[#allocation14 + $0x378] sm:$0xf]
    %v859 = vld [vmem:[#allocation14 + $0x37c] sm:$0xf]
    %v860 = vld [vmem:[#allocation14 + $0x380] sm:$0xf]
    %v861 = vld [vmem:[#allocation14 + $0x384] sm:$0xf]
    %v862 = vld [vmem:[#allocation14 + $0x388] sm:$0xf]
    %v863 = vld [vmem:[#allocation14 + $0x38c] sm:$0xf]
    %v864 = vld [vmem:[#allocation14 + $0x390] sm:$0xf]
    %v865 = vld [vmem:[#allocation14 + $0x394] sm:$0xf]
    %v866 = vld [vmem:[#allocation14 + $0x398] sm:$0xf]
    %v867 = vld [vmem:[#allocation14 + $0x39c] sm:$0xf]
    %v868 = vld [vmem:[#allocation14 + $0x3a0] sm:$0xf]
    %v869 = vld [vmem:[#allocation14 + $0x3a4] sm:$0xf]
    %v870 = vld [vmem:[#allocation14 + $0x3a8] sm:$0xf]
    %v871 = vld [vmem:[#allocation14 + $0x3ac] sm:$0xf]
    %v872 = vld [vmem:[#allocation14 + $0x3b0] sm:$0xf]
    %v873 = vld [vmem:[#allocation14 + $0x3b4] sm:$0xf]
    %v874 = vld [vmem:[#allocation14 + $0x3b8] sm:$0xf]
    %v875 = vld [vmem:[#allocation14 + $0x3bc] sm:$0xf]
    %v876 = vld [vmem:[#allocation14 + $0x3c0] sm:$0xf]
    %v877 = vld [vmem:[#allocation14 + $0x3c4] sm:$0xf]
    %v878 = vld [vmem:[#allocation14 + $0x3c8] sm:$0xf]
    %v879 = vld [vmem:[#allocation14 + $0x3cc] sm:$0xf]
    %v880 = vld [vmem:[#allocation14 + $0x3d0] sm:$0xf]
    %v881 = vld [vmem:[#allocation14 + $0x3d4] sm:$0xf]
    %v882 = vld [vmem:[#allocation14 + $0x3d8] sm:$0xf]
    %v883 = vld [vmem:[#allocation14 + $0x3dc] sm:$0xf]
    %v884 = vld [vmem:[#allocation14 + $0x3e0] sm:$0xf]
    %v885 = vld [vmem:[#allocation14 + $0x3e4] sm:$0xf]
    %v886 = vld [vmem:[#allocation14 + $0x3e8] sm:$0xf]
    %v887 = vld [vmem:[#allocation14 + $0x3ec] sm:$0xf]
    %v888 = vld [vmem:[#allocation14 + $0x3f0] sm:$0xf]
    %v889 = vld [vmem:[#allocation14 + $0x3f4] sm:$0xf]
    %v890 = vld [vmem:[#allocation14 + $0x3f8] sm:$0xf]
    %v891 = vld [vmem:[#allocation14 + $0x3fc] sm:$0xf]
    %v892 = vld [vmem:[#allocation14 + $0x400] sm:$0xf]
    %v893 = vld [vmem:[#allocation14 + $0x404] sm:$0xf]
    %v894 = vld [vmem:[#allocation14 + $0x408] sm:$0xf]
    %v895 = vld [vmem:[#allocation14 + $0x40c] sm:$0xf]
    %v896 = vld [vmem:[#allocation14 + $0x410] sm:$0xf]
    %v897 = vld [vmem:[#allocation14 + $0x414] sm:$0xf]
    %v898 = vld [vmem:[#allocation14 + $0x418] sm:$0xf]
    %v899 = vld [vmem:[#allocation14 + $0x41c] sm:$0xf]
    %v900 = vld [vmem:[#allocation14 + $0x420] sm:$0xf]
    %v901 = vld [vmem:[#allocation14 + $0x424] sm:$0xf]
    %v902 = vld [vmem:[#allocation14 + $0x428] sm:$0xf]
    %v903 = vld [vmem:[#allocation14 + $0x42c] sm:$0xf]
    %v904 = vld [vmem:[#allocation14 + $0x430] sm:$0xf]
    %v905 = vld [vmem:[#allocation14 + $0x434] sm:$0xf]
    %v906 = vld [vmem:[#allocation14 + $0x438] sm:$0xf]
    %v907 = vld [vmem:[#allocation14 + $0x43c] sm:$0xf]
    %v908 = vld [vmem:[#allocation14 + $0x440] sm:$0xf]
    %v909 = vld [vmem:[#allocation14 + $0x444] sm:$0xf]
    %v910 = vld [vmem:[#allocation14 + $0x448] sm:$0xf]
    %v911 = vld [vmem:[#allocation14 + $0x44c] sm:$0xf]
    %v912 = vld [vmem:[#allocation14 + $0x450] sm:$0xf]
    %v913 = vld [vmem:[#allocation14 + $0x454] sm:$0xf]
    %v914 = vld [vmem:[#allocation14 + $0x458] sm:$0xf]
    %v915 = vld [vmem:[#allocation14 + $0x45c] sm:$0xf]
    %v916 = vld [vmem:[#allocation14 + $0x460] sm:$0xf]
    %v917 = vld [vmem:[#allocation14 + $0x464] sm:$0xf]
    %v918 = vld [vmem:[#allocation14 + $0x468] sm:$0xf]
    %v919 = vld [vmem:[#allocation14 + $0x46c] sm:$0xf]
    %v920 = vld [vmem:[#allocation14 + $0x470] sm:$0xf]
    %v921 = vld [vmem:[#allocation14 + $0x474] sm:$0xf]
    %v922 = vld [vmem:[#allocation14 + $0x478] sm:$0xf]
    %v923 = vld [vmem:[#allocation14 + $0x47c] sm:$0xf]
    %v924 = vld [vmem:[#allocation14 + $0x480] sm:$0xf]
    %v925 = vld [vmem:[#allocation14 + $0x484] sm:$0xf]
    %v926 = vld [vmem:[#allocation14 + $0x488] sm:$0xf]
    %v927 = vld [vmem:[#allocation14 + $0x48c] sm:$0xf]
    %v928 = vld [vmem:[#allocation14 + $0x490] sm:$0xf]
    %v929 = vld [vmem:[#allocation14 + $0x494] sm:$0xf]
    %v930 = vld [vmem:[#allocation14 + $0x498] sm:$0xf]
    %v931 = vld [vmem:[#allocation14 + $0x49c] sm:$0xf]
    %v932 = vld [vmem:[#allocation14 + $0x4a0] sm:$0xf]
    %v933 = vld [vmem:[#allocation14 + $0x4a4] sm:$0xf]
    %v934 = vld [vmem:[#allocation14 + $0x4a8] sm:$0xf]
    %v935 = vld [vmem:[#allocation14 + $0x4ac] sm:$0xf]
    %v936 = vld [vmem:[#allocation14 + $0x4b0] sm:$0xf]
    %v937 = vld [vmem:[#allocation14 + $0x4b4] sm:$0xf]
    %v938 = vld [vmem:[#allocation14 + $0x4b8] sm:$0xf]
    %v939 = vld [vmem:[#allocation14 + $0x4bc] sm:$0xf]
    %v940 = vld [vmem:[#allocation14 + $0x4c0] sm:$0xf]
    %v941 = vld [vmem:[#allocation14 + $0x4c4] sm:$0xf]
    %v942 = vld [vmem:[#allocation14 + $0x4c8] sm:$0xf]
    %v943 = vld [vmem:[#allocation14 + $0x4cc] sm:$0xf]
    %v944 = vld [vmem:[#allocation14 + $0x4d0] sm:$0xf]
    %v945 = vld [vmem:[#allocation14 + $0x4d4] sm:$0xf]
    %v946 = vld [vmem:[#allocation14 + $0x4d8] sm:$0xf]
    %v947 = vld [vmem:[#allocation14 + $0x4dc] sm:$0xf]
    %v948 = vld [vmem:[#allocation14 + $0x4e0] sm:$0xf]
    %v949 = vld [vmem:[#allocation14 + $0x4e4] sm:$0xf]
    %v950 = vld [vmem:[#allocation14 + $0x4e8] sm:$0xf]
    %v951 = vld [vmem:[#allocation14 + $0x4ec] sm:$0xf]
    %v952 = vld [vmem:[#allocation14 + $0x4f0] sm:$0xf]
    %v953 = vld [vmem:[#allocation14 + $0x4f4] sm:$0xf]
    %v954 = vld [vmem:[#allocation14 + $0x4f8] sm:$0xf]
    %v955 = vld [vmem:[#allocation14 + $0x4fc] sm:$0xf]
    %v956 = vld [vmem:[#allocation14 + $0x500] sm:$0xf]
    %v957 = vld [vmem:[#allocation14 + $0x504] sm:$0xf]
    %v958 = vld [vmem:[#allocation14 + $0x508] sm:$0xf]
    %v959 = vld [vmem:[#allocation14 + $0x50c] sm:$0xf]
    %v960 = vld [vmem:[#allocation14 + $0x510] sm:$0xf]
    %v961 = vld [vmem:[#allocation14 + $0x514] sm:$0xf]
    %v962 = vld [vmem:[#allocation14 + $0x518] sm:$0xf]
    %v963 = vld [vmem:[#allocation14 + $0x51c] sm:$0xf]
    %v964 = vld [vmem:[#allocation14 + $0x520] sm:$0xf]
    %v965 = vld [vmem:[#allocation14 + $0x524] sm:$0xf]
    %v966 = vld [vmem:[#allocation14 + $0x528] sm:$0xf]
    %v967 = vld [vmem:[#allocation14 + $0x52c] sm:$0xf]
    %v968 = vld [vmem:[#allocation14 + $0x530] sm:$0xf]
    %v969 = vld [vmem:[#allocation14 + $0x534] sm:$0xf]
    %v970 = vld [vmem:[#allocation14 + $0x538] sm:$0xf]
    %v971 = vld [vmem:[#allocation14 + $0x53c] sm:$0xf]
    %v972 = vld [vmem:[#allocation14 + $0x540] sm:$0xf]
    %v973 = vld [vmem:[#allocation14 + $0x544] sm:$0xf]
    %v974 = vld [vmem:[#allocation14 + $0x548] sm:$0xf]
    %v975 = vld [vmem:[#allocation14 + $0x54c] sm:$0xf]
    %v976 = vld [vmem:[#allocation14 + $0x550] sm:$0xf]
    %v977 = vld [vmem:[#allocation14 + $0x554] sm:$0xf]
    %v978 = vld [vmem:[#allocation14 + $0x558] sm:$0xf]
    %v979 = vld [vmem:[#allocation14 + $0x55c] sm:$0xf]
    %v980 = vld [vmem:[#allocation14 + $0x560] sm:$0xf]
    %v981 = vld [vmem:[#allocation14 + $0x564] sm:$0xf]
    %v982 = vld [vmem:[#allocation14 + $0x568] sm:$0xf]
    %v983 = vld [vmem:[#allocation14 + $0x56c] sm:$0xf]
    %v984 = vld [vmem:[#allocation14 + $0x570] sm:$0xf]
    %v985 = vld [vmem:[#allocation14 + $0x574] sm:$0xf]
    %v986 = vld [vmem:[#allocation14 + $0x578] sm:$0xf]
    %v987 = vld [vmem:[#allocation14 + $0x57c] sm:$0xf]
    %v988 = vld [vmem:[#allocation14 + $0x580] sm:$0xf]
    %v989 = vld [vmem:[#allocation14 + $0x584] sm:$0xf]
    %v990 = vld [vmem:[#allocation14 + $0x588] sm:$0xf]
    %v991 = vld [vmem:[#allocation14 + $0x58c] sm:$0xf]
    %v992 = vld [vmem:[#allocation14 + $0x590] sm:$0xf]
    %v993 = vld [vmem:[#allocation14 + $0x594] sm:$0xf]
    %v994 = vld [vmem:[#allocation14 + $0x598] sm:$0xf]
    %v995 = vld [vmem:[#allocation14 + $0x59c] sm:$0xf]
    %v996 = vld [vmem:[#allocation14 + $0x5a0] sm:$0xf]
    %v997 = vld [vmem:[#allocation14 + $0x5a4] sm:$0xf]
    %v998 = vld [vmem:[#allocation14 + $0x5a8] sm:$0xf]
    %v999 = vld [vmem:[#allocation14 + $0x5ac] sm:$0xf]
    %v1000 = vld [vmem:[#allocation14 + $0x5b0] sm:$0xf]
    %v1001 = vld [vmem:[#allocation14 + $0x5b4] sm:$0xf]
    %v1002 = vld [vmem:[#allocation14 + $0x5b8] sm:$0xf]
    %v1003 = vld [vmem:[#allocation14 + $0x5bc] sm:$0xf]
    %v1004 = vld [vmem:[#allocation14 + $0x5c0] sm:$0xf]
    %v1005 = vld [vmem:[#allocation14 + $0x5c4] sm:$0xf]
    %v1006 = vld [vmem:[#allocation14 + $0x5c8] sm:$0xf]
    %v1007 = vld [vmem:[#allocation14 + $0x5cc] sm:$0xf]
    %v1008 = vld [vmem:[#allocation14 + $0x5d0] sm:$0xf]
    %v1009 = vld [vmem:[#allocation14 + $0x5d4] sm:$0xf]
    %v1010 = vld [vmem:[#allocation14 + $0x5d8] sm:$0xf]
    %v1011 = vld [vmem:[#allocation14 + $0x5dc] sm:$0xf]
    %v1012 = vld [vmem:[#allocation14 + $0x5e0] sm:$0xf]
    %v1013 = vld [vmem:[#allocation14 + $0x5e4] sm:$0xf]
    %v1014 = vld [vmem:[#allocation14 + $0x5e8] sm:$0xf]
    %v1015 = vld [vmem:[#allocation14 + $0x5ec] sm:$0xf]
    %v1016 = vld [vmem:[#allocation14 + $0x5f0] sm:$0xf]
    %v1017 = vld [vmem:[#allocation14 + $0x5f4] sm:$0xf]
    %v1018 = vld [vmem:[#allocation14 + $0x5f8] sm:$0xf]
    %v1019 = vld [vmem:[#allocation14 + $0x5fc] sm:$0xf]
    %v1020 = vld [vmem:[#allocation14 + $0x600] sm:$0xf]
    %v1021 = vld [vmem:[#allocation14 + $0x604] sm:$0xf]
    %v1022 = vld [vmem:[#allocation14 + $0x608] sm:$0xf]
    %v1023 = vld [vmem:[#allocation14 + $0x60c] sm:$0xf]
    %v1024 = vld [vmem:[#allocation14 + $0x610] sm:$0xf]
    %v1025 = vld [vmem:[#allocation14 + $0x614] sm:$0xf]
    %v1026 = vld [vmem:[#allocation14 + $0x618] sm:$0xf]
    %v1027 = vld [vmem:[#allocation14 + $0x61c] sm:$0xf]
    %v1028 = vld [vmem:[#allocation14 + $0x620] sm:$0xf]
    %v1029 = vld [vmem:[#allocation14 + $0x624] sm:$0xf]
    %v1030 = vld [vmem:[#allocation14 + $0x628] sm:$0xf]
    %v1031 = vld [vmem:[#allocation14 + $0x62c] sm:$0xf]
    %v1032 = vld [vmem:[#allocation14 + $0x630] sm:$0xf]
    %v1033 = vld [vmem:[#allocation14 + $0x634] sm:$0xf]
    %v1034 = vld [vmem:[#allocation14 + $0x638] sm:$0xf]
    %v1035 = vld [vmem:[#allocation14 + $0x63c] sm:$0xf]
    %v1036 = vld [vmem:[#allocation14 + $0x640] sm:$0xf]
    %v1037 = vld [vmem:[#allocation14 + $0x644] sm:$0xf]
    %v1038 = vld [vmem:[#allocation14 + $0x648] sm:$0xf]
    %v1039 = vld [vmem:[#allocation14 + $0x64c] sm:$0xf]
    %v1040 = vld [vmem:[#allocation14 + $0x650] sm:$0xf]
    %v1041 = vld [vmem:[#allocation14 + $0x654] sm:$0xf]
    %v1042 = vld [vmem:[#allocation14 + $0x658] sm:$0xf]
    %v1043 = vld [vmem:[#allocation14 + $0x65c] sm:$0xf]
    %v1044 = vld [vmem:[#allocation14 + $0x660] sm:$0xf]
    %v1045 = vld [vmem:[#allocation14 + $0x664] sm:$0xf]
    %v1046 = vld [vmem:[#allocation14 + $0x668] sm:$0xf]
    %v1047 = vld [vmem:[#allocation14 + $0x66c] sm:$0xf]
    %v1048 = vld [vmem:[#allocation14 + $0x670] sm:$0xf]
    %v1049 = vld [vmem:[#allocation14 + $0x674] sm:$0xf]
    %v1050 = vld [vmem:[#allocation14 + $0x678] sm:$0xf]
    %v1051 = vld [vmem:[#allocation14 + $0x67c] sm:$0xf]
    %v1052 = vld [vmem:[#allocation14 + $0x680] sm:$0xf]
    %v1053 = vld [vmem:[#allocation14 + $0x684] sm:$0xf]
    %v1054 = vld [vmem:[#allocation14 + $0x688] sm:$0xf]
    %v1055 = vld [vmem:[#allocation14 + $0x68c] sm:$0xf]
    %v1056 = vld [vmem:[#allocation14 + $0x690] sm:$0xf]
    %v1057 = vld [vmem:[#allocation14 + $0x694] sm:$0xf]
    %v1058 = vld [vmem:[#allocation14 + $0x698] sm:$0xf]
    %v1059 = vld [vmem:[#allocation14 + $0x69c] sm:$0xf]
    %v1060 = vld [vmem:[#allocation14 + $0x6a0] sm:$0xf]
    %v1061 = vld [vmem:[#allocation14 + $0x6a4] sm:$0xf]
    %v1062 = vld [vmem:[#allocation14 + $0x6a8] sm:$0xf]
    %v1063 = vld [vmem:[#allocation14 + $0x6ac] sm:$0xf]
    %v1064 = vld [vmem:[#allocation14 + $0x6b0] sm:$0xf]
    %v1065 = vld [vmem:[#allocation14 + $0x6b4] sm:$0xf]
    %v1066 = vld [vmem:[#allocation14 + $0x6b8] sm:$0xf]
    %v1067 = vld [vmem:[#allocation14 + $0x6bc] sm:$0xf]
    %v1068 = vld [vmem:[#allocation14 + $0x6c0] sm:$0xf]
    %v1069 = vld [vmem:[#allocation14 + $0x6c4] sm:$0xf]
    %v1070 = vld [vmem:[#allocation14 + $0x6c8] sm:$0xf]
    %v1071 = vld [vmem:[#allocation14 + $0x6cc] sm:$0xf]
    %v1072 = vld [vmem:[#allocation14 + $0x6d0] sm:$0xf]
    %v1073 = vld [vmem:[#allocation14 + $0x6d4] sm:$0xf]
    %v1074 = vld [vmem:[#allocation14 + $0x6d8] sm:$0xf]
    %v1075 = vld [vmem:[#allocation14 + $0x6dc] sm:$0xf]
    %v1076 = vld [vmem:[#allocation14 + $0x6e0] sm:$0xf]
    %v1077 = vld [vmem:[#allocation14 + $0x6e4] sm:$0xf]
    %v1078 = vld [vmem:[#allocation14 + $0x6e8] sm:$0xf]
    %v1079 = vld [vmem:[#allocation14 + $0x6ec] sm:$0xf]
    %v1080 = vld [vmem:[#allocation14 + $0x6f0] sm:$0xf]
    %v1081 = vld [vmem:[#allocation14 + $0x6f4] sm:$0xf]
    %v1082 = vld [vmem:[#allocation14 + $0x6f8] sm:$0xf]
    %v1083 = vld [vmem:[#allocation14 + $0x6fc] sm:$0xf]
    %v1084 = vld [vmem:[#allocation14 + $0x700] sm:$0xf]
    %v1085 = vld [vmem:[#allocation14 + $0x704] sm:$0xf]
    %v1086 = vld [vmem:[#allocation14 + $0x708] sm:$0xf]
    %v1087 = vld [vmem:[#allocation14 + $0x70c] sm:$0xf]
    %v1088 = vld [vmem:[#allocation14 + $0x710] sm:$0xf]
    %v1089 = vld [vmem:[#allocation14 + $0x714] sm:$0xf]
    %v1090 = vld [vmem:[#allocation14 + $0x718] sm:$0xf]
    %v1091 = vld [vmem:[#allocation14 + $0x71c] sm:$0xf]
    %v1092 = vld [vmem:[#allocation14 + $0x720] sm:$0xf]
    %v1093 = vld [vmem:[#allocation14 + $0x724] sm:$0xf]
    %v1094 = vld [vmem:[#allocation14 + $0x728] sm:$0xf]
    %v1095 = vld [vmem:[#allocation14 + $0x72c] sm:$0xf]
    %v1096 = vld [vmem:[#allocation14 + $0x730] sm:$0xf]
    %v1097 = vld [vmem:[#allocation14 + $0x734] sm:$0xf]
    %v1098 = vld [vmem:[#allocation14 + $0x738] sm:$0xf]
    %v1099 = vld [vmem:[#allocation14 + $0x73c] sm:$0xf]
    %v1100 = vld [vmem:[#allocation14 + $0x740] sm:$0xf]
    %v1101 = vld [vmem:[#allocation14 + $0x744] sm:$0xf]
    %v1102 = vld [vmem:[#allocation14 + $0x748] sm:$0xf]
    %v1103 = vld [vmem:[#allocation14 + $0x74c] sm:$0xf]
    %v1104 = vld [vmem:[#allocation14 + $0x750] sm:$0xf]
    %v1105 = vld [vmem:[#allocation14 + $0x754] sm:$0xf]
    %v1106 = vld [vmem:[#allocation14 + $0x758] sm:$0xf]
    %v1107 = vld [vmem:[#allocation14 + $0x75c] sm:$0xf]
    %v1108 = vld [vmem:[#allocation14 + $0x760] sm:$0xf]
    %v1109 = vld [vmem:[#allocation14 + $0x764] sm:$0xf]
    %v1110 = vld [vmem:[#allocation14 + $0x768] sm:$0xf]
    %v1111 = vld [vmem:[#allocation14 + $0x76c] sm:$0xf]
    %v1112 = vld [vmem:[#allocation14 + $0x770] sm:$0xf]
    %v1113 = vld [vmem:[#allocation14 + $0x774] sm:$0xf]
    %v1114 = vld [vmem:[#allocation14 + $0x778] sm:$0xf]
    %v1115 = vld [vmem:[#allocation14 + $0x77c] sm:$0xf]
    %v1116 = vld [vmem:[#allocation14 + $0x780] sm:$0xf]
    %v1117 = vld [vmem:[#allocation14 + $0x784] sm:$0xf]
    %v1118 = vld [vmem:[#allocation14 + $0x788] sm:$0xf]
    %v1119 = vld [vmem:[#allocation14 + $0x78c] sm:$0xf]
    %v1120 = vld [vmem:[#allocation14 + $0x790] sm:$0xf]
    %v1121 = vld [vmem:[#allocation14 + $0x794] sm:$0xf]
    %v1122 = vld [vmem:[#allocation14 + $0x798] sm:$0xf]
    %v1123 = vld [vmem:[#allocation14 + $0x79c] sm:$0xf]
    %v1124 = vld [vmem:[#allocation14 + $0x7a0] sm:$0xf]
    %v1125 = vld [vmem:[#allocation14 + $0x7a4] sm:$0xf]
    %v1126 = vld [vmem:[#allocation14 + $0x7a8] sm:$0xf]
    %v1127 = vld [vmem:[#allocation14 + $0x7ac] sm:$0xf]
    %v1128 = vld [vmem:[#allocation14 + $0x7b0] sm:$0xf]
    %v1129 = vld [vmem:[#allocation14 + $0x7b4] sm:$0xf]
    %v1130 = vld [vmem:[#allocation14 + $0x7b8] sm:$0xf]
    %v1131 = vld [vmem:[#allocation14 + $0x7bc] sm:$0xf]
    %v1132 = vld [vmem:[#allocation14 + $0x7c0] sm:$0xf]
    %v1133 = vld [vmem:[#allocation14 + $0x7c4] sm:$0xf]
    %v1134 = vld [vmem:[#allocation14 + $0x7c8] sm:$0xf]
    %v1135 = vld [vmem:[#allocation14 + $0x7cc] sm:$0xf]
    %v1136 = vld [vmem:[#allocation14 + $0x7d0] sm:$0xf]
    %v1137 = vld [vmem:[#allocation14 + $0x7d4] sm:$0xf]
    %v1138 = vld [vmem:[#allocation14 + $0x7d8] sm:$0xf]
    %v1139 = vld [vmem:[#allocation14 + $0x7dc] sm:$0xf]
    %v1140 = vld [vmem:[#allocation14 + $0x7e0] sm:$0xf]
    %v1141 = vld [vmem:[#allocation14 + $0x7e4] sm:$0xf]
    %v1142 = vld [vmem:[#allocation14 + $0x7e8] sm:$0xf]
    %v1143 = vld [vmem:[#allocation14 + $0x7ec] sm:$0xf]
    %v1144 = vld [vmem:[#allocation14 + $0x7f0] sm:$0xf]
    %v1145 = vld [vmem:[#allocation14 + $0x7f4] sm:$0xf]
    %v1146 = vld [vmem:[#allocation14 + $0x7f8] sm:$0xf]
    %v1147 = vld [vmem:[#allocation14 + $0x7fc] sm:$0xf]
    %v1148 = vld [vmem:[%s7] sm:$0x1]
    %v1150 = vlaneseq
    %v1151 = vshrl.u32 %v1150, 7
    %v1152 = vsub.s32 0, %v1151
    %v1153 = vrot.slane %v1148, %v1152
    %v1171 = vunpack.c.l.b16 %v620
    %v1172 = vunpack.c.h.b16 %v620
    %v1173 = vunpack.c.l.b16 %v621
    %v1174 = vunpack.c.h.b16 %v621
    %v1175 = vunpack.c.l.b16 %v622
    %v1176 = vunpack.c.h.b16 %v622
    %v1177 = vunpack.c.l.b16 %v623
    %v1178 = vunpack.c.h.b16 %v623
    %v1179 = vunpack.c.l.b16 %v624
    %v1180 = vunpack.c.h.b16 %v624
    %v1181 = vunpack.c.l.b16 %v625
    %v1182 = vunpack.c.h.b16 %v625
    %v1183 = vunpack.c.l.b16 %v626
    %v1184 = vunpack.c.h.b16 %v626
    %v1185 = vunpack.c.l.b16 %v627
    %v1186 = vunpack.c.h.b16 %v627
    %v1187 = vunpack.c.l.b16 %v628
    %v1188 = vunpack.c.h.b16 %v628
    %v1189 = vunpack.c.l.b16 %v629
    %v1190 = vunpack.c.h.b16 %v629
    %v1191 = vunpack.c.l.b16 %v630
    %v1192 = vunpack.c.h.b16 %v630
    %v1193 = vunpack.c.l.b16 %v631
    %v1194 = vunpack.c.h.b16 %v631
    %v1195 = vunpack.c.l.b16 %v632
    %v1196 = vunpack.c.h.b16 %v632
    %v1197 = vunpack.c.l.b16 %v633
    %v1198 = vunpack.c.h.b16 %v633
    %v1199 = vunpack.c.l.b16 %v634
    %v1200 = vunpack.c.h.b16 %v634
    %v1201 = vunpack.c.l.b16 %v635
    %v1202 = vunpack.c.h.b16 %v635
    %v1203 = vpack.c.b16 %v1171, %v1171
    %v1204 = vpack.c.b16 %v1172, %v1172
    %v1205 = vpack.c.b16 %v1173, %v1173
    %v1206 = vpack.c.b16 %v1174, %v1174
    %v1207 = vpack.c.b16 %v1175, %v1175
    %v1208 = vpack.c.b16 %v1176, %v1176
    %v1209 = vpack.c.b16 %v1177, %v1177
    %v1210 = vpack.c.b16 %v1178, %v1178
    %v1211 = vpack.c.b16 %v1179, %v1179
    %v1212 = vpack.c.b16 %v1180, %v1180
    %v1213 = vpack.c.b16 %v1181, %v1181
    %v1214 = vpack.c.b16 %v1182, %v1182
    %v1215 = vpack.c.b16 %v1183, %v1183
    %v1216 = vpack.c.b16 %v1184, %v1184
    %v1217 = vpack.c.b16 %v1185, %v1185
    %v1218 = vpack.c.b16 %v1186, %v1186
    %v1219 = vpack.c.b16 %v1187, %v1187
    %v1220 = vpack.c.b16 %v1188, %v1188
    %v1221 = vpack.c.b16 %v1189, %v1189
    %v1222 = vpack.c.b16 %v1190, %v1190
    %v1223 = vpack.c.b16 %v1191, %v1191
    %v1224 = vpack.c.b16 %v1192, %v1192
    %v1225 = vpack.c.b16 %v1193, %v1193
    %v1226 = vpack.c.b16 %v1194, %v1194
    %v1227 = vpack.c.b16 %v1195, %v1195
    %v1228 = vpack.c.b16 %v1196, %v1196
    %v1229 = vpack.c.b16 %v1197, %v1197
    %v1230 = vpack.c.b16 %v1198, %v1198
    %v1231 = vpack.c.b16 %v1199, %v1199
    %v1232 = vpack.c.b16 %v1200, %v1200
    %v1233 = vpack.c.b16 %v1201, %v1201
    %v1234 = vpack.c.b16 %v1202, %v1202
    %v1779 = vunpack.c.l.b16 %v636
    %v1780 = vunpack.c.l.b16 %v637
    %v1781 = vunpack.c.l.b16 %v638
    %v1782 = vunpack.c.l.b16 %v639
    %v1783 = vunpack.c.l.b16 %v640
    %v1784 = vunpack.c.l.b16 %v641
    %v1785 = vunpack.c.l.b16 %v642
    %v1786 = vunpack.c.l.b16 %v643
    %v1787 = vunpack.c.l.b16 %v644
    %v1788 = vunpack.c.l.b16 %v645
    %v1789 = vunpack.c.l.b16 %v646
    %v1790 = vunpack.c.l.b16 %v647
    %v1791 = vunpack.c.l.b16 %v648
    %v1792 = vunpack.c.l.b16 %v649
    %v1793 = vunpack.c.l.b16 %v650
    %v1794 = vunpack.c.l.b16 %v651
    %v1795 = vunpack.c.l.b16 %v652
    %v1796 = vunpack.c.l.b16 %v653
    %v1797 = vunpack.c.l.b16 %v654
    %v1798 = vunpack.c.l.b16 %v655
    %v1799 = vunpack.c.l.b16 %v656
    %v1800 = vunpack.c.l.b16 %v657
    %v1801 = vunpack.c.l.b16 %v658
    %v1802 = vunpack.c.l.b16 %v659
    %v1803 = vunpack.c.l.b16 %v660
    %v1804 = vunpack.c.l.b16 %v661
    %v1805 = vunpack.c.l.b16 %v662
    %v1806 = vunpack.c.l.b16 %v663
    %v1807 = vunpack.c.l.b16 %v664
    %v1808 = vunpack.c.l.b16 %v665
    %v1809 = vunpack.c.l.b16 %v666
    %v1810 = vunpack.c.l.b16 %v667
    %v1811 = vunpack.c.l.b16 %v668
    %v1812 = vunpack.c.l.b16 %v669
    %v1813 = vunpack.c.l.b16 %v670
    %v1814 = vunpack.c.l.b16 %v671
    %v1815 = vunpack.c.l.b16 %v672
    %v1816 = vunpack.c.l.b16 %v673
    %v1817 = vunpack.c.l.b16 %v674
    %v1818 = vunpack.c.l.b16 %v675
    %v1819 = vunpack.c.l.b16 %v676
    %v1820 = vunpack.c.l.b16 %v677
    %v1821 = vunpack.c.l.b16 %v678
    %v1822 = vunpack.c.l.b16 %v679
    %v1823 = vunpack.c.l.b16 %v680
    %v1824 = vunpack.c.l.b16 %v681
    %v1825 = vunpack.c.l.b16 %v682
    %v1826 = vunpack.c.l.b16 %v683
    %v1827 = vunpack.c.l.b16 %v684
    %v1828 = vunpack.c.l.b16 %v685
    %v1829 = vunpack.c.l.b16 %v686
    %v1830 = vunpack.c.l.b16 %v687
    %v1831 = vunpack.c.l.b16 %v688
    %v1832 = vunpack.c.l.b16 %v689
    %v1833 = vunpack.c.l.b16 %v690
    %v1834 = vunpack.c.l.b16 %v691
    %v1835 = vunpack.c.l.b16 %v692
    %v1836 = vunpack.c.l.b16 %v693
    %v1837 = vunpack.c.l.b16 %v694
    %v1838 = vunpack.c.l.b16 %v695
    %v1839 = vunpack.c.l.b16 %v696
    %v1840 = vunpack.c.l.b16 %v697
    %v1841 = vunpack.c.l.b16 %v698
    %v1842 = vunpack.c.l.b16 %v699
    %v1843 = vunpack.c.l.b16 %v700
    %v1844 = vunpack.c.l.b16 %v701
    %v1845 = vunpack.c.l.b16 %v702
    %v1846 = vunpack.c.l.b16 %v703
    %v1847 = vunpack.c.l.b16 %v704
    %v1848 = vunpack.c.l.b16 %v705
    %v1849 = vunpack.c.l.b16 %v706
    %v1850 = vunpack.c.l.b16 %v707
    %v1851 = vunpack.c.l.b16 %v708
    %v1852 = vunpack.c.l.b16 %v709
    %v1853 = vunpack.c.l.b16 %v710
    %v1854 = vunpack.c.l.b16 %v711
    %v1855 = vunpack.c.l.b16 %v712
    %v1856 = vunpack.c.l.b16 %v713
    %v1857 = vunpack.c.l.b16 %v714
    %v1858 = vunpack.c.l.b16 %v715
    %v1859 = vunpack.c.l.b16 %v716
    %v1860 = vunpack.c.l.b16 %v717
    %v1861 = vunpack.c.l.b16 %v718
    %v1862 = vunpack.c.l.b16 %v719
    %v1863 = vunpack.c.l.b16 %v720
    %v1864 = vunpack.c.l.b16 %v721
    %v1865 = vunpack.c.l.b16 %v722
    %v1866 = vunpack.c.l.b16 %v723
    %v1867 = vunpack.c.l.b16 %v724
    %v1868 = vunpack.c.l.b16 %v725
    %v1869 = vunpack.c.l.b16 %v726
    %v1870 = vunpack.c.l.b16 %v727
    %v1871 = vunpack.c.l.b16 %v728
    %v1872 = vunpack.c.l.b16 %v729
    %v1873 = vunpack.c.l.b16 %v730
    %v1874 = vunpack.c.l.b16 %v731
    %v1875 = vunpack.c.l.b16 %v732
    %v1876 = vunpack.c.l.b16 %v733
    %v1877 = vunpack.c.l.b16 %v734
    %v1878 = vunpack.c.l.b16 %v735
    %v1879 = vunpack.c.l.b16 %v736
    %v1880 = vunpack.c.l.b16 %v737
    %v1881 = vunpack.c.l.b16 %v738
    %v1882 = vunpack.c.l.b16 %v739
    %v1883 = vunpack.c.l.b16 %v740
    %v1884 = vunpack.c.l.b16 %v741
    %v1885 = vunpack.c.l.b16 %v742
    %v1886 = vunpack.c.l.b16 %v743
    %v1887 = vunpack.c.l.b16 %v744
    %v1888 = vunpack.c.l.b16 %v745
    %v1889 = vunpack.c.l.b16 %v746
    %v1890 = vunpack.c.l.b16 %v747
    %v1891 = vunpack.c.l.b16 %v748
    %v1892 = vunpack.c.l.b16 %v749
    %v1893 = vunpack.c.l.b16 %v750
    %v1894 = vunpack.c.l.b16 %v751
    %v1895 = vunpack.c.l.b16 %v752
    %v1896 = vunpack.c.l.b16 %v753
    %v1897 = vunpack.c.l.b16 %v754
    %v1898 = vunpack.c.l.b16 %v755
    %v1899 = vunpack.c.l.b16 %v756
    %v1900 = vunpack.c.l.b16 %v757
    %v1901 = vunpack.c.l.b16 %v758
    %v1902 = vunpack.c.l.b16 %v759
    %v1903 = vunpack.c.l.b16 %v760
    %v1904 = vunpack.c.l.b16 %v761
    %v1905 = vunpack.c.l.b16 %v762
    %v1906 = vunpack.c.l.b16 %v763
    %v1907 = vunpack.c.l.b16 %v764
    %v1908 = vunpack.c.l.b16 %v765
    %v1909 = vunpack.c.l.b16 %v766
    %v1910 = vunpack.c.l.b16 %v767
    %v1911 = vunpack.c.l.b16 %v768
    %v1912 = vunpack.c.l.b16 %v769
    %v1913 = vunpack.c.l.b16 %v770
    %v1914 = vunpack.c.l.b16 %v771
    %v1915 = vunpack.c.l.b16 %v772
    %v1916 = vunpack.c.l.b16 %v773
    %v1917 = vunpack.c.l.b16 %v774
    %v1918 = vunpack.c.l.b16 %v775
    %v1919 = vunpack.c.l.b16 %v776
    %v1920 = vunpack.c.l.b16 %v777
    %v1921 = vunpack.c.l.b16 %v778
    %v1922 = vunpack.c.l.b16 %v779
    %v1923 = vunpack.c.l.b16 %v780
    %v1924 = vunpack.c.l.b16 %v781
    %v1925 = vunpack.c.l.b16 %v782
    %v1926 = vunpack.c.l.b16 %v783
    %v1927 = vunpack.c.l.b16 %v784
    %v1928 = vunpack.c.l.b16 %v785
    %v1929 = vunpack.c.l.b16 %v786
    %v1930 = vunpack.c.l.b16 %v787
    %v1931 = vunpack.c.l.b16 %v788
    %v1932 = vunpack.c.l.b16 %v789
    %v1933 = vunpack.c.l.b16 %v790
    %v1934 = vunpack.c.l.b16 %v791
    %v1935 = vunpack.c.l.b16 %v792
    %v1936 = vunpack.c.l.b16 %v793
    %v1937 = vunpack.c.l.b16 %v794
    %v1938 = vunpack.c.l.b16 %v795
    %v1939 = vunpack.c.l.b16 %v796
    %v1940 = vunpack.c.l.b16 %v797
    %v1941 = vunpack.c.l.b16 %v798
    %v1942 = vunpack.c.l.b16 %v799
    %v1943 = vunpack.c.l.b16 %v800
    %v1944 = vunpack.c.l.b16 %v801
    %v1945 = vunpack.c.l.b16 %v802
    %v1946 = vunpack.c.l.b16 %v803
    %v1947 = vunpack.c.l.b16 %v804
    %v1948 = vunpack.c.l.b16 %v805
    %v1949 = vunpack.c.l.b16 %v806
    %v1950 = vunpack.c.l.b16 %v807
    %v1951 = vunpack.c.l.b16 %v808
    %v1952 = vunpack.c.l.b16 %v809
    %v1953 = vunpack.c.l.b16 %v810
    %v1954 = vunpack.c.l.b16 %v811
    %v1955 = vunpack.c.l.b16 %v812
    %v1956 = vunpack.c.l.b16 %v813
    %v1957 = vunpack.c.l.b16 %v814
    %v1958 = vunpack.c.l.b16 %v815
    %v1959 = vunpack.c.l.b16 %v816
    %v1960 = vunpack.c.l.b16 %v817
    %v1961 = vunpack.c.l.b16 %v818
    %v1962 = vunpack.c.l.b16 %v819
    %v1963 = vunpack.c.l.b16 %v820
    %v1964 = vunpack.c.l.b16 %v821
    %v1965 = vunpack.c.l.b16 %v822
    %v1966 = vunpack.c.l.b16 %v823
    %v1967 = vunpack.c.l.b16 %v824
    %v1968 = vunpack.c.l.b16 %v825
    %v1969 = vunpack.c.l.b16 %v826
    %v1970 = vunpack.c.l.b16 %v827
    %v1971 = vunpack.c.l.b16 %v828
    %v1972 = vunpack.c.l.b16 %v829
    %v1973 = vunpack.c.l.b16 %v830
    %v1974 = vunpack.c.l.b16 %v831
    %v1975 = vunpack.c.l.b16 %v832
    %v1976 = vunpack.c.l.b16 %v833
    %v1977 = vunpack.c.l.b16 %v834
    %v1978 = vunpack.c.l.b16 %v835
    %v1979 = vunpack.c.l.b16 %v836
    %v1980 = vunpack.c.l.b16 %v837
    %v1981 = vunpack.c.l.b16 %v838
    %v1982 = vunpack.c.l.b16 %v839
    %v1983 = vunpack.c.l.b16 %v840
    %v1984 = vunpack.c.l.b16 %v841
    %v1985 = vunpack.c.l.b16 %v842
    %v1986 = vunpack.c.l.b16 %v843
    %v1987 = vunpack.c.l.b16 %v844
    %v1988 = vunpack.c.l.b16 %v845
    %v1989 = vunpack.c.l.b16 %v846
    %v1990 = vunpack.c.l.b16 %v847
    %v1991 = vunpack.c.l.b16 %v848
    %v1992 = vunpack.c.l.b16 %v849
    %v1993 = vunpack.c.l.b16 %v850
    %v1994 = vunpack.c.l.b16 %v851
    %v1995 = vunpack.c.l.b16 %v852
    %v1996 = vunpack.c.l.b16 %v853
    %v1997 = vunpack.c.l.b16 %v854
    %v1998 = vunpack.c.l.b16 %v855
    %v1999 = vunpack.c.l.b16 %v856
    %v2000 = vunpack.c.l.b16 %v857
    %v2001 = vunpack.c.l.b16 %v858
    %v2002 = vunpack.c.l.b16 %v859
    %v2003 = vunpack.c.l.b16 %v860
    %v2004 = vunpack.c.l.b16 %v861
    %v2005 = vunpack.c.l.b16 %v862
    %v2006 = vunpack.c.l.b16 %v863
    %v2007 = vunpack.c.l.b16 %v864
    %v2008 = vunpack.c.l.b16 %v865
    %v2009 = vunpack.c.l.b16 %v866
    %v2010 = vunpack.c.l.b16 %v867
    %v2011 = vunpack.c.l.b16 %v868
    %v2012 = vunpack.c.l.b16 %v869
    %v2013 = vunpack.c.l.b16 %v870
    %v2014 = vunpack.c.l.b16 %v871
    %v2015 = vunpack.c.l.b16 %v872
    %v2016 = vunpack.c.l.b16 %v873
    %v2017 = vunpack.c.l.b16 %v874
    %v2018 = vunpack.c.l.b16 %v875
    %v2019 = vunpack.c.l.b16 %v876
    %v2020 = vunpack.c.l.b16 %v877
    %v2021 = vunpack.c.l.b16 %v878
    %v2022 = vunpack.c.l.b16 %v879
    %v2023 = vunpack.c.l.b16 %v880
    %v2024 = vunpack.c.l.b16 %v881
    %v2025 = vunpack.c.l.b16 %v882
    %v2026 = vunpack.c.l.b16 %v883
    %v2027 = vunpack.c.l.b16 %v884
    %v2028 = vunpack.c.l.b16 %v885
    %v2029 = vunpack.c.l.b16 %v886
    %v2030 = vunpack.c.l.b16 %v887
    %v2031 = vunpack.c.l.b16 %v888
    %v2032 = vunpack.c.l.b16 %v889
    %v2033 = vunpack.c.l.b16 %v890
    %v2034 = vunpack.c.l.b16 %v891
    %v2035 = vunpack.c.l.b16 %v892
    %v2036 = vunpack.c.l.b16 %v893
    %v2037 = vunpack.c.l.b16 %v894
    %v2038 = vunpack.c.l.b16 %v895
    %v2039 = vunpack.c.l.b16 %v896
    %v2040 = vunpack.c.l.b16 %v897
    %v2041 = vunpack.c.l.b16 %v898
    %v2042 = vunpack.c.l.b16 %v899
    %v2043 = vunpack.c.l.b16 %v900
    %v2044 = vunpack.c.l.b16 %v901
    %v2045 = vunpack.c.l.b16 %v902
    %v2046 = vunpack.c.l.b16 %v903
    %v2047 = vunpack.c.l.b16 %v904
    %v2048 = vunpack.c.l.b16 %v905
    %v2049 = vunpack.c.l.b16 %v906
    %v2050 = vunpack.c.l.b16 %v907
    %v2051 = vunpack.c.l.b16 %v908
    %v2052 = vunpack.c.l.b16 %v909
    %v2053 = vunpack.c.l.b16 %v910
    %v2054 = vunpack.c.l.b16 %v911
    %v2055 = vunpack.c.l.b16 %v912
    %v2056 = vunpack.c.l.b16 %v913
    %v2057 = vunpack.c.l.b16 %v914
    %v2058 = vunpack.c.l.b16 %v915
    %v2059 = vunpack.c.l.b16 %v916
    %v2060 = vunpack.c.l.b16 %v917
    %v2061 = vunpack.c.l.b16 %v918
    %v2062 = vunpack.c.l.b16 %v919
    %v2063 = vunpack.c.l.b16 %v920
    %v2064 = vunpack.c.l.b16 %v921
    %v2065 = vunpack.c.l.b16 %v922
    %v2066 = vunpack.c.l.b16 %v923
    %v2067 = vunpack.c.l.b16 %v924
    %v2068 = vunpack.c.l.b16 %v925
    %v2069 = vunpack.c.l.b16 %v926
    %v2070 = vunpack.c.l.b16 %v927
    %v2071 = vunpack.c.l.b16 %v928
    %v2072 = vunpack.c.l.b16 %v929
    %v2073 = vunpack.c.l.b16 %v930
    %v2074 = vunpack.c.l.b16 %v931
    %v2075 = vunpack.c.l.b16 %v932
    %v2076 = vunpack.c.l.b16 %v933
    %v2077 = vunpack.c.l.b16 %v934
    %v2078 = vunpack.c.l.b16 %v935
    %v2079 = vunpack.c.l.b16 %v936
    %v2080 = vunpack.c.l.b16 %v937
    %v2081 = vunpack.c.l.b16 %v938
    %v2082 = vunpack.c.l.b16 %v939
    %v2083 = vunpack.c.l.b16 %v940
    %v2084 = vunpack.c.l.b16 %v941
    %v2085 = vunpack.c.l.b16 %v942
    %v2086 = vunpack.c.l.b16 %v943
    %v2087 = vunpack.c.l.b16 %v944
    %v2088 = vunpack.c.l.b16 %v945
    %v2089 = vunpack.c.l.b16 %v946
    %v2090 = vunpack.c.l.b16 %v947
    %v2091 = vunpack.c.l.b16 %v948
    %v2092 = vunpack.c.l.b16 %v949
    %v2093 = vunpack.c.l.b16 %v950
    %v2094 = vunpack.c.l.b16 %v951
    %v2095 = vunpack.c.l.b16 %v952
    %v2096 = vunpack.c.l.b16 %v953
    %v2097 = vunpack.c.l.b16 %v954
    %v2098 = vunpack.c.l.b16 %v955
    %v2099 = vunpack.c.l.b16 %v956
    %v2100 = vunpack.c.l.b16 %v957
    %v2101 = vunpack.c.l.b16 %v958
    %v2102 = vunpack.c.l.b16 %v959
    %v2103 = vunpack.c.l.b16 %v960
    %v2104 = vunpack.c.l.b16 %v961
    %v2105 = vunpack.c.l.b16 %v962
    %v2106 = vunpack.c.l.b16 %v963
    %v2107 = vunpack.c.l.b16 %v964
    %v2108 = vunpack.c.l.b16 %v965
    %v2109 = vunpack.c.l.b16 %v966
    %v2110 = vunpack.c.l.b16 %v967
    %v2111 = vunpack.c.l.b16 %v968
    %v2112 = vunpack.c.l.b16 %v969
    %v2113 = vunpack.c.l.b16 %v970
    %v2114 = vunpack.c.l.b16 %v971
    %v2115 = vunpack.c.l.b16 %v972
    %v2116 = vunpack.c.l.b16 %v973
    %v2117 = vunpack.c.l.b16 %v974
    %v2118 = vunpack.c.l.b16 %v975
    %v2119 = vunpack.c.l.b16 %v976
    %v2120 = vunpack.c.l.b16 %v977
    %v2121 = vunpack.c.l.b16 %v978
    %v2122 = vunpack.c.l.b16 %v979
    %v2123 = vunpack.c.l.b16 %v980
    %v2124 = vunpack.c.l.b16 %v981
    %v2125 = vunpack.c.l.b16 %v982
    %v2126 = vunpack.c.l.b16 %v983
    %v2127 = vunpack.c.l.b16 %v984
    %v2128 = vunpack.c.l.b16 %v985
    %v2129 = vunpack.c.l.b16 %v986
    %v2130 = vunpack.c.l.b16 %v987
    %v2131 = vunpack.c.l.b16 %v988
    %v2132 = vunpack.c.l.b16 %v989
    %v2133 = vunpack.c.l.b16 %v990
    %v2134 = vunpack.c.l.b16 %v991
    %v2135 = vunpack.c.l.b16 %v992
    %v2136 = vunpack.c.l.b16 %v993
    %v2137 = vunpack.c.l.b16 %v994
    %v2138 = vunpack.c.l.b16 %v995
    %v2139 = vunpack.c.l.b16 %v996
    %v2140 = vunpack.c.l.b16 %v997
    %v2141 = vunpack.c.l.b16 %v998
    %v2142 = vunpack.c.l.b16 %v999
    %v2143 = vunpack.c.l.b16 %v1000
    %v2144 = vunpack.c.l.b16 %v1001
    %v2145 = vunpack.c.l.b16 %v1002
    %v2146 = vunpack.c.l.b16 %v1003
    %v2147 = vunpack.c.l.b16 %v1004
    %v2148 = vunpack.c.l.b16 %v1005
    %v2149 = vunpack.c.l.b16 %v1006
    %v2150 = vunpack.c.l.b16 %v1007
    %v2151 = vunpack.c.l.b16 %v1008
    %v2152 = vunpack.c.l.b16 %v1009
    %v2153 = vunpack.c.l.b16 %v1010
    %v2154 = vunpack.c.l.b16 %v1011
    %v2155 = vunpack.c.l.b16 %v1012
    %v2156 = vunpack.c.l.b16 %v1013
    %v2157 = vunpack.c.l.b16 %v1014
    %v2158 = vunpack.c.l.b16 %v1015
    %v2159 = vunpack.c.l.b16 %v1016
    %v2160 = vunpack.c.l.b16 %v1017
    %v2161 = vunpack.c.l.b16 %v1018
    %v2162 = vunpack.c.l.b16 %v1019
    %v2163 = vunpack.c.l.b16 %v1020
    %v2164 = vunpack.c.l.b16 %v1021
    %v2165 = vunpack.c.l.b16 %v1022
    %v2166 = vunpack.c.l.b16 %v1023
    %v2167 = vunpack.c.l.b16 %v1024
    %v2168 = vunpack.c.l.b16 %v1025
    %v2169 = vunpack.c.l.b16 %v1026
    %v2170 = vunpack.c.l.b16 %v1027
    %v2171 = vunpack.c.l.b16 %v1028
    %v2172 = vunpack.c.l.b16 %v1029
    %v2173 = vunpack.c.l.b16 %v1030
    %v2174 = vunpack.c.l.b16 %v1031
    %v2175 = vunpack.c.l.b16 %v1032
    %v2176 = vunpack.c.l.b16 %v1033
    %v2177 = vunpack.c.l.b16 %v1034
    %v2178 = vunpack.c.l.b16 %v1035
    %v2179 = vunpack.c.l.b16 %v1036
    %v2180 = vunpack.c.l.b16 %v1037
    %v2181 = vunpack.c.l.b16 %v1038
    %v2182 = vunpack.c.l.b16 %v1039
    %v2183 = vunpack.c.l.b16 %v1040
    %v2184 = vunpack.c.l.b16 %v1041
    %v2185 = vunpack.c.l.b16 %v1042
    %v2186 = vunpack.c.l.b16 %v1043
    %v2187 = vunpack.c.l.b16 %v1044
    %v2188 = vunpack.c.l.b16 %v1045
    %v2189 = vunpack.c.l.b16 %v1046
    %v2190 = vunpack.c.l.b16 %v1047
    %v2191 = vunpack.c.l.b16 %v1048
    %v2192 = vunpack.c.l.b16 %v1049
    %v2193 = vunpack.c.l.b16 %v1050
    %v2194 = vunpack.c.l.b16 %v1051
    %v2195 = vunpack.c.l.b16 %v1052
    %v2196 = vunpack.c.l.b16 %v1053
    %v2197 = vunpack.c.l.b16 %v1054
    %v2198 = vunpack.c.l.b16 %v1055
    %v2199 = vunpack.c.l.b16 %v1056
    %v2200 = vunpack.c.l.b16 %v1057
    %v2201 = vunpack.c.l.b16 %v1058
    %v2202 = vunpack.c.l.b16 %v1059
    %v2203 = vunpack.c.l.b16 %v1060
    %v2204 = vunpack.c.l.b16 %v1061
    %v2205 = vunpack.c.l.b16 %v1062
    %v2206 = vunpack.c.l.b16 %v1063
    %v2207 = vunpack.c.l.b16 %v1064
    %v2208 = vunpack.c.l.b16 %v1065
    %v2209 = vunpack.c.l.b16 %v1066
    %v2210 = vunpack.c.l.b16 %v1067
    %v2211 = vunpack.c.l.b16 %v1068
    %v2212 = vunpack.c.l.b16 %v1069
    %v2213 = vunpack.c.l.b16 %v1070
    %v2214 = vunpack.c.l.b16 %v1071
    %v2215 = vunpack.c.l.b16 %v1072
    %v2216 = vunpack.c.l.b16 %v1073
    %v2217 = vunpack.c.l.b16 %v1074
    %v2218 = vunpack.c.l.b16 %v1075
    %v2219 = vunpack.c.l.b16 %v1076
    %v2220 = vunpack.c.l.b16 %v1077
    %v2221 = vunpack.c.l.b16 %v1078
    %v2222 = vunpack.c.l.b16 %v1079
    %v2223 = vunpack.c.l.b16 %v1080
    %v2224 = vunpack.c.l.b16 %v1081
    %v2225 = vunpack.c.l.b16 %v1082
    %v2226 = vunpack.c.l.b16 %v1083
    %v2227 = vunpack.c.l.b16 %v1084
    %v2228 = vunpack.c.l.b16 %v1085
    %v2229 = vunpack.c.l.b16 %v1086
    %v2230 = vunpack.c.l.b16 %v1087
    %v2231 = vunpack.c.l.b16 %v1088
    %v2232 = vunpack.c.l.b16 %v1089
    %v2233 = vunpack.c.l.b16 %v1090
    %v2234 = vunpack.c.l.b16 %v1091
    %v2235 = vunpack.c.l.b16 %v1092
    %v2236 = vunpack.c.l.b16 %v1093
    %v2237 = vunpack.c.l.b16 %v1094
    %v2238 = vunpack.c.l.b16 %v1095
    %v2239 = vunpack.c.l.b16 %v1096
    %v2240 = vunpack.c.l.b16 %v1097
    %v2241 = vunpack.c.l.b16 %v1098
    %v2242 = vunpack.c.l.b16 %v1099
    %v2243 = vunpack.c.l.b16 %v1100
    %v2244 = vunpack.c.l.b16 %v1101
    %v2245 = vunpack.c.l.b16 %v1102
    %v2246 = vunpack.c.l.b16 %v1103
    %v2247 = vunpack.c.l.b16 %v1104
    %v2248 = vunpack.c.l.b16 %v1105
    %v2249 = vunpack.c.l.b16 %v1106
    %v2250 = vunpack.c.l.b16 %v1107
    %v2251 = vunpack.c.l.b16 %v1108
    %v2252 = vunpack.c.l.b16 %v1109
    %v2253 = vunpack.c.l.b16 %v1110
    %v2254 = vunpack.c.l.b16 %v1111
    %v2255 = vunpack.c.l.b16 %v1112
    %v2256 = vunpack.c.l.b16 %v1113
    %v2257 = vunpack.c.l.b16 %v1114
    %v2258 = vunpack.c.l.b16 %v1115
    %v2259 = vunpack.c.l.b16 %v1116
    %v2260 = vunpack.c.l.b16 %v1117
    %v2261 = vunpack.c.l.b16 %v1118
    %v2262 = vunpack.c.l.b16 %v1119
    %v2263 = vunpack.c.l.b16 %v1120
    %v2264 = vunpack.c.l.b16 %v1121
    %v2265 = vunpack.c.l.b16 %v1122
    %v2266 = vunpack.c.l.b16 %v1123
    %v2267 = vunpack.c.l.b16 %v1124
    %v2268 = vunpack.c.l.b16 %v1125
    %v2269 = vunpack.c.l.b16 %v1126
    %v2270 = vunpack.c.l.b16 %v1127
    %v2271 = vunpack.c.l.b16 %v1128
    %v2272 = vunpack.c.l.b16 %v1129
    %v2273 = vunpack.c.l.b16 %v1130
    %v2274 = vunpack.c.l.b16 %v1131
    %v2275 = vunpack.c.l.b16 %v1132
    %v2276 = vunpack.c.l.b16 %v1133
    %v2277 = vunpack.c.l.b16 %v1134
    %v2278 = vunpack.c.l.b16 %v1135
    %v2279 = vunpack.c.l.b16 %v1136
    %v2280 = vunpack.c.l.b16 %v1137
    %v2281 = vunpack.c.l.b16 %v1138
    %v2282 = vunpack.c.l.b16 %v1139
    %v2283 = vunpack.c.l.b16 %v1140
    %v2284 = vunpack.c.l.b16 %v1141
    %v2285 = vunpack.c.l.b16 %v1142
    %v2286 = vunpack.c.l.b16 %v1143
    %v2287 = vunpack.c.l.b16 %v1144
    %v2288 = vunpack.c.l.b16 %v1145
    %v2289 = vunpack.c.l.b16 %v1146
    %v2290 = vunpack.c.l.b16 %v1147
    %v2291 = vpack.c.b16 %v1780, %v1779
    %v2292 = vpack.c.b16 %v1782, %v1781
    %v2293 = vpack.c.b16 %v1784, %v1783
    %v2294 = vpack.c.b16 %v1786, %v1785
    %v2295 = vpack.c.b16 %v1788, %v1787
    %v2296 = vpack.c.b16 %v1790, %v1789
    %v2297 = vpack.c.b16 %v1792, %v1791
    %v2298 = vpack.c.b16 %v1794, %v1793
    %v2299 = vpack.c.b16 %v1796, %v1795
    %v2300 = vpack.c.b16 %v1798, %v1797
    %v2301 = vpack.c.b16 %v1800, %v1799
    %v2302 = vpack.c.b16 %v1802, %v1801
    %v2303 = vpack.c.b16 %v1804, %v1803
    %v2304 = vpack.c.b16 %v1806, %v1805
    %v2305 = vpack.c.b16 %v1808, %v1807
    %v2306 = vpack.c.b16 %v1810, %v1809
    %v2307 = vpack.c.b16 %v1812, %v1811
    %v2308 = vpack.c.b16 %v1814, %v1813
    %v2309 = vpack.c.b16 %v1816, %v1815
    %v2310 = vpack.c.b16 %v1818, %v1817
    %v2311 = vpack.c.b16 %v1820, %v1819
    %v2312 = vpack.c.b16 %v1822, %v1821
    %v2313 = vpack.c.b16 %v1824, %v1823
    %v2314 = vpack.c.b16 %v1826, %v1825
    %v2315 = vpack.c.b16 %v1828, %v1827
    %v2316 = vpack.c.b16 %v1830, %v1829
    %v2317 = vpack.c.b16 %v1832, %v1831
    %v2318 = vpack.c.b16 %v1834, %v1833
    %v2319 = vpack.c.b16 %v1836, %v1835
    %v2320 = vpack.c.b16 %v1838, %v1837
    %v2321 = vpack.c.b16 %v1840, %v1839
    %v2322 = vpack.c.b16 %v1842, %v1841
    %v2323 = vpack.c.b16 %v1844, %v1843
    %v2324 = vpack.c.b16 %v1846, %v1845
    %v2325 = vpack.c.b16 %v1848, %v1847
    %v2326 = vpack.c.b16 %v1850, %v1849
    %v2327 = vpack.c.b16 %v1852, %v1851
    %v2328 = vpack.c.b16 %v1854, %v1853
    %v2329 = vpack.c.b16 %v1856, %v1855
    %v2330 = vpack.c.b16 %v1858, %v1857
    %v2331 = vpack.c.b16 %v1860, %v1859
    %v2332 = vpack.c.b16 %v1862, %v1861
    %v2333 = vpack.c.b16 %v1864, %v1863
    %v2334 = vpack.c.b16 %v1866, %v1865
    %v2335 = vpack.c.b16 %v1868, %v1867
    %v2336 = vpack.c.b16 %v1870, %v1869
    %v2337 = vpack.c.b16 %v1872, %v1871
    %v2338 = vpack.c.b16 %v1874, %v1873
    %v2339 = vpack.c.b16 %v1876, %v1875
    %v2340 = vpack.c.b16 %v1878, %v1877
    %v2341 = vpack.c.b16 %v1880, %v1879
    %v2342 = vpack.c.b16 %v1882, %v1881
    %v2343 = vpack.c.b16 %v1884, %v1883
    %v2344 = vpack.c.b16 %v1886, %v1885
    %v2345 = vpack.c.b16 %v1888, %v1887
    %v2346 = vpack.c.b16 %v1890, %v1889
    %v2347 = vpack.c.b16 %v1892, %v1891
    %v2348 = vpack.c.b16 %v1894, %v1893
    %v2349 = vpack.c.b16 %v1896, %v1895
    %v2350 = vpack.c.b16 %v1898, %v1897
    %v2351 = vpack.c.b16 %v1900, %v1899
    %v2352 = vpack.c.b16 %v1902, %v1901
    %v2353 = vpack.c.b16 %v1904, %v1903
    %v2354 = vpack.c.b16 %v1906, %v1905
    %v2355 = vpack.c.b16 %v1908, %v1907
    %v2356 = vpack.c.b16 %v1910, %v1909
    %v2357 = vpack.c.b16 %v1912, %v1911
    %v2358 = vpack.c.b16 %v1914, %v1913
    %v2359 = vpack.c.b16 %v1916, %v1915
    %v2360 = vpack.c.b16 %v1918, %v1917
    %v2361 = vpack.c.b16 %v1920, %v1919
    %v2362 = vpack.c.b16 %v1922, %v1921
    %v2363 = vpack.c.b16 %v1924, %v1923
    %v2364 = vpack.c.b16 %v1926, %v1925
    %v2365 = vpack.c.b16 %v1928, %v1927
    %v2366 = vpack.c.b16 %v1930, %v1929
    %v2367 = vpack.c.b16 %v1932, %v1931
    %v2368 = vpack.c.b16 %v1934, %v1933
    %v2369 = vpack.c.b16 %v1936, %v1935
    %v2370 = vpack.c.b16 %v1938, %v1937
    %v2371 = vpack.c.b16 %v1940, %v1939
    %v2372 = vpack.c.b16 %v1942, %v1941
    %v2373 = vpack.c.b16 %v1944, %v1943
    %v2374 = vpack.c.b16 %v1946, %v1945
    %v2375 = vpack.c.b16 %v1948, %v1947
    %v2376 = vpack.c.b16 %v1950, %v1949
    %v2377 = vpack.c.b16 %v1952, %v1951
    %v2378 = vpack.c.b16 %v1954, %v1953
    %v2379 = vpack.c.b16 %v1956, %v1955
    %v2380 = vpack.c.b16 %v1958, %v1957
    %v2381 = vpack.c.b16 %v1960, %v1959
    %v2382 = vpack.c.b16 %v1962, %v1961
    %v2383 = vpack.c.b16 %v1964, %v1963
    %v2384 = vpack.c.b16 %v1966, %v1965
    %v2385 = vpack.c.b16 %v1968, %v1967
    %v2386 = vpack.c.b16 %v1970, %v1969
    %v2387 = vpack.c.b16 %v1972, %v1971
    %v2388 = vpack.c.b16 %v1974, %v1973
    %v2389 = vpack.c.b16 %v1976, %v1975
    %v2390 = vpack.c.b16 %v1978, %v1977
    %v2391 = vpack.c.b16 %v1980, %v1979
    %v2392 = vpack.c.b16 %v1982, %v1981
    %v2393 = vpack.c.b16 %v1984, %v1983
    %v2394 = vpack.c.b16 %v1986, %v1985
    %v2395 = vpack.c.b16 %v1988, %v1987
    %v2396 = vpack.c.b16 %v1990, %v1989
    %v2397 = vpack.c.b16 %v1992, %v1991
    %v2398 = vpack.c.b16 %v1994, %v1993
    %v2399 = vpack.c.b16 %v1996, %v1995
    %v2400 = vpack.c.b16 %v1998, %v1997
    %v2401 = vpack.c.b16 %v2000, %v1999
    %v2402 = vpack.c.b16 %v2002, %v2001
    %v2403 = vpack.c.b16 %v2004, %v2003
    %v2404 = vpack.c.b16 %v2006, %v2005
    %v2405 = vpack.c.b16 %v2008, %v2007
    %v2406 = vpack.c.b16 %v2010, %v2009
    %v2407 = vpack.c.b16 %v2012, %v2011
    %v2408 = vpack.c.b16 %v2014, %v2013
    %v2409 = vpack.c.b16 %v2016, %v2015
    %v2410 = vpack.c.b16 %v2018, %v2017
    %v2411 = vpack.c.b16 %v2020, %v2019
    %v2412 = vpack.c.b16 %v2022, %v2021
    %v2413 = vpack.c.b16 %v2024, %v2023
    %v2414 = vpack.c.b16 %v2026, %v2025
    %v2415 = vpack.c.b16 %v2028, %v2027
    %v2416 = vpack.c.b16 %v2030, %v2029
    %v2417 = vpack.c.b16 %v2032, %v2031
    %v2418 = vpack.c.b16 %v2034, %v2033
    %v2419 = vpack.c.b16 %v2036, %v2035
    %v2420 = vpack.c.b16 %v2038, %v2037
    %v2421 = vpack.c.b16 %v2040, %v2039
    %v2422 = vpack.c.b16 %v2042, %v2041
    %v2423 = vpack.c.b16 %v2044, %v2043
    %v2424 = vpack.c.b16 %v2046, %v2045
    %v2425 = vpack.c.b16 %v2048, %v2047
    %v2426 = vpack.c.b16 %v2050, %v2049
    %v2427 = vpack.c.b16 %v2052, %v2051
    %v2428 = vpack.c.b16 %v2054, %v2053
    %v2429 = vpack.c.b16 %v2056, %v2055
    %v2430 = vpack.c.b16 %v2058, %v2057
    %v2431 = vpack.c.b16 %v2060, %v2059
    %v2432 = vpack.c.b16 %v2062, %v2061
    %v2433 = vpack.c.b16 %v2064, %v2063
    %v2434 = vpack.c.b16 %v2066, %v2065
    %v2435 = vpack.c.b16 %v2068, %v2067
    %v2436 = vpack.c.b16 %v2070, %v2069
    %v2437 = vpack.c.b16 %v2072, %v2071
    %v2438 = vpack.c.b16 %v2074, %v2073
    %v2439 = vpack.c.b16 %v2076, %v2075
    %v2440 = vpack.c.b16 %v2078, %v2077
    %v2441 = vpack.c.b16 %v2080, %v2079
    %v2442 = vpack.c.b16 %v2082, %v2081
    %v2443 = vpack.c.b16 %v2084, %v2083
    %v2444 = vpack.c.b16 %v2086, %v2085
    %v2445 = vpack.c.b16 %v2088, %v2087
    %v2446 = vpack.c.b16 %v2090, %v2089
    %v2447 = vpack.c.b16 %v2092, %v2091
    %v2448 = vpack.c.b16 %v2094, %v2093
    %v2449 = vpack.c.b16 %v2096, %v2095
    %v2450 = vpack.c.b16 %v2098, %v2097
    %v2451 = vpack.c.b16 %v2100, %v2099
    %v2452 = vpack.c.b16 %v2102, %v2101
    %v2453 = vpack.c.b16 %v2104, %v2103
    %v2454 = vpack.c.b16 %v2106, %v2105
    %v2455 = vpack.c.b16 %v2108, %v2107
    %v2456 = vpack.c.b16 %v2110, %v2109
    %v2457 = vpack.c.b16 %v2112, %v2111
    %v2458 = vpack.c.b16 %v2114, %v2113
    %v2459 = vpack.c.b16 %v2116, %v2115
    %v2460 = vpack.c.b16 %v2118, %v2117
    %v2461 = vpack.c.b16 %v2120, %v2119
    %v2462 = vpack.c.b16 %v2122, %v2121
    %v2463 = vpack.c.b16 %v2124, %v2123
    %v2464 = vpack.c.b16 %v2126, %v2125
    %v2465 = vpack.c.b16 %v2128, %v2127
    %v2466 = vpack.c.b16 %v2130, %v2129
    %v2467 = vpack.c.b16 %v2132, %v2131
    %v2468 = vpack.c.b16 %v2134, %v2133
    %v2469 = vpack.c.b16 %v2136, %v2135
    %v2470 = vpack.c.b16 %v2138, %v2137
    %v2471 = vpack.c.b16 %v2140, %v2139
    %v2472 = vpack.c.b16 %v2142, %v2141
    %v2473 = vpack.c.b16 %v2144, %v2143
    %v2474 = vpack.c.b16 %v2146, %v2145
    %v2475 = vpack.c.b16 %v2148, %v2147
    %v2476 = vpack.c.b16 %v2150, %v2149
    %v2477 = vpack.c.b16 %v2152, %v2151
    %v2478 = vpack.c.b16 %v2154, %v2153
    %v2479 = vpack.c.b16 %v2156, %v2155
    %v2480 = vpack.c.b16 %v2158, %v2157
    %v2481 = vpack.c.b16 %v2160, %v2159
    %v2482 = vpack.c.b16 %v2162, %v2161
    %v2483 = vpack.c.b16 %v2164, %v2163
    %v2484 = vpack.c.b16 %v2166, %v2165
    %v2485 = vpack.c.b16 %v2168, %v2167
    %v2486 = vpack.c.b16 %v2170, %v2169
    %v2487 = vpack.c.b16 %v2172, %v2171
    %v2488 = vpack.c.b16 %v2174, %v2173
    %v2489 = vpack.c.b16 %v2176, %v2175
    %v2490 = vpack.c.b16 %v2178, %v2177
    %v2491 = vpack.c.b16 %v2180, %v2179
    %v2492 = vpack.c.b16 %v2182, %v2181
    %v2493 = vpack.c.b16 %v2184, %v2183
    %v2494 = vpack.c.b16 %v2186, %v2185
    %v2495 = vpack.c.b16 %v2188, %v2187
    %v2496 = vpack.c.b16 %v2190, %v2189
    %v2497 = vpack.c.b16 %v2192, %v2191
    %v2498 = vpack.c.b16 %v2194, %v2193
    %v2499 = vpack.c.b16 %v2196, %v2195
    %v2500 = vpack.c.b16 %v2198, %v2197
    %v2501 = vpack.c.b16 %v2200, %v2199
    %v2502 = vpack.c.b16 %v2202, %v2201
    %v2503 = vpack.c.b16 %v2204, %v2203
    %v2504 = vpack.c.b16 %v2206, %v2205
    %v2505 = vpack.c.b16 %v2208, %v2207
    %v2506 = vpack.c.b16 %v2210, %v2209
    %v2507 = vpack.c.b16 %v2212, %v2211
    %v2508 = vpack.c.b16 %v2214, %v2213
    %v2509 = vpack.c.b16 %v2216, %v2215
    %v2510 = vpack.c.b16 %v2218, %v2217
    %v2511 = vpack.c.b16 %v2220, %v2219
    %v2512 = vpack.c.b16 %v2222, %v2221
    %v2513 = vpack.c.b16 %v2224, %v2223
    %v2514 = vpack.c.b16 %v2226, %v2225
    %v2515 = vpack.c.b16 %v2228, %v2227
    %v2516 = vpack.c.b16 %v2230, %v2229
    %v2517 = vpack.c.b16 %v2232, %v2231
    %v2518 = vpack.c.b16 %v2234, %v2233
    %v2519 = vpack.c.b16 %v2236, %v2235
    %v2520 = vpack.c.b16 %v2238, %v2237
    %v2521 = vpack.c.b16 %v2240, %v2239
    %v2522 = vpack.c.b16 %v2242, %v2241
    %v2523 = vpack.c.b16 %v2244, %v2243
    %v2524 = vpack.c.b16 %v2246, %v2245
    %v2525 = vpack.c.b16 %v2248, %v2247
    %v2526 = vpack.c.b16 %v2250, %v2249
    %v2527 = vpack.c.b16 %v2252, %v2251
    %v2528 = vpack.c.b16 %v2254, %v2253
    %v2529 = vpack.c.b16 %v2256, %v2255
    %v2530 = vpack.c.b16 %v2258, %v2257
    %v2531 = vpack.c.b16 %v2260, %v2259
    %v2532 = vpack.c.b16 %v2262, %v2261
    %v2533 = vpack.c.b16 %v2264, %v2263
    %v2534 = vpack.c.b16 %v2266, %v2265
    %v2535 = vpack.c.b16 %v2268, %v2267
    %v2536 = vpack.c.b16 %v2270, %v2269
    %v2537 = vpack.c.b16 %v2272, %v2271
    %v2538 = vpack.c.b16 %v2274, %v2273
    %v2539 = vpack.c.b16 %v2276, %v2275
    %v2540 = vpack.c.b16 %v2278, %v2277
    %v2541 = vpack.c.b16 %v2280, %v2279
    %v2542 = vpack.c.b16 %v2282, %v2281
    %v2543 = vpack.c.b16 %v2284, %v2283
    %v2544 = vpack.c.b16 %v2286, %v2285
    %v2545 = vpack.c.b16 %v2288, %v2287
    %v2546 = vpack.c.b16 %v2290, %v2289
    %2803 = vmatprep.subr.bf16.mxu0 0
    %2804 = vmatpush1.bf16.msra.mxu0 %v2291
    %2805 = vmatprep.subr.bf16.mxu0 0
    %2806 = vmatpush1.bf16.msra.mxu0 %v2292
    %2807 = vmatprep.subr.bf16.mxu0 0
    %2808 = vmatpush1.bf16.msra.mxu0 %v2293
    %2809 = vmatprep.subr.bf16.mxu0 0
    %2810 = vmatpush1.bf16.msra.mxu0 %v2294
    %2811 = vmatprep.subr.bf16.mxu0 0
    %2812 = vmatpush1.bf16.msra.mxu0 %v2295
    %2813 = vmatprep.subr.bf16.mxu0 0
    %2814 = vmatpush1.bf16.msra.mxu0 %v2296
    %2815 = vmatprep.subr.bf16.mxu0 0
    %2816 = vmatpush1.bf16.msra.mxu0 %v2297
    %2817 = vmatprep.subr.bf16.mxu0 0
    %2818 = vmatpush1.bf16.msra.mxu0 %v2298
    %2819 = vmatprep.subr.bf16.mxu0 0
    %2820 = vmatpush1.bf16.msra.mxu0 %v2299
    %2821 = vmatprep.subr.bf16.mxu0 0
    %2822 = vmatpush1.bf16.msra.mxu0 %v2300
    %2823 = vmatprep.subr.bf16.mxu0 0
    %2824 = vmatpush1.bf16.msra.mxu0 %v2301
    %2825 = vmatprep.subr.bf16.mxu0 0
    %2826 = vmatpush1.bf16.msra.mxu0 %v2302
    %2827 = vmatprep.subr.bf16.mxu0 0
    %2828 = vmatpush1.bf16.msra.mxu0 %v2303
    %2829 = vmatprep.subr.bf16.mxu0 0
    %2830 = vmatpush1.bf16.msra.mxu0 %v2304
    %2831 = vmatprep.subr.bf16.mxu0 0
    %2832 = vmatpush1.bf16.msra.mxu0 %v2305
    %2833 = vmatprep.subr.bf16.mxu0 0
    %2834 = vmatpush1.bf16.msra.mxu0 %v2306
    %2835 = vmatprep.mubr.bf16.mxu0 %v1204
    %2836 = vmatmul.mubr.bf16.gmra.mrb[0].mxu0 %v1203
    %v2837 = vpop.f32.mrb[0].mxu0
    %v2838 = vadd.f32 %v1153, %v2837
    %v2839 = vpop.f32.mrb[0].mxu0
    %v2840 = vpop.f32.mrb[0].mxu0
    %v2841 = vpop.f32.mrb[0].mxu0
    %2842 = vdwg.mxu0
    %2843 = vmatprep.subr.bf16.mxu0 0
    %2844 = vmatpush1.bf16.msra.mxu0 %v2307
    %2845 = vmatprep.subr.bf16.mxu0 0
    %2846 = vmatpush1.bf16.msra.mxu0 %v2308
    %2847 = vmatprep.subr.bf16.mxu0 0
    %2848 = vmatpush1.bf16.msra.mxu0 %v2309
    %2849 = vmatprep.subr.bf16.mxu0 0
    %2850 = vmatpush1.bf16.msra.mxu0 %v2310
    %2851 = vmatprep.subr.bf16.mxu0 0
    %2852 = vmatpush1.bf16.msra.mxu0 %v2311
    %2853 = vmatprep.subr.bf16.mxu0 0
    %2854 = vmatpush1.bf16.msra.mxu0 %v2312
    %2855 = vmatprep.subr.bf16.mxu0 0
    %2856 = vmatpush1.bf16.msra.mxu0 %v2313
    %2857 = vmatprep.subr.bf16.mxu0 0
    %2858 = vmatpush1.bf16.msra.mxu0 %v2314
    %2859 = vmatprep.subr.bf16.mxu0 0
    %2860 = vmatpush1.bf16.msra.mxu0 %v2315
    %2861 = vmatprep.subr.bf16.mxu0 0
    %2862 = vmatpush1.bf16.msra.mxu0 %v2316
    %2863 = vmatprep.subr.bf16.mxu0 0
    %2864 = vmatpush1.bf16.msra.mxu0 %v2317
    %2865 = vmatprep.subr.bf16.mxu0 0
    %2866 = vmatpush1.bf16.msra.mxu0 %v2318
    %2867 = vmatprep.subr.bf16.mxu0 0
    %2868 = vmatpush1.bf16.msra.mxu0 %v2319
    %2869 = vmatprep.subr.bf16.mxu0 0
    %2870 = vmatpush1.bf16.msra.mxu0 %v2320
    %2871 = vmatprep.subr.bf16.mxu0 0
    %2872 = vmatpush1.bf16.msra.mxu0 %v2321
    %2873 = vmatprep.subr.bf16.mxu0 0
    %2874 = vmatpush1.bf16.msra.mxu0 %v2322
    %2875 = vmatprep.mubr.bf16.mxu0 %v1206
    %2876 = vmatmul.mubr.bf16.gmra.mrb[0].mxu0 %v1205
    %v2877 = vpop.f32.mrb[0].mxu0
    %v2878 = vadd.f32 %v2838, %v2877
    %v2879 = vpop.f32.mrb[0].mxu0
    %v2880 = vpop.f32.mrb[0].mxu0
    %v2881 = vpop.f32.mrb[0].mxu0
    %2882 = vdwg.mxu0
    %2883 = vmatprep.subr.bf16.mxu0 0
    %2884 = vmatpush1.bf16.msra.mxu0 %v2323
    %2885 = vmatprep.subr.bf16.mxu0 0
    %2886 = vmatpush1.bf16.msra.mxu0 %v2324
    %2887 = vmatprep.subr.bf16.mxu0 0
    %2888 = vmatpush1.bf16.msra.mxu0 %v2325
    %2889 = vmatprep.subr.bf16.mxu0 0
    %2890 = vmatpush1.bf16.msra.mxu0 %v2326
    %2891 = vmatprep.subr.bf16.mxu0 0
    %2892 = vmatpush1.bf16.msra.mxu0 %v2327
    %2893 = vmatprep.subr.bf16.mxu0 0
    %2894 = vmatpush1.bf16.msra.mxu0 %v2328
    %2895 = vmatprep.subr.bf16.mxu0 0
    %2896 = vmatpush1.bf16.msra.mxu0 %v2329
    %2897 = vmatprep.subr.bf16.mxu0 0
    %2898 = vmatpush1.bf16.msra.mxu0 %v2330
    %2899 = vmatprep.subr.bf16.mxu0 0
    %2900 = vmatpush1.bf16.msra.mxu0 %v2331
    %2901 = vmatprep.subr.bf16.mxu0 0
    %2902 = vmatpush1.bf16.msra.mxu0 %v2332
    %2903 = vmatprep.subr.bf16.mxu0 0
    %2904 = vmatpush1.bf16.msra.mxu0 %v2333
    %2905 = vmatprep.subr.bf16.mxu0 0
    %2906 = vmatpush1.bf16.msra.mxu0 %v2334
    %2907 = vmatprep.subr.bf16.mxu0 0
    %2908 = vmatpush1.bf16.msra.mxu0 %v2335
    %2909 = vmatprep.subr.bf16.mxu0 0
    %2910 = vmatpush1.bf16.msra.mxu0 %v2336
    %2911 = vmatprep.subr.bf16.mxu0 0
    %2912 = vmatpush1.bf16.msra.mxu0 %v2337
    %2913 = vmatprep.subr.bf16.mxu0 0
    %2914 = vmatpush1.bf16.msra.mxu0 %v2338
    %2915 = vmatprep.mubr.bf16.mxu0 %v1208
    %2916 = vmatmul.mubr.bf16.gmra.mrb[0].mxu0 %v1207
    %v2917 = vpop.f32.mrb[0].mxu0
    %v2918 = vadd.f32 %v2878, %v2917
    %v2919 = vpop.f32.mrb[0].mxu0
    %v2920 = vpop.f32.mrb[0].mxu0
    %v2921 = vpop.f32.mrb[0].mxu0
    %2922 = vdwg.mxu0
    %2923 = vmatprep.subr.bf16.mxu0 0
    %2924 = vmatpush1.bf16.msra.mxu0 %v2339
    %2925 = vmatprep.subr.bf16.mxu0 0
    %2926 = vmatpush1.bf16.msra.mxu0 %v2340
    %2927 = vmatprep.subr.bf16.mxu0 0
    %2928 = vmatpush1.bf16.msra.mxu0 %v2341
    %2929 = vmatprep.subr.bf16.mxu0 0
    %2930 = vmatpush1.bf16.msra.mxu0 %v2342
    %2931 = vmatprep.subr.bf16.mxu0 0
    %2932 = vmatpush1.bf16.msra.mxu0 %v2343
    %2933 = vmatprep.subr.bf16.mxu0 0
    %2934 = vmatpush1.bf16.msra.mxu0 %v2344
    %2935 = vmatprep.subr.bf16.mxu0 0
    %2936 = vmatpush1.bf16.msra.mxu0 %v2345
    %2937 = vmatprep.subr.bf16.mxu0 0
    %2938 = vmatpush1.bf16.msra.mxu0 %v2346
    %2939 = vmatprep.subr.bf16.mxu0 0
    %2940 = vmatpush1.bf16.msra.mxu0 %v2347
    %2941 = vmatprep.subr.bf16.mxu0 0
    %2942 = vmatpush1.bf16.msra.mxu0 %v2348
    %2943 = vmatprep.subr.bf16.mxu0 0
    %2944 = vmatpush1.bf16.msra.mxu0 %v2349
    %2945 = vmatprep.subr.bf16.mxu0 0
    %2946 = vmatpush1.bf16.msra.mxu0 %v2350
    %2947 = vmatprep.subr.bf16.mxu0 0
    %2948 = vmatpush1.bf16.msra.mxu0 %v2351
    %2949 = vmatprep.subr.bf16.mxu0 0
    %2950 = vmatpush1.bf16.msra.mxu0 %v2352
    %2951 = vmatprep.subr.bf16.mxu0 0
    %2952 = vmatpush1.bf16.msra.mxu0 %v2353
    %2953 = vmatprep.subr.bf16.mxu0 0
    %2954 = vmatpush1.bf16.msra.mxu0 %v2354
    %2955 = vmatprep.mubr.bf16.mxu0 %v1210
    %2956 = vmatmul.mubr.bf16.gmra.mrb[0].mxu0 %v1209
    %v2957 = vpop.f32.mrb[0].mxu0
    %v2958 = vadd.f32 %v2918, %v2957
    %v2959 = vpop.f32.mrb[0].mxu0
    %v2960 = vpop.f32.mrb[0].mxu0
    %v2961 = vpop.f32.mrb[0].mxu0
    %2962 = vdwg.mxu0
    %2963 = vmatprep.subr.bf16.mxu0 0
    %2964 = vmatpush1.bf16.msra.mxu0 %v2355
    %2965 = vmatprep.subr.bf16.mxu0 0
    %2966 = vmatpush1.bf16.msra.mxu0 %v2356
    %2967 = vmatprep.subr.bf16.mxu0 0
    %2968 = vmatpush1.bf16.msra.mxu0 %v2357
    %2969 = vmatprep.subr.bf16.mxu0 0
    %2970 = vmatpush1.bf16.msra.mxu0 %v2358
    %2971 = vmatprep.subr.bf16.mxu0 0
    %2972 = vmatpush1.bf16.msra.mxu0 %v2359
    %2973 = vmatprep.subr.bf16.mxu0 0
    %2974 = vmatpush1.bf16.msra.mxu0 %v2360
    %2975 = vmatprep.subr.bf16.mxu0 0
    %2976 = vmatpush1.bf16.msra.mxu0 %v2361
    %2977 = vmatprep.subr.bf16.mxu0 0
    %2978 = vmatpush1.bf16.msra.mxu0 %v2362
    %2979 = vmatprep.subr.bf16.mxu0 0
    %2980 = vmatpush1.bf16.msra.mxu0 %v2363
    %2981 = vmatprep.subr.bf16.mxu0 0
    %2982 = vmatpush1.bf16.msra.mxu0 %v2364
    %2983 = vmatprep.subr.bf16.mxu0 0
    %2984 = vmatpush1.bf16.msra.mxu0 %v2365
    %2985 = vmatprep.subr.bf16.mxu0 0
    %2986 = vmatpush1.bf16.msra.mxu0 %v2366
    %2987 = vmatprep.subr.bf16.mxu0 0
    %2988 = vmatpush1.bf16.msra.mxu0 %v2367
    %2989 = vmatprep.subr.bf16.mxu0 0
    %2990 = vmatpush1.bf16.msra.mxu0 %v2368
    %2991 = vmatprep.subr.bf16.mxu0 0
    %2992 = vmatpush1.bf16.msra.mxu0 %v2369
    %2993 = vmatprep.subr.bf16.mxu0 0
    %2994 = vmatpush1.bf16.msra.mxu0 %v2370
    %2995 = vmatprep.mubr.bf16.mxu0 %v1212
    %2996 = vmatmul.mubr.bf16.gmra.mrb[0].mxu0 %v1211
    %v2997 = vpop.f32.mrb[0].mxu0
    %v2998 = vadd.f32 %v2958, %v2997
    %v2999 = vpop.f32.mrb[0].mxu0
    %v3000 = vpop.f32.mrb[0].mxu0
    %v3001 = vpop.f32.mrb[0].mxu0
    %3002 = vdwg.mxu0
    %3003 = vmatprep.subr.bf16.mxu0 0
    %3004 = vmatpush1.bf16.msra.mxu0 %v2371
    %3005 = vmatprep.subr.bf16.mxu0 0
    %3006 = vmatpush1.bf16.msra.mxu0 %v2372
    %3007 = vmatprep.subr.bf16.mxu0 0
    %3008 = vmatpush1.bf16.msra.mxu0 %v2373
    %3009 = vmatprep.subr.bf16.mxu0 0
    %3010 = vmatpush1.bf16.msra.mxu0 %v2374
    %3011 = vmatprep.subr.bf16.mxu0 0
    %3012 = vmatpush1.bf16.msra.mxu0 %v2375
    %3013 = vmatprep.subr.bf16.mxu0 0
    %3014 = vmatpush1.bf16.msra.mxu0 %v2376
    %3015 = vmatprep.subr.bf16.mxu0 0
    %3016 = vmatpush1.bf16.msra.mxu0 %v2377
    %3017 = vmatprep.subr.bf16.mxu0 0
    %3018 = vmatpush1.bf16.msra.mxu0 %v2378
    %3019 = vmatprep.subr.bf16.mxu0 0
    %3020 = vmatpush1.bf16.msra.mxu0 %v2379
    %3021 = vmatprep.subr.bf16.mxu0 0
    %3022 = vmatpush1.bf16.msra.mxu0 %v2380
    %3023 = vmatprep.subr.bf16.mxu0 0
    %3024 = vmatpush1.bf16.msra.mxu0 %v2381
    %3025 = vmatprep.subr.bf16.mxu0 0
    %3026 = vmatpush1.bf16.msra.mxu0 %v2382
    %3027 = vmatprep.subr.bf16.mxu0 0
    %3028 = vmatpush1.bf16.msra.mxu0 %v2383
    %3029 = vmatprep.subr.bf16.mxu0 0
    %3030 = vmatpush1.bf16.msra.mxu0 %v2384
    %3031 = vmatprep.subr.bf16.mxu0 0
    %3032 = vmatpush1.bf16.msra.mxu0 %v2385
    %3033 = vmatprep.subr.bf16.mxu0 0
    %3034 = vmatpush1.bf16.msra.mxu0 %v2386
    %3035 = vmatprep.mubr.bf16.mxu0 %v1214
    %3036 = vmatmul.mubr.bf16.gmra.mrb[0].mxu0 %v1213
    %v3037 = vpop.f32.mrb[0].mxu0
    %v3038 = vadd.f32 %v2998, %v3037
    %v3039 = vpop.f32.mrb[0].mxu0
    %v3040 = vpop.f32.mrb[0].mxu0
    %v3041 = vpop.f32.mrb[0].mxu0
    %3042 = vdwg.mxu0
    %3043 = vmatprep.subr.bf16.mxu0 0
    %3044 = vmatpush1.bf16.msra.mxu0 %v2387
    %3045 = vmatprep.subr.bf16.mxu0 0
    %3046 = vmatpush1.bf16.msra.mxu0 %v2388
    %3047 = vmatprep.subr.bf16.mxu0 0
    %3048 = vmatpush1.bf16.msra.mxu0 %v2389
    %3049 = vmatprep.subr.bf16.mxu0 0
    %3050 = vmatpush1.bf16.msra.mxu0 %v2390
    %3051 = vmatprep.subr.bf16.mxu0 0
    %3052 = vmatpush1.bf16.msra.mxu0 %v2391
    %3053 = vmatprep.subr.bf16.mxu0 0
    %3054 = vmatpush1.bf16.msra.mxu0 %v2392
    %3055 = vmatprep.subr.bf16.mxu0 0
    %3056 = vmatpush1.bf16.msra.mxu0 %v2393
    %3057 = vmatprep.subr.bf16.mxu0 0
    %3058 = vmatpush1.bf16.msra.mxu0 %v2394
    %3059 = vmatprep.subr.bf16.mxu0 0
    %3060 = vmatpush1.bf16.msra.mxu0 %v2395
    %3061 = vmatprep.subr.bf16.mxu0 0
    %3062 = vmatpush1.bf16.msra.mxu0 %v2396
    %3063 = vmatprep.subr.bf16.mxu0 0
    %3064 = vmatpush1.bf16.msra.mxu0 %v2397
    %3065 = vmatprep.subr.bf16.mxu0 0
    %3066 = vmatpush1.bf16.msra.mxu0 %v2398
    %3067 = vmatprep.subr.bf16.mxu0 0
    %3068 = vmatpush1.bf16.msra.mxu0 %v2399
    %3069 = vmatprep.subr.bf16.mxu0 0
    %3070 = vmatpush1.bf16.msra.mxu0 %v2400
    %3071 = vmatprep.subr.bf16.mxu0 0
    %3072 = vmatpush1.bf16.msra.mxu0 %v2401
    %3073 = vmatprep.subr.bf16.mxu0 0
    %3074 = vmatpush1.bf16.msra.mxu0 %v2402
    %3075 = vmatprep.mubr.bf16.mxu0 %v1216
    %3076 = vmatmul.mubr.bf16.gmra.mrb[0].mxu0 %v1215
    %v3077 = vpop.f32.mrb[0].mxu0
    %v3078 = vadd.f32 %v3038, %v3077
    %v3079 = vpop.f32.mrb[0].mxu0
    %v3080 = vpop.f32.mrb[0].mxu0
    %v3081 = vpop.f32.mrb[0].mxu0
    %3082 = vdwg.mxu0
    %3083 = vmatprep.subr.bf16.mxu0 0
    %3084 = vmatpush1.bf16.msra.mxu0 %v2403
    %3085 = vmatprep.subr.bf16.mxu0 0
    %3086 = vmatpush1.bf16.msra.mxu0 %v2404
    %3087 = vmatprep.subr.bf16.mxu0 0
    %3088 = vmatpush1.bf16.msra.mxu0 %v2405
    %3089 = vmatprep.subr.bf16.mxu0 0
    %3090 = vmatpush1.bf16.msra.mxu0 %v2406
    %3091 = vmatprep.subr.bf16.mxu0 0
    %3092 = vmatpush1.bf16.msra.mxu0 %v2407
    %3093 = vmatprep.subr.bf16.mxu0 0
    %3094 = vmatpush1.bf16.msra.mxu0 %v2408
    %3095 = vmatprep.subr.bf16.mxu0 0
    %3096 = vmatpush1.bf16.msra.mxu0 %v2409
    %3097 = vmatprep.subr.bf16.mxu0 0
    %3098 = vmatpush1.bf16.msra.mxu0 %v2410
    %3099 = vmatprep.subr.bf16.mxu0 0
    %3100 = vmatpush1.bf16.msra.mxu0 %v2411
    %3101 = vmatprep.subr.bf16.mxu0 0
    %3102 = vmatpush1.bf16.msra.mxu0 %v2412
    %3103 = vmatprep.subr.bf16.mxu0 0
    %3104 = vmatpush1.bf16.msra.mxu0 %v2413
    %3105 = vmatprep.subr.bf16.mxu0 0
    %3106 = vmatpush1.bf16.msra.mxu0 %v2414
    %3107 = vmatprep.subr.bf16.mxu0 0
    %3108 = vmatpush1.bf16.msra.mxu0 %v2415
    %3109 = vmatprep.subr.bf16.mxu0 0
    %3110 = vmatpush1.bf16.msra.mxu0 %v2416
    %3111 = vmatprep.subr.bf16.mxu0 0
    %3112 = vmatpush1.bf16.msra.mxu0 %v2417
    %3113 = vmatprep.subr.bf16.mxu0 0
    %3114 = vmatpush1.bf16.msra.mxu0 %v2418
    %3115 = vmatprep.mubr.bf16.mxu0 %v1218
    %3116 = vmatmul.mubr.bf16.gmra.mrb[0].mxu0 %v1217
    %v3117 = vpop.f32.mrb[0].mxu0
    %v3118 = vadd.f32 %v3078, %v3117
    %v3119 = vpop.f32.mrb[0].mxu0
    %v3120 = vpop.f32.mrb[0].mxu0
    %v3121 = vpop.f32.mrb[0].mxu0
    %3122 = vdwg.mxu0
    %3123 = vmatprep.subr.bf16.mxu0 0
    %3124 = vmatpush1.bf16.msra.mxu0 %v2419
    %3125 = vmatprep.subr.bf16.mxu0 0
    %3126 = vmatpush1.bf16.msra.mxu0 %v2420
    %3127 = vmatprep.subr.bf16.mxu0 0
    %3128 = vmatpush1.bf16.msra.mxu0 %v2421
    %3129 = vmatprep.subr.bf16.mxu0 0
    %3130 = vmatpush1.bf16.msra.mxu0 %v2422
    %3131 = vmatprep.subr.bf16.mxu0 0
    %3132 = vmatpush1.bf16.msra.mxu0 %v2423
    %3133 = vmatprep.subr.bf16.mxu0 0
    %3134 = vmatpush1.bf16.msra.mxu0 %v2424
    %3135 = vmatprep.subr.bf16.mxu0 0
    %3136 = vmatpush1.bf16.msra.mxu0 %v2425
    %3137 = vmatprep.subr.bf16.mxu0 0
    %3138 = vmatpush1.bf16.msra.mxu0 %v2426
    %3139 = vmatprep.subr.bf16.mxu0 0
    %3140 = vmatpush1.bf16.msra.mxu0 %v2427
    %3141 = vmatprep.subr.bf16.mxu0 0
    %3142 = vmatpush1.bf16.msra.mxu0 %v2428
    %3143 = vmatprep.subr.bf16.mxu0 0
    %3144 = vmatpush1.bf16.msra.mxu0 %v2429
    %3145 = vmatprep.subr.bf16.mxu0 0
    %3146 = vmatpush1.bf16.msra.mxu0 %v2430
    %3147 = vmatprep.subr.bf16.mxu0 0
    %3148 = vmatpush1.bf16.msra.mxu0 %v2431
    %3149 = vmatprep.subr.bf16.mxu0 0
    %3150 = vmatpush1.bf16.msra.mxu0 %v2432
    %3151 = vmatprep.subr.bf16.mxu0 0
    %3152 = vmatpush1.bf16.msra.mxu0 %v2433
    %3153 = vmatprep.subr.bf16.mxu0 0
    %3154 = vmatpush1.bf16.msra.mxu0 %v2434
    %3155 = vmatprep.mubr.bf16.mxu0 %v1220
    %3156 = vmatmul.mubr.bf16.gmra.mrb[0].mxu0 %v1219
    %v3157 = vpop.f32.mrb[0].mxu0
    %v3158 = vadd.f32 %v3118, %v3157
    %v3159 = vpop.f32.mrb[0].mxu0
    %v3160 = vpop.f32.mrb[0].mxu0
    %v3161 = vpop.f32.mrb[0].mxu0
    %3162 = vdwg.mxu0
    %3163 = vmatprep.subr.bf16.mxu0 0
    %3164 = vmatpush1.bf16.msra.mxu0 %v2435
    %3165 = vmatprep.subr.bf16.mxu0 0
    %3166 = vmatpush1.bf16.msra.mxu0 %v2436
    %3167 = vmatprep.subr.bf16.mxu0 0
    %3168 = vmatpush1.bf16.msra.mxu0 %v2437
    %3169 = vmatprep.subr.bf16.mxu0 0
    %3170 = vmatpush1.bf16.msra.mxu0 %v2438
    %3171 = vmatprep.subr.bf16.mxu0 0
    %3172 = vmatpush1.bf16.msra.mxu0 %v2439
    %3173 = vmatprep.subr.bf16.mxu0 0
    %3174 = vmatpush1.bf16.msra.mxu0 %v2440
    %3175 = vmatprep.subr.bf16.mxu0 0
    %3176 = vmatpush1.bf16.msra.mxu0 %v2441
    %3177 = vmatprep.subr.bf16.mxu0 0
    %3178 = vmatpush1.bf16.msra.mxu0 %v2442
    %3179 = vmatprep.subr.bf16.mxu0 0
    %3180 = vmatpush1.bf16.msra.mxu0 %v2443
    %3181 = vmatprep.subr.bf16.mxu0 0
    %3182 = vmatpush1.bf16.msra.mxu0 %v2444
    %3183 = vmatprep.subr.bf16.mxu0 0
    %3184 = vmatpush1.bf16.msra.mxu0 %v2445
    %3185 = vmatprep.subr.bf16.mxu0 0
    %3186 = vmatpush1.bf16.msra.mxu0 %v2446
    %3187 = vmatprep.subr.bf16.mxu0 0
    %3188 = vmatpush1.bf16.msra.mxu0 %v2447
    %3189 = vmatprep.subr.bf16.mxu0 0
    %3190 = vmatpush1.bf16.msra.mxu0 %v2448
    %3191 = vmatprep.subr.bf16.mxu0 0
    %3192 = vmatpush1.bf16.msra.mxu0 %v2449
    %3193 = vmatprep.subr.bf16.mxu0 0
    %3194 = vmatpush1.bf16.msra.mxu0 %v2450
    %3195 = vmatprep.mubr.bf16.mxu0 %v1222
    %3196 = vmatmul.mubr.bf16.gmra.mrb[0].mxu0 %v1221
    %v3197 = vpop.f32.mrb[0].mxu0
    %v3198 = vadd.f32 %v3158, %v3197
    %v3199 = vpop.f32.mrb[0].mxu0
    %v3200 = vpop.f32.mrb[0].mxu0
    %v3201 = vpop.f32.mrb[0].mxu0
    %3202 = vdwg.mxu0
    %3203 = vmatprep.subr.bf16.mxu0 0
    %3204 = vmatpush1.bf16.msra.mxu0 %v2451
    %3205 = vmatprep.subr.bf16.mxu0 0
    %3206 = vmatpush1.bf16.msra.mxu0 %v2452
    %3207 = vmatprep.subr.bf16.mxu0 0
    %3208 = vmatpush1.bf16.msra.mxu0 %v2453
    %3209 = vmatprep.subr.bf16.mxu0 0
    %3210 = vmatpush1.bf16.msra.mxu0 %v2454
    %3211 = vmatprep.subr.bf16.mxu0 0
    %3212 = vmatpush1.bf16.msra.mxu0 %v2455
    %3213 = vmatprep.subr.bf16.mxu0 0
    %3214 = vmatpush1.bf16.msra.mxu0 %v2456
    %3215 = vmatprep.subr.bf16.mxu0 0
    %3216 = vmatpush1.bf16.msra.mxu0 %v2457
    %3217 = vmatprep.subr.bf16.mxu0 0
    %3218 = vmatpush1.bf16.msra.mxu0 %v2458
    %3219 = vmatprep.subr.bf16.mxu0 0
    %3220 = vmatpush1.bf16.msra.mxu0 %v2459
    %3221 = vmatprep.subr.bf16.mxu0 0
    %3222 = vmatpush1.bf16.msra.mxu0 %v2460
    %3223 = vmatprep.subr.bf16.mxu0 0
    %3224 = vmatpush1.bf16.msra.mxu0 %v2461
    %3225 = vmatprep.subr.bf16.mxu0 0
    %3226 = vmatpush1.bf16.msra.mxu0 %v2462
    %3227 = vmatprep.subr.bf16.mxu0 0
    %3228 = vmatpush1.bf16.msra.mxu0 %v2463
    %3229 = vmatprep.subr.bf16.mxu0 0
    %3230 = vmatpush1.bf16.msra.mxu0 %v2464
    %3231 = vmatprep.subr.bf16.mxu0 0
    %3232 = vmatpush1.bf16.msra.mxu0 %v2465
    %3233 = vmatprep.subr.bf16.mxu0 0
    %3234 = vmatpush1.bf16.msra.mxu0 %v2466
    %3235 = vmatprep.mubr.bf16.mxu0 %v1224
    %3236 = vmatmul.mubr.bf16.gmra.mrb[0].mxu0 %v1223
    %v3237 = vpop.f32.mrb[0].mxu0
    %v3238 = vadd.f32 %v3198, %v3237
    %v3239 = vpop.f32.mrb[0].mxu0
    %v3240 = vpop.f32.mrb[0].mxu0
    %v3241 = vpop.f32.mrb[0].mxu0
    %3242 = vdwg.mxu0
    %3243 = vmatprep.subr.bf16.mxu0 0
    %3244 = vmatpush1.bf16.msra.mxu0 %v2467
    %3245 = vmatprep.subr.bf16.mxu0 0
    %3246 = vmatpush1.bf16.msra.mxu0 %v2468
    %3247 = vmatprep.subr.bf16.mxu0 0
    %3248 = vmatpush1.bf16.msra.mxu0 %v2469
    %3249 = vmatprep.subr.bf16.mxu0 0
    %3250 = vmatpush1.bf16.msra.mxu0 %v2470
    %3251 = vmatprep.subr.bf16.mxu0 0
    %3252 = vmatpush1.bf16.msra.mxu0 %v2471
    %3253 = vmatprep.subr.bf16.mxu0 0
    %3254 = vmatpush1.bf16.msra.mxu0 %v2472
    %3255 = vmatprep.subr.bf16.mxu0 0
    %3256 = vmatpush1.bf16.msra.mxu0 %v2473
    %3257 = vmatprep.subr.bf16.mxu0 0
    %3258 = vmatpush1.bf16.msra.mxu0 %v2474
    %3259 = vmatprep.subr.bf16.mxu0 0
    %3260 = vmatpush1.bf16.msra.mxu0 %v2475
    %3261 = vmatprep.subr.bf16.mxu0 0
    %3262 = vmatpush1.bf16.msra.mxu0 %v2476
    %3263 = vmatprep.subr.bf16.mxu0 0
    %3264 = vmatpush1.bf16.msra.mxu0 %v2477
    %3265 = vmatprep.subr.bf16.mxu0 0
    %3266 = vmatpush1.bf16.msra.mxu0 %v2478
    %3267 = vmatprep.subr.bf16.mxu0 0
    %3268 = vmatpush1.bf16.msra.mxu0 %v2479
    %3269 = vmatprep.subr.bf16.mxu0 0
    %3270 = vmatpush1.bf16.msra.mxu0 %v2480
    %3271 = vmatprep.subr.bf16.mxu0 0
    %3272 = vmatpush1.bf16.msra.mxu0 %v2481
    %3273 = vmatprep.subr.bf16.mxu0 0
    %3274 = vmatpush1.bf16.msra.mxu0 %v2482
    %3275 = vmatprep.mubr.bf16.mxu0 %v1226
    %3276 = vmatmul.mubr.bf16.gmra.mrb[0].mxu0 %v1225
    %v3277 = vpop.f32.mrb[0].mxu0
    %v3278 = vadd.f32 %v3238, %v3277
    %v3279 = vpop.f32.mrb[0].mxu0
    %v3280 = vpop.f32.mrb[0].mxu0
    %v3281 = vpop.f32.mrb[0].mxu0
    %3282 = vdwg.mxu0
    %3283 = vmatprep.subr.bf16.mxu0 0
    %3284 = vmatpush1.bf16.msra.mxu0 %v2483
    %3285 = vmatprep.subr.bf16.mxu0 0
    %3286 = vmatpush1.bf16.msra.mxu0 %v2484
    %3287 = vmatprep.subr.bf16.mxu0 0
    %3288 = vmatpush1.bf16.msra.mxu0 %v2485
    %3289 = vmatprep.subr.bf16.mxu0 0
    %3290 = vmatpush1.bf16.msra.mxu0 %v2486
    %3291 = vmatprep.subr.bf16.mxu0 0
    %3292 = vmatpush1.bf16.msra.mxu0 %v2487
    %3293 = vmatprep.subr.bf16.mxu0 0
    %3294 = vmatpush1.bf16.msra.mxu0 %v2488
    %3295 = vmatprep.subr.bf16.mxu0 0
    %3296 = vmatpush1.bf16.msra.mxu0 %v2489
    %3297 = vmatprep.subr.bf16.mxu0 0
    %3298 = vmatpush1.bf16.msra.mxu0 %v2490
    %3299 = vmatprep.subr.bf16.mxu0 0
    %3300 = vmatpush1.bf16.msra.mxu0 %v2491
    %3301 = vmatprep.subr.bf16.mxu0 0
    %3302 = vmatpush1.bf16.msra.mxu0 %v2492
    %3303 = vmatprep.subr.bf16.mxu0 0
    %3304 = vmatpush1.bf16.msra.mxu0 %v2493
    %3305 = vmatprep.subr.bf16.mxu0 0
    %3306 = vmatpush1.bf16.msra.mxu0 %v2494
    %3307 = vmatprep.subr.bf16.mxu0 0
    %3308 = vmatpush1.bf16.msra.mxu0 %v2495
    %3309 = vmatprep.subr.bf16.mxu0 0
    %3310 = vmatpush1.bf16.msra.mxu0 %v2496
    %3311 = vmatprep.subr.bf16.mxu0 0
    %3312 = vmatpush1.bf16.msra.mxu0 %v2497
    %3313 = vmatprep.subr.bf16.mxu0 0
    %3314 = vmatpush1.bf16.msra.mxu0 %v2498
    %3315 = vmatprep.mubr.bf16.mxu0 %v1228
    %3316 = vmatmul.mubr.bf16.gmra.mrb[0].mxu0 %v1227
    %v3317 = vpop.f32.mrb[0].mxu0
    %v3318 = vadd.f32 %v3278, %v3317
    %v3319 = vpop.f32.mrb[0].mxu0
    %v3320 = vpop.f32.mrb[0].mxu0
    %v3321 = vpop.f32.mrb[0].mxu0
    %3322 = vdwg.mxu0
    %3323 = vmatprep.subr.bf16.mxu0 0
    %3324 = vmatpush1.bf16.msra.mxu0 %v2499
    %3325 = vmatprep.subr.bf16.mxu0 0
    %3326 = vmatpush1.bf16.msra.mxu0 %v2500
    %3327 = vmatprep.subr.bf16.mxu0 0
    %3328 = vmatpush1.bf16.msra.mxu0 %v2501
    %3329 = vmatprep.subr.bf16.mxu0 0
    %3330 = vmatpush1.bf16.msra.mxu0 %v2502
    %3331 = vmatprep.subr.bf16.mxu0 0
    %3332 = vmatpush1.bf16.msra.mxu0 %v2503
    %3333 = vmatprep.subr.bf16.mxu0 0
    %3334 = vmatpush1.bf16.msra.mxu0 %v2504
    %3335 = vmatprep.subr.bf16.mxu0 0
    %3336 = vmatpush1.bf16.msra.mxu0 %v2505
    %3337 = vmatprep.subr.bf16.mxu0 0
    %3338 = vmatpush1.bf16.msra.mxu0 %v2506
    %3339 = vmatprep.subr.bf16.mxu0 0
    %3340 = vmatpush1.bf16.msra.mxu0 %v2507
    %3341 = vmatprep.subr.bf16.mxu0 0
    %3342 = vmatpush1.bf16.msra.mxu0 %v2508
    %3343 = vmatprep.subr.bf16.mxu0 0
    %3344 = vmatpush1.bf16.msra.mxu0 %v2509
    %3345 = vmatprep.subr.bf16.mxu0 0
    %3346 = vmatpush1.bf16.msra.mxu0 %v2510
    %3347 = vmatprep.subr.bf16.mxu0 0
    %3348 = vmatpush1.bf16.msra.mxu0 %v2511
    %3349 = vmatprep.subr.bf16.mxu0 0
    %3350 = vmatpush1.bf16.msra.mxu0 %v2512
    %3351 = vmatprep.subr.bf16.mxu0 0
    %3352 = vmatpush1.bf16.msra.mxu0 %v2513
    %3353 = vmatprep.subr.bf16.mxu0 0
    %3354 = vmatpush1.bf16.msra.mxu0 %v2514
    %3355 = vmatprep.mubr.bf16.mxu0 %v1230
    %3356 = vmatmul.mubr.bf16.gmra.mrb[0].mxu0 %v1229
    %v3357 = vpop.f32.mrb[0].mxu0
    %v3358 = vadd.f32 %v3318, %v3357
    %v3359 = vpop.f32.mrb[0].mxu0
    %v3360 = vpop.f32.mrb[0].mxu0
    %v3361 = vpop.f32.mrb[0].mxu0
    %3362 = vdwg.mxu0
    %3363 = vmatprep.subr.bf16.mxu0 0
    %3364 = vmatpush1.bf16.msra.mxu0 %v2515
    %3365 = vmatprep.subr.bf16.mxu0 0
    %3366 = vmatpush1.bf16.msra.mxu0 %v2516
    %3367 = vmatprep.subr.bf16.mxu0 0
    %3368 = vmatpush1.bf16.msra.mxu0 %v2517
    %3369 = vmatprep.subr.bf16.mxu0 0
    %3370 = vmatpush1.bf16.msra.mxu0 %v2518
    %3371 = vmatprep.subr.bf16.mxu0 0
    %3372 = vmatpush1.bf16.msra.mxu0 %v2519
    %3373 = vmatprep.subr.bf16.mxu0 0
    %3374 = vmatpush1.bf16.msra.mxu0 %v2520
    %3375 = vmatprep.subr.bf16.mxu0 0
    %3376 = vmatpush1.bf16.msra.mxu0 %v2521
    %3377 = vmatprep.subr.bf16.mxu0 0
    %3378 = vmatpush1.bf16.msra.mxu0 %v2522
    %3379 = vmatprep.subr.bf16.mxu0 0
    %3380 = vmatpush1.bf16.msra.mxu0 %v2523
    %3381 = vmatprep.subr.bf16.mxu0 0
    %3382 = vmatpush1.bf16.msra.mxu0 %v2524
    %3383 = vmatprep.subr.bf16.mxu0 0
    %3384 = vmatpush1.bf16.msra.mxu0 %v2525
    %3385 = vmatprep.subr.bf16.mxu0 0
    %3386 = vmatpush1.bf16.msra.mxu0 %v2526
    %3387 = vmatprep.subr.bf16.mxu0 0
    %3388 = vmatpush1.bf16.msra.mxu0 %v2527
    %3389 = vmatprep.subr.bf16.mxu0 0
    %3390 = vmatpush1.bf16.msra.mxu0 %v2528
    %3391 = vmatprep.subr.bf16.mxu0 0
    %3392 = vmatpush1.bf16.msra.mxu0 %v2529
    %3393 = vmatprep.subr.bf16.mxu0 0
    %3394 = vmatpush1.bf16.msra.mxu0 %v2530
    %3395 = vmatprep.mubr.bf16.mxu0 %v1232
    %3396 = vmatmul.mubr.bf16.gmra.mrb[0].mxu0 %v1231
    %v3397 = vpop.f32.mrb[0].mxu0
    %v3398 = vadd.f32 %v3358, %v3397
    %v3399 = vpop.f32.mrb[0].mxu0
    %v3400 = vpop.f32.mrb[0].mxu0
    %v3401 = vpop.f32.mrb[0].mxu0
    %3402 = vdwg.mxu0
    %3403 = vmatprep.subr.bf16.mxu0 0
    %3404 = vmatpush1.bf16.msra.mxu0 %v2531
    %3405 = vmatprep.subr.bf16.mxu0 0
    %3406 = vmatpush1.bf16.msra.mxu0 %v2532
    %3407 = vmatprep.subr.bf16.mxu0 0
    %3408 = vmatpush1.bf16.msra.mxu0 %v2533
    %3409 = vmatprep.subr.bf16.mxu0 0
    %3410 = vmatpush1.bf16.msra.mxu0 %v2534
    %3411 = vmatprep.subr.bf16.mxu0 0
    %3412 = vmatpush1.bf16.msra.mxu0 %v2535
    %3413 = vmatprep.subr.bf16.mxu0 0
    %3414 = vmatpush1.bf16.msra.mxu0 %v2536
    %3415 = vmatprep.subr.bf16.mxu0 0
    %3416 = vmatpush1.bf16.msra.mxu0 %v2537
    %3417 = vmatprep.subr.bf16.mxu0 0
    %3418 = vmatpush1.bf16.msra.mxu0 %v2538
    %3419 = vmatprep.subr.bf16.mxu0 0
    %3420 = vmatpush1.bf16.msra.mxu0 %v2539
    %3421 = vmatprep.subr.bf16.mxu0 0
    %3422 = vmatpush1.bf16.msra.mxu0 %v2540
    %3423 = vmatprep.subr.bf16.mxu0 0
    %3424 = vmatpush1.bf16.msra.mxu0 %v2541
    %3425 = vmatprep.subr.bf16.mxu0 0
    %3426 = vmatpush1.bf16.msra.mxu0 %v2542
    %3427 = vmatprep.subr.bf16.mxu0 0
    %3428 = vmatpush1.bf16.msra.mxu0 %v2543
    %3429 = vmatprep.subr.bf16.mxu0 0
    %3430 = vmatpush1.bf16.msra.mxu0 %v2544
    %3431 = vmatprep.subr.bf16.mxu0 0
    %3432 = vmatpush1.bf16.msra.mxu0 %v2545
    %3433 = vmatprep.subr.bf16.mxu0 0
    %3434 = vmatpush1.bf16.msra.mxu0 %v2546
    %3435 = vmatprep.mubr.bf16.mxu0 %v1234
    %3436 = vmatmul.mubr.bf16.gmra.mrb[0].mxu0 %v1233
    %v3437 = vpop.f32.mrb[0].mxu0
    %v3438 = vadd.f32 %v3398, %v3437
    %v3439 = vpop.f32.mrb[0].mxu0
    %v3440 = vpop.f32.mrb[0].mxu0
    %v3441 = vpop.f32.mrb[0].mxu0
    %3442 = vdwg.mxu0
    %v3443 = vpack.c.bf16 %v3438, %v3438
    %v3444 = vld [vmem:[#allocation16] sm:$0xf]
    %v3445 = vld [vmem:[#allocation16 + $0x4] sm:$0xf]
    %v3446 = vld [vmem:[#allocation16 + $0x8] sm:$0xf]
    %v3447 = vld [vmem:[#allocation16 + $0xc] sm:$0xf]
    %v3448 = vld [vmem:[#allocation16 + $0x10] sm:$0xf]
    %v3449 = vld [vmem:[#allocation16 + $0x14] sm:$0xf]
    %v3450 = vld [vmem:[#allocation16 + $0x18] sm:$0xf]
    %v3451 = vld [vmem:[#allocation16 + $0x1c] sm:$0xf]
    %v3452 = vld [vmem:[#allocation16 + $0x20] sm:$0xf]
    %v3453 = vld [vmem:[#allocation16 + $0x24] sm:$0xf]
    %v3454 = vld [vmem:[#allocation16 + $0x28] sm:$0xf]
    %v3455 = vld [vmem:[#allocation16 + $0x2c] sm:$0xf]
    %v3456 = vld [vmem:[#allocation16 + $0x30] sm:$0xf]
    %v3457 = vld [vmem:[#allocation16 + $0x34] sm:$0xf]
    %v3458 = vld [vmem:[#allocation16 + $0x38] sm:$0xf]
    %v3459 = vld [vmem:[#allocation16 + $0x3c] sm:$0xf]
    %v3460 = vld [vmem:[#allocation9] sm:$0xff]
    %v3461 = vpack.c.bf16 %v3460, %v3460
    %v3462 = vld [vmem:[#allocation17] sm:$0xf]
    %v3463 = vld [vmem:[#allocation17 + $0x4] sm:$0xf]
    %v3464 = vld [vmem:[#allocation17 + $0x8] sm:$0xf]
    %v3465 = vld [vmem:[#allocation17 + $0xc] sm:$0xf]
    %v3466 = vld [vmem:[#allocation17 + $0x10] sm:$0xf]
    %v3467 = vld [vmem:[#allocation17 + $0x14] sm:$0xf]
    %v3468 = vld [vmem:[#allocation17 + $0x18] sm:$0xf]
    %v3469 = vld [vmem:[#allocation17 + $0x1c] sm:$0xf]
    %v3470 = vld [vmem:[#allocation17 + $0x20] sm:$0xf]
    %v3471 = vld [vmem:[#allocation17 + $0x24] sm:$0xf]
    %v3472 = vld [vmem:[#allocation17 + $0x28] sm:$0xf]
    %v3473 = vld [vmem:[#allocation17 + $0x2c] sm:$0xf]
    %v3474 = vld [vmem:[#allocation17 + $0x30] sm:$0xf]
    %v3475 = vld [vmem:[#allocation17 + $0x34] sm:$0xf]
    %v3476 = vld [vmem:[#allocation17 + $0x38] sm:$0xf]
    %v3477 = vld [vmem:[#allocation17 + $0x3c] sm:$0xf]
    %v3494 = vunpack.c.l.b16 %v3462
    %v3495 = vunpack.c.l.b16 %v3463
    %v3496 = vunpack.c.l.b16 %v3464
    %v3497 = vunpack.c.l.b16 %v3465
    %v3498 = vunpack.c.l.b16 %v3466
    %v3499 = vunpack.c.l.b16 %v3467
    %v3500 = vunpack.c.l.b16 %v3468
    %v3501 = vunpack.c.l.b16 %v3469
    %v3502 = vunpack.c.l.b16 %v3470
    %v3503 = vunpack.c.l.b16 %v3471
    %v3504 = vunpack.c.l.b16 %v3472
    %v3505 = vunpack.c.l.b16 %v3473
    %v3506 = vunpack.c.l.b16 %v3474
    %v3507 = vunpack.c.l.b16 %v3475
    %v3508 = vunpack.c.l.b16 %v3476
    %v3509 = vunpack.c.l.b16 %v3477
    %v3510 = vpack.c.b16 %v3495, %v3494
    %v3511 = vpack.c.b16 %v3497, %v3496
    %v3512 = vpack.c.b16 %v3499, %v3498
    %v3513 = vpack.c.b16 %v3501, %v3500
    %v3514 = vpack.c.b16 %v3503, %v3502
    %v3515 = vpack.c.b16 %v3505, %v3504
    %v3516 = vpack.c.b16 %v3507, %v3506
    %v3517 = vpack.c.b16 %v3509, %v3508
    %3526 = vmatprep.subr.bf16.mxu0 0
    %3527 = vmatpush1.bf16.msra.mxu0 %v3510
    %3528 = vmatprep.subr.bf16.mxu0 0
    %3529 = vmatpush1.bf16.msra.mxu0 %v3511
    %3530 = vmatprep.subr.bf16.mxu0 0
    %3531 = vmatpush1.bf16.msra.mxu0 %v3512
    %3532 = vmatprep.subr.bf16.mxu0 0
    %3533 = vmatpush1.bf16.msra.mxu0 %v3513
    %3534 = vmatprep.subr.bf16.mxu0 0
    %3535 = vmatpush1.bf16.msra.mxu0 %v3514
    %3536 = vmatprep.subr.bf16.mxu0 0
    %3537 = vmatpush1.bf16.msra.mxu0 %v3515
    %3538 = vmatprep.subr.bf16.mxu0 0
    %3539 = vmatpush1.bf16.msra.mxu0 %v3516
    %3540 = vmatprep.subr.bf16.mxu0 0
    %3541 = vmatpush1.bf16.msra.mxu0 %v3517
    %3542 = vmatprep.subr.bf16.mxu0 0
    %3543 = vmatpush1.bf16.msra.mxu0 0
    %3544 = vmatprep.subr.bf16.mxu0 0
    %3545 = vmatpush1.bf16.msra.mxu0 0
    %3546 = vmatprep.subr.bf16.mxu0 0
    %3547 = vmatpush1.bf16.msra.mxu0 0
    %3548 = vmatprep.subr.bf16.mxu0 0
    %3549 = vmatpush1.bf16.msra.mxu0 0
    %3550 = vmatprep.subr.bf16.mxu0 0
    %3551 = vmatpush1.bf16.msra.mxu0 0
    %3552 = vmatprep.subr.bf16.mxu0 0
    %3553 = vmatpush1.bf16.msra.mxu0 0
    %3554 = vmatprep.subr.bf16.mxu0 0
    %3555 = vmatpush1.bf16.msra.mxu0 0
    %3556 = vmatprep.subr.bf16.mxu0 0
    %3557 = vmatpush1.bf16.msra.mxu0 0
    %3558 = vmatprep.mubr.bf16.mxu0 0
    %3559 = vmatmul.mubr.bf16.gmra.mrb[0].mxu0 %v3461
    %v3560 = vpop.f32.mrb[0].mxu0
    %v3561 = vadd.f32 0.0, %v3560
    %v3562 = vpop.f32.mrb[0].mxu0
    %v3563 = vpop.f32.mrb[0].mxu0
    %v3564 = vpop.f32.mrb[0].mxu0
    %3565 = vdwg.mxu0
    %v3582 = vunpack.c.l.b16 %v3444
    %v3583 = vunpack.c.l.b16 %v3445
    %v3584 = vunpack.c.l.b16 %v3446
    %v3585 = vunpack.c.l.b16 %v3447
    %v3586 = vunpack.c.l.b16 %v3448
    %v3587 = vunpack.c.l.b16 %v3449
    %v3588 = vunpack.c.l.b16 %v3450
    %v3589 = vunpack.c.l.b16 %v3451
    %v3590 = vunpack.c.l.b16 %v3452
    %v3591 = vunpack.c.l.b16 %v3453
    %v3592 = vunpack.c.l.b16 %v3454
    %v3593 = vunpack.c.l.b16 %v3455
    %v3594 = vunpack.c.l.b16 %v3456
    %v3595 = vunpack.c.l.b16 %v3457
    %v3596 = vunpack.c.l.b16 %v3458
    %v3597 = vunpack.c.l.b16 %v3459
    %v3598 = vpack.c.b16 %v3583, %v3582
    %v3599 = vpack.c.b16 %v3585, %v3584
    %v3600 = vpack.c.b16 %v3587, %v3586
    %v3601 = vpack.c.b16 %v3589, %v3588
    %v3602 = vpack.c.b16 %v3591, %v3590
    %v3603 = vpack.c.b16 %v3593, %v3592
    %v3604 = vpack.c.b16 %v3595, %v3594
    %v3605 = vpack.c.b16 %v3597, %v3596
    %3614 = vmatprep.subr.bf16.mxu0 0
    %3615 = vmatpush1.bf16.msra.mxu0 %v3598
    %3616 = vmatprep.subr.bf16.mxu0 0
    %3617 = vmatpush1.bf16.msra.mxu0 %v3599
    %3618 = vmatprep.subr.bf16.mxu0 0
    %3619 = vmatpush1.bf16.msra.mxu0 %v3600
    %3620 = vmatprep.subr.bf16.mxu0 0
    %3621 = vmatpush1.bf16.msra.mxu0 %v3601
    %3622 = vmatprep.subr.bf16.mxu0 0
    %3623 = vmatpush1.bf16.msra.mxu0 %v3602
    %3624 = vmatprep.subr.bf16.mxu0 0
    %3625 = vmatpush1.bf16.msra.mxu0 %v3603
    %3626 = vmatprep.subr.bf16.mxu0 0
    %3627 = vmatpush1.bf16.msra.mxu0 %v3604
    %3628 = vmatprep.subr.bf16.mxu0 0
    %3629 = vmatpush1.bf16.msra.mxu0 %v3605
    %3630 = vmatprep.subr.bf16.mxu0 0
    %3631 = vmatpush1.bf16.msra.mxu0 0
    %3632 = vmatprep.subr.bf16.mxu0 0
    %3633 = vmatpush1.bf16.msra.mxu0 0
    %3634 = vmatprep.subr.bf16.mxu0 0
    %3635 = vmatpush1.bf16.msra.mxu0 0
    %3636 = vmatprep.subr.bf16.mxu0 0
    %3637 = vmatpush1.bf16.msra.mxu0 0
    %3638 = vmatprep.subr.bf16.mxu0 0
    %3639 = vmatpush1.bf16.msra.mxu0 0
    %3640 = vmatprep.subr.bf16.mxu0 0
    %3641 = vmatpush1.bf16.msra.mxu0 0
    %3642 = vmatprep.subr.bf16.mxu0 0
    %3643 = vmatpush1.bf16.msra.mxu0 0
    %3644 = vmatprep.subr.bf16.mxu0 0
    %3645 = vmatpush1.bf16.msra.mxu0 0
    %3646 = vmatprep.mubr.bf16.mxu0 0
    %3647 = vmatmul.mubr.bf16.gmra.mrb[0].mxu0 %v3443
    %v3648 = vpop.f32.mrb[0].mxu0
    %v3649 = vadd.f32 %v3561, %v3648
    %v3650 = vpop.f32.mrb[0].mxu0
    %v3651 = vpop.f32.mrb[0].mxu0
    %v3652 = vpop.f32.mrb[0].mxu0
    %3653 = vdwg.mxu0
    %v3654 = vld [vmem:[%s10] sm:$0x1]
    %v3656 = vlaneseq
    %v3657 = vshrl.u32 %v3656, 7
    %v3658 = vsub.s32 0, %v3657
    %v3659 = vrot.slane %v3654, %v3658
    %v3661 = vadd.f32 %v3649, %v3659
    %v3662 = vmax.f32 %v3661, 0.0
    %v3663 = vpack.c.bf16 %v3662, %v3662
    %v3664 = vld [vmem:[#allocation19] sm:$0xf]
    %v3665 = vld [vmem:[#allocation19 + $0x4] sm:$0xf]
    %v3666 = vld [vmem:[#allocation19 + $0x8] sm:$0xf]
    %v3667 = vld [vmem:[#allocation19 + $0xc] sm:$0xf]
    %v3668 = vld [vmem:[#allocation19 + $0x10] sm:$0xf]
    %v3669 = vld [vmem:[#allocation19 + $0x14] sm:$0xf]
    %v3670 = vld [vmem:[#allocation19 + $0x18] sm:$0xf]
    %v3671 = vld [vmem:[#allocation19 + $0x1c] sm:$0xf]
    %v3672 = vld [vmem:[#allocation19 + $0x20] sm:$0xf]
    %v3673 = vld [vmem:[#allocation19 + $0x24] sm:$0xf]
    %v3674 = vld [vmem:[#allocation19 + $0x28] sm:$0xf]
    %v3675 = vld [vmem:[#allocation19 + $0x2c] sm:$0xf]
    %v3676 = vld [vmem:[#allocation19 + $0x30] sm:$0xf]
    %v3677 = vld [vmem:[#allocation19 + $0x34] sm:$0xf]
    %v3678 = vld [vmem:[#allocation19 + $0x38] sm:$0xf]
    %v3679 = vld [vmem:[#allocation19 + $0x3c] sm:$0xf]
    %v3680 = vld [vmem:[%s12] sm:$0x1]
    %v3682 = vlaneseq
    %v3683 = vshrl.u32 %v3682, 7
    %v3684 = vsub.s32 0, %v3683
    %v3685 = vrot.slane %v3680, %v3684
    %v3703 = vunpack.c.l.b16 %v3664
    %v3704 = vunpack.c.l.b16 %v3665
    %v3705 = vunpack.c.l.b16 %v3666
    %v3706 = vunpack.c.l.b16 %v3667
    %v3707 = vunpack.c.l.b16 %v3668
    %v3708 = vunpack.c.l.b16 %v3669
    %v3709 = vunpack.c.l.b16 %v3670
    %v3710 = vunpack.c.l.b16 %v3671
    %v3711 = vunpack.c.l.b16 %v3672
    %v3712 = vunpack.c.l.b16 %v3673
    %v3713 = vunpack.c.l.b16 %v3674
    %v3714 = vunpack.c.l.b16 %v3675
    %v3715 = vunpack.c.l.b16 %v3676
    %v3716 = vunpack.c.l.b16 %v3677
    %v3717 = vunpack.c.l.b16 %v3678
    %v3718 = vunpack.c.l.b16 %v3679
    %v3719 = vpack.c.b16 %v3704, %v3703
    %v3720 = vpack.c.b16 %v3706, %v3705
    %v3721 = vpack.c.b16 %v3708, %v3707
    %v3722 = vpack.c.b16 %v3710, %v3709
    %v3723 = vpack.c.b16 %v3712, %v3711
    %v3724 = vpack.c.b16 %v3714, %v3713
    %v3725 = vpack.c.b16 %v3716, %v3715
    %v3726 = vpack.c.b16 %v3718, %v3717
    %3735 = vmatprep.subr.bf16.mxu0 0
    %3736 = vmatpush1.bf16.msra.mxu0 %v3719
    %3737 = vmatprep.subr.bf16.mxu0 0
    %3738 = vmatpush1.bf16.msra.mxu0 %v3720
    %3739 = vmatprep.subr.bf16.mxu0 0
    %3740 = vmatpush1.bf16.msra.mxu0 %v3721
    %3741 = vmatprep.subr.bf16.mxu0 0
    %3742 = vmatpush1.bf16.msra.mxu0 %v3722
    %3743 = vmatprep.subr.bf16.mxu0 0
    %3744 = vmatpush1.bf16.msra.mxu0 %v3723
    %3745 = vmatprep.subr.bf16.mxu0 0
    %3746 = vmatpush1.bf16.msra.mxu0 %v3724
    %3747 = vmatprep.subr.bf16.mxu0 0
    %3748 = vmatpush1.bf16.msra.mxu0 %v3725
    %3749 = vmatprep.subr.bf16.mxu0 0
    %3750 = vmatpush1.bf16.msra.mxu0 %v3726
    %3751 = vmatprep.subr.bf16.mxu0 0
    %3752 = vmatpush1.bf16.msra.mxu0 0
    %3753 = vmatprep.subr.bf16.mxu0 0
    %3754 = vmatpush1.bf16.msra.mxu0 0
    %3755 = vmatprep.subr.bf16.mxu0 0
    %3756 = vmatpush1.bf16.msra.mxu0 0
    %3757 = vmatprep.subr.bf16.mxu0 0
    %3758 = vmatpush1.bf16.msra.mxu0 0
    %3759 = vmatprep.subr.bf16.mxu0 0
    %3760 = vmatpush1.bf16.msra.mxu0 0
    %3761 = vmatprep.subr.bf16.mxu0 0
    %3762 = vmatpush1.bf16.msra.mxu0 0
    %3763 = vmatprep.subr.bf16.mxu0 0
    %3764 = vmatpush1.bf16.msra.mxu0 0
    %3765 = vmatprep.subr.bf16.mxu0 0
    %3766 = vmatpush1.bf16.msra.mxu0 0
    %3767 = vmatprep.mubr.bf16.mxu0 0
    %3768 = vmatmul.mubr.bf16.gmra.mrb[0].mxu0 %v3663
    %v3769 = vpop.f32.mrb[0].mxu0
    %v3770 = vadd.f32 %v3685, %v3769
    %v3771 = vpop.f32.mrb[0].mxu0
    %v3772 = vpop.f32.mrb[0].mxu0
    %v3773 = vpop.f32.mrb[0].mxu0
    %3774 = vdwg.mxu0
    %3775 = vst [vmem:[#allocation20] sm:$0xff] %v3770
    // Predicated region
    $region94: #{tpu_custom_call.1} parent=1 // pred_check
      _
    $region95: #{tpu_custom_call.1} parent=1 // pred_check_branch
      %3777 = sbr.rel (0) target = $region97
    $region96: #{tpu_custom_call.1} parent=1 // pred_region
      %s3779 = ssub.s32 128, 128
      %3780 = vsyncadd [#allocation5], %s3779
      %s3782 = sshll.u32 [#allocation20], 4
      %s3783 = int_to_ptr.vmem [resolvable:$true] %s3782
      %3785 = dma.vmem_to_hbm [thread:$0]  %s3783, 128, %s13, [#allocation5]
    $region97: #{tpu_custom_call.1} parent=1 // pred_fallthru
      _
    // Predicated region
    $region98: #{tpu_custom_call.1} parent=1 // pred_check
      _
    $region99: #{tpu_custom_call.1} parent=1 // pred_check_branch
      %3787 = sbr.rel (0) target = $region101
    $region100: #{tpu_custom_call.1} parent=1 // pred_region
      %3788 = dma.done [#allocation5], 128
    $region101: #{tpu_custom_call.1} parent=1 // pred_fallthru
      _
    %3789 = vsyncpa [#allocation4], 1
    %3790 = vsyncpa [#allocation8], 1
    %3791 = vsyncpa [#allocation15], 1
    %3792 = vsyncpa [#allocation18], 1
    %3793 = vsyncpa [#allocation5], 1
    %3794 = vsyncpa [#allocation6], 1
    %3795 = vsyncpa [#allocation12], 1

</llo_original>
